<compile_context>
chip_gen: v5e
topology: v5e:2x2
jax: 0.10.0
libtpu: 0.0.40
codegen_flags: <defaults>
</compile_context>

<pallas_src>
import functools

import jax
import jax.numpy as jnp
from jax import lax
from jax.experimental import pallas as pl
from jax.experimental.pallas import tpu as pltpu

# ----------------------------------------------------------------------------
# Model hyper-parameters (small, consistent with the module's forward signature)
# ----------------------------------------------------------------------------
VOCAB   = 40    # phoneme vocabulary
HID     = 32    # encoder hidden size
FFN     = 64    # feed-forward inner size
HEADS   = 2     # attention heads
DHEAD   = HID // HEADS
N_MEL   = 16    # mel channels
LATENT  = 16    # VAE latent size
HALF    = N_MEL // 2
EPS_LN  = 1e-5

# packed output layout of the fused kernel: [cond | out_res | vg_out | post | mu | logvar | z]
OUT_W   = HID + HID + N_MEL + N_MEL + 3 * LATENT          # 144
OUT_PAD = 256                                             # lane-dense (multiple of 128)

_PARALLEL = pltpu.CompilerParams(dimension_semantics=("parallel",))


# ----------------------------------------------------------------------------
# In-kernel helpers
# ----------------------------------------------------------------------------
def _ln(x, g, b):
    mu = jnp.mean(x, axis=-1, keepdims=True)
    var = jnp.mean(jnp.square(x - mu), axis=-1, keepdims=True)
    return (x - mu) * lax.rsqrt(var + EPS_LN) * g + b


# ----------------------------------------------------------------------------
# Single fused kernel: encoder block + word pooling + duration predictor +
#                      alignment expansion + variational generator + flow postnet
# (one batch element per grid step; everything stays in VMEM)
# ----------------------------------------------------------------------------
def _portaspeech_kernel(x_ref, bias_ref, keep_ref,
                        oh_ref, oht_ref, wkeep_ref,
                        a_ref, mel_ref, mkeep_ref, eps_ref,
                        wqkv_ref, bqkv_ref, wo_ref, bo_ref,
                        ln1g_ref, ln1b_ref, w1_ref, b1_ref, w2_ref, b2_ref,
                        ln2g_ref, ln2b_ref,
                        dpw1_ref, dpb1_ref, dpw2_ref, dpb2_ref,
                        melw_ref, condw_ref, vgb_ref, mulvw_ref, mulvb_ref,
                        d1w_ref, d1b_ref, resw_ref, resb_ref, outw_ref, outb_ref,
                        pnwx_ref, pnwg_ref, pnb_ref, pnwo_ref, pnbo_ref,
                        packed_ref, logd_ref, *, scale):
    # ---------------- transformer encoder block ----------------
    x = x_ref[0]                    # [Tp, HID]
    bias = bias_ref[0]              # [1, Tp]   additive key mask (0 / -1e9)
    keep = keep_ref[0]              # [Tp, 1]   1.0 = valid phoneme

    # fused Q|K|V projection (one MXU pass, N = 3*HID)
    qkv = jnp.dot(x, wqkv_ref[...], preferred_element_type=jnp.float32) + bqkv_ref[...]

    ctx = []
    for h in range(HEADS):          # static unroll over heads, all resident in VMEM
        q = qkv[:, h * DHEAD:(h + 1) * DHEAD]
        k = qkv[:, HID + h * DHEAD:HID + (h + 1) * DHEAD]
        v = qkv[:, 2 * HID + h * DHEAD:2 * HID + (h + 1) * DHEAD]
        # q @ k^T without explicit transpose
        s = lax.dot_general(q, k, (((1,), (1,)), ((), ())),
                            preferred_element_type=jnp.float32) * scale + bias
        s = s - jnp.max(s, axis=-1, keepdims=True)
        p = jnp.exp(s)
        p = p * pl.reciprocal(jnp.sum(p, axis=-1, keepdims=True), approx=True)
        ctx.append(jnp.dot(p, v, preferred_element_type=jnp.float32))
    ctx = jnp.concatenate(ctx, axis=-1)                          # [Tp, HID]

    attn = jnp.dot(ctx, wo_ref[...], preferred_element_type=jnp.float32) + bo_ref[...]
    x1 = _ln(x + attn, ln1g_ref[...], ln1b_ref[...])
    ff = jnp.maximum(
        jnp.dot(x1, w1_ref[...], preferred_element_type=jnp.float32) + b1_ref[...], 0.0)
    ff = jnp.dot(ff, w2_ref[...], preferred_element_type=jnp.float32) + b2_ref[...]
    enc = _ln(x1 + ff, ln2g_ref[...], ln2b_ref[...]) * keep      # [Tp, HID], padded rows zeroed

    # ---------------- word pooling + scatter-back + duration predictor ----------------
    oh = oh_ref[0]                  # [Tw, Tp]  phoneme->word one-hot (padded phonemes zeroed)
    oht = oht_ref[0]                # [Tp, Tw]
    wkeep = wkeep_ref[0]            # [Tw, 1]

    ws = jnp.dot(oh, enc, preferred_element_type=jnp.float32)    # [Tw, HID]
    counts = jnp.sum(oh, axis=-1, keepdims=True)
    wf = ws / jnp.maximum(counts, 1.0) * wkeep                   # word-level mean features
    e2 = enc + jnp.dot(oht, wf, preferred_element_type=jnp.float32)

    dh = jnp.maximum(
        jnp.dot(e2, dpw1_ref[...], preferred_element_type=jnp.float32) + dpb1_ref[...], 0.0)
    logd = (jnp.dot(dh, dpw2_ref[...], preferred_element_type=jnp.float32)
            + dpb2_ref[...]) * keep                              # zero at padded phonemes
    logd_ref[0] = logd.astype(logd_ref.dtype)

    # ---------------- alignment expansion + variational generator + flow postnet ----------------
    a = a_ref[0]                    # [Tm, Tp]   hard alignment matrix
    mkeep = mkeep_ref[0]            # [Tm, 1]
    mel = mel_ref[0] * mkeep        # [Tm, N_MEL]
    eps = eps_ref[0]                # [Tm, LATENT]

    # length-regulated linguistic features (== residual / VG condition)
    cond = jnp.dot(a, e2, preferred_element_type=jnp.float32) * mkeep        # [Tm, HID]

    # variational generator encoder
    hve = jnp.maximum(
        jnp.dot(mel, melw_ref[...], preferred_element_type=jnp.float32)
        + jnp.dot(cond, condw_ref[...], preferred_element_type=jnp.float32)
        + vgb_ref[...], 0.0)
    mulv = jnp.dot(hve, mulvw_ref[...], preferred_element_type=jnp.float32) + mulvb_ref[...]
    mu = mulv[:, :LATENT]
    logvar = mulv[:, LATENT:]
    z = mu + jnp.exp(0.5 * logvar) * eps

    # variational generator decoder
    hd = jnp.maximum(
        jnp.dot(z, d1w_ref[...], preferred_element_type=jnp.float32) + d1b_ref[...] + cond, 0.0)
    out_res = (jnp.dot(hd, resw_ref[...], preferred_element_type=jnp.float32)
               + resb_ref[...]) * mkeep
    vg_out = (jnp.dot(hd, outw_ref[...], preferred_element_type=jnp.float32)
              + outb_ref[...]) * mkeep

    # flow postnet: single affine coupling conditioned on g = out_residual + residual
    g = (out_res + cond) * mkeep
    xa = mel[:, :HALF]
    xb = mel[:, HALF:]
    hc = jnp.tanh(jnp.dot(xa, pnwx_ref[...], preferred_element_type=jnp.float32)
                  + jnp.dot(g, pnwg_ref[...], preferred_element_type=jnp.float32)
                  + pnb_ref[...])
    cp = jnp.dot(hc, pnwo_ref[...], preferred_element_type=jnp.float32) + pnbo_ref[...]
    logs = cp[:, :HALF]
    t = cp[:, HALF:]
    zb = xb * jnp.exp(logs) + t
    post = jnp.concatenate([xa, zb], axis=-1) * mkeep            # [Tm, N_MEL]

    # one lane-dense packed output slab (zero-padded to 256 lanes -> unmasked stores)
    pad = jnp.zeros((a.shape[0], OUT_PAD - OUT_W), jnp.float32)
    packed_ref[0] = jnp.concatenate(
        [cond, out_res, vg_out, post, mu, logvar, z, pad], axis=-1).astype(packed_ref.dtype)


def fused_forward(p, x, bias, keep_ph, onehot, onehot_t, w_keep, A, mels, mel_keep, eps):
    B, Tp, _ = x.shape
    Tw = onehot.shape[1]
    Tm = A.shape[1]

    # fused weight slabs
    wqkv = jnp.concatenate([p["wq"], p["wk"], p["wv"]], axis=1)
    bqkv = jnp.concatenate([p["bq"], p["bk"], p["bv"]]).reshape(1, 3 * HID)
    mulvw = jnp.concatenate([p["vg_mu_w"], p["vg_lv_w"]], axis=1)
    mulvb = jnp.concatenate([p["vg_mu_b"], p["vg_lv_b"]]).reshape(1, 2 * LATENT)
    vgb = (p["vg_mel_b"] + p["vg_cond_b"]).reshape(1, HID)

    def bspec(r, c):                       # per-batch activation block
        return pl.BlockSpec((1, r, c), lambda i: (i, 0, 0))

    def wspec(r, c):                       # resident weight block (fetched once)
        return pl.BlockSpec((r, c), lambda i: (0, 0))

    return pl.pallas_call(
        functools.partial(_portaspeech_kernel, scale=1.0 / (DHEAD ** 0.5)),
        out_shape=(jax.ShapeDtypeStruct((B, Tm, OUT_PAD), jnp.float32),
                   jax.ShapeDtypeStruct((B, Tp, 1), jnp.float32)),
        grid=(B,),
        in_specs=[
            # per-batch activations
            bspec(Tp, HID), bspec(1, Tp), bspec(Tp, 1),
            bspec(Tw, Tp), bspec(Tp, Tw), bspec(Tw, 1),
            bspec(Tm, Tp), bspec(Tm, N_MEL), bspec(Tm, 1), bspec(Tm, LATENT),
            # encoder block weights
            wspec(HID, 3 * HID), wspec(1, 3 * HID),
            wspec(HID, HID), wspec(1, HID),
            wspec(1, HID), wspec(1, HID),
            wspec(HID, FFN), wspec(1, FFN),
            wspec(FFN, HID), wspec(1, HID),
            wspec(1, HID), wspec(1, HID),
            # duration predictor
            wspec(HID, HID), wspec(1, HID),
            wspec(HID, 1), wspec(1, 1),
            # variational generator
            wspec(N_MEL, HID), wspec(HID, HID), wspec(1, HID),
            wspec(HID, 2 * LATENT), wspec(1, 2 * LATENT),
            wspec(LATENT, HID), wspec(1, HID),
            wspec(HID, HID), wspec(1, HID),
            wspec(HID, N_MEL), wspec(1, N_MEL),
            # flow postnet coupling
            wspec(HALF, HID), wspec(HID, HID), wspec(1, HID),
            wspec(HID, N_MEL), wspec(1, N_MEL),
        ],
        out_specs=(pl.BlockSpec((1, Tm, OUT_PAD), lambda i: (i, 0, 0)),
                   pl.BlockSpec((1, Tp, 1), lambda i: (i, 0, 0))),
        compiler_params=_PARALLEL,
    )(x, bias, keep_ph, onehot, onehot_t, w_keep, A, mels, mel_keep, eps,
      wqkv, bqkv, p["wo"], p["bo"].reshape(1, HID),
      p["ln1_g"].reshape(1, HID), p["ln1_b"].reshape(1, HID),
      p["ffn_w1"], p["ffn_b1"].reshape(1, FFN),
      p["ffn_w2"], p["ffn_b2"].reshape(1, HID),
      p["ln2_g"].reshape(1, HID), p["ln2_b"].reshape(1, HID),
      p["dp_w1"], p["dp_b1"].reshape(1, HID),
      p["dp_w2"], p["dp_b2"].reshape(1, 1),
      p["vg_mel_w"], p["vg_cond_w"], vgb, mulvw, mulvb,
      p["vg_d1_w"], p["vg_d1_b"].reshape(1, HID),
      p["vg_res_w"], p["vg_res_b"].reshape(1, HID),
      p["vg_out_w"], p["vg_out_b"].reshape(1, N_MEL),
      p["pn_wx"], p["pn_wg"], p["pn_b"].reshape(1, HID),
      p["pn_wo"], p["pn_bo"].reshape(1, N_MEL))


# ----------------------------------------------------------------------------
# Parameter initialization (deterministic, synthetic)
# ----------------------------------------------------------------------------
def init_params(key):
    def nxt():
        nonlocal key
        key, sub = jax.random.split(key)
        return sub

    def w(shape, scale=0.1):
        return scale * jax.random.normal(nxt(), shape, jnp.float32)

    p = {}
    p["emb"] = w((VOCAB, HID), 0.3)
    for name in ("wq", "wk", "wv", "wo"):
        p[name] = w((HID, HID)); p["b" + name[1:]] = jnp.zeros((HID,), jnp.float32)
    p["ln1_g"] = jnp.ones((HID,), jnp.float32); p["ln1_b"] = jnp.zeros((HID,), jnp.float32)
    p["ln2_g"] = jnp.ones((HID,), jnp.float32); p["ln2_b"] = jnp.zeros((HID,), jnp.float32)
    p["ffn_w1"] = w((HID, FFN)); p["ffn_b1"] = jnp.zeros((FFN,), jnp.float32)
    p["ffn_w2"] = w((FFN, HID)); p["ffn_b2"] = jnp.zeros((HID,), jnp.float32)
    p["dp_w1"] = w((HID, HID)); p["dp_b1"] = jnp.zeros((HID,), jnp.float32)
    p["dp_w2"] = w((HID, 1));   p["dp_b2"] = jnp.zeros((1,), jnp.float32)
    p["vg_mel_w"] = w((N_MEL, HID)); p["vg_mel_b"] = jnp.zeros((HID,), jnp.float32)
    p["vg_cond_w"] = w((HID, HID));  p["vg_cond_b"] = jnp.zeros((HID,), jnp.float32)
    p["vg_mu_w"] = w((HID, LATENT)); p["vg_mu_b"] = jnp.zeros((LATENT,), jnp.float32)
    p["vg_lv_w"] = w((HID, LATENT)); p["vg_lv_b"] = jnp.zeros((LATENT,), jnp.float32)
    p["vg_d1_w"] = w((LATENT, HID)); p["vg_d1_b"] = jnp.zeros((HID,), jnp.float32)
    p["vg_res_w"] = w((HID, HID));   p["vg_res_b"] = jnp.zeros((HID,), jnp.float32)
    p["vg_out_w"] = w((HID, N_MEL)); p["vg_out_b"] = jnp.zeros((N_MEL,), jnp.float32)
    p["pn_wx"] = w((HALF, HID)); p["pn_wg"] = w((HID, HID)); p["pn_b"] = jnp.zeros((HID,), jnp.float32)
    p["pn_wo"] = w((HID, N_MEL), 0.05); p["pn_bo"] = jnp.zeros((N_MEL,), jnp.float32)
    return p


# ----------------------------------------------------------------------------
# PortaSpeech forward (jit-wrapped in main)
# ----------------------------------------------------------------------------
def get_mask_from_lengths(lengths, max_len):
    ids = jnp.arange(max_len)[None, :]
    return ids >= lengths[:, None]          # True = padding (PortaSpeech convention)


def portaspeech_forward(p, phonemes, phoneme_lens, max_phoneme_len,
                        word_boundaries, word_lens, max_word_len,
                        attn_priors=None, mels=None, mel_lens=None, max_mel_len=None,
                        durations=None, d_control=1.0, eps_key=None):
    B, Tp = phonemes.shape
    Tw = max_word_len

    src_masks = get_mask_from_lengths(phoneme_lens, max_phoneme_len)
    src_w_masks = get_mask_from_lengths(word_lens, max_word_len)
    mel_masks = get_mask_from_lengths(mel_lens, max_mel_len)

    # ---- kernel input prep (tiny, fused by XLA under jit) -------------------
    x = p["emb"][phonemes]                                       # [B, Tp, HID]
    bias = jnp.where(src_masks, -1e9, 0.0).astype(jnp.float32)[:, None, :]   # [B,1,Tp]
    keep_ph = (~src_masks).astype(jnp.float32)[:, :, None]                   # [B,Tp,1]

    valid_ph = (~src_masks).astype(jnp.float32)
    onehot = (word_boundaries[:, None, :] == jnp.arange(Tw)[None, :, None]).astype(jnp.float32)
    onehot = onehot * valid_ph[:, None, :]                       # [B, Tw, Tp]
    onehot_t = onehot.transpose(0, 2, 1)                         # [B, Tp, Tw]
    w_keep = (~src_w_masks).astype(jnp.float32)[:, :, None]      # [B, Tw, 1]

    # ---- length regulation with ground-truth durations (training path) -----
    dur = jnp.where(src_masks, 0, durations).astype(jnp.float32)
    cum = jnp.cumsum(dur, axis=1)
    starts = cum - dur
    t_ids = jnp.arange(max_mel_len)[None, :, None].astype(jnp.float32)
    A = ((t_ids >= starts[:, None, :]) & (t_ids < cum[:, None, :])).astype(jnp.float32)
    mel_lens_out = jnp.sum(dur, axis=1).astype(jnp.int32)
    alignment_logprobs = None  # TODO(synk): CTC-style soft alignment log-probs (attn_priors) not modeled

    mel_keep = (~mel_masks).astype(jnp.float32)[:, :, None]
    eps = jax.random.normal(eps_key, (B, max_mel_len, LATENT), jnp.float32)

    # ---- single fused Pallas kernel -----------------------------------------
    packed, logd = fused_forward(p, x, bias, keep_ph, onehot, onehot_t, w_keep,
                                 A, mels, mel_keep, eps)

    log_d = logd[..., 0]                                          # already zeroed at pads
    d_rounded = jnp.clip(jnp.round((jnp.exp(log_d) - 1.0) * d_control), 0.0, None)

    o0 = 0
    expanded = packed[..., o0:o0 + HID];                 o0 += HID       # residual
    out_res  = packed[..., o0:o0 + HID];                 o0 += HID
    vg_out   = packed[..., o0:o0 + N_MEL];               o0 += N_MEL
    post     = packed[..., o0:o0 + N_MEL];               o0 += N_MEL
    mu       = packed[..., o0:o0 + LATENT];              o0 += LATENT
    logvar   = packed[..., o0:o0 + LATENT];              o0 += LATENT
    z        = packed[..., o0:o0 + LATENT]
    # TODO(synk): full Glow postnet stacks many invertible-1x1-conv + WaveNet coupling blocks
    #             and returns the NLL; a single affine coupling transform is modeled here.

    return {
        "output": vg_out,
        "postnet_output": post.transpose(0, 2, 1),               # [B, n_mel, Tm]
        "log_d_predictions": log_d,
        "d_rounded": d_rounded,
        "src_masks": src_masks,
        "mel_masks": mel_masks,
        "phoneme_lens": phoneme_lens,
        "mel_lens": mel_lens_out,
        "alignments": A,
        "dist_info": (mu, logvar, z),
        "src_w_masks": src_w_masks,
        "residual": expanded,
        "alignment_logprobs": alignment_logprobs,
    }


# ----------------------------------------------------------------------------
# Main
# ----------------------------------------------------------------------------
if __name__ == "__main__":
    B, Tp, Tw, Tm = 2, 8, 4, 16

    key = jax.random.PRNGKey(0)
    k_ph, k_mel, k_eps = jax.random.split(key, 3)

    params = init_params(jax.random.PRNGKey(42))

    phonemes = jax.random.randint(k_ph, (B, Tp), 1, VOCAB, dtype=jnp.int32)
    phoneme_lens = jnp.array([8, 6], dtype=jnp.int32)
    word_boundaries = jnp.broadcast_to(jnp.arange(Tp, dtype=jnp.int32) // 2, (B, Tp))
    word_lens = jnp.array([4, 3], dtype=jnp.int32)
    durations = jnp.full((B, Tp), 2, dtype=jnp.int32)            # 8*2=16, 6*2=12 frames
    mel_lens = jnp.array([16, 12], dtype=jnp.int32)
    mels = jax.random.normal(k_mel, (B, Tm, N_MEL), jnp.float32)  # layout: [B, T_mel, n_mel]

    forward_jit = jax.jit(
        portaspeech_forward,
        static_argnames=("max_phoneme_len", "max_word_len", "max_mel_len"))

    out = forward_jit(
        params, phonemes, phoneme_lens,
        max_phoneme_len=Tp,
        word_boundaries=word_boundaries, word_lens=word_lens, max_word_len=Tw,
        attn_priors=None, mels=mels, mel_lens=mel_lens, max_mel_len=Tm,
        durations=durations, d_control=1.0, eps_key=k_eps,
    )

    jax.block_until_ready(out["output"])
    jax.block_until_ready(out["postnet_output"])

    assert out["output"].shape == (B, Tm, N_MEL)
    assert out["postnet_output"].shape == (B, N_MEL, Tm)
    assert out["log_d_predictions"].shape == (B, Tp)
    assert out["alignments"].shape == (B, Tm, Tp)
    assert out["residual"].shape == (B, Tm, HID)
    assert out["dist_info"][0].shape == (B, Tm, LATENT)

    print("KERNEL_OK")
</pallas_src>

<mosaic_0001>
module attributes {stable_mosaic.version = 11 : i64} {
  func.func @_portaspeech_kernel(%arg0: i32, %arg1: memref<1x8x32xf32, #tpu.memory_space<vmem>>, %arg2: memref<1x1x8xf32, #tpu.memory_space<vmem>>, %arg3: memref<1x8x1xf32, #tpu.memory_space<vmem>>, %arg4: memref<1x4x8xf32, #tpu.memory_space<vmem>>, %arg5: memref<1x8x4xf32, #tpu.memory_space<vmem>>, %arg6: memref<1x4x1xf32, #tpu.memory_space<vmem>>, %arg7: memref<1x16x8xf32, #tpu.memory_space<vmem>>, %arg8: memref<1x16x16xf32, #tpu.memory_space<vmem>>, %arg9: memref<1x16x1xf32, #tpu.memory_space<vmem>>, %arg10: memref<1x16x16xf32, #tpu.memory_space<vmem>>, %arg11: memref<32x96xf32, #tpu.memory_space<vmem>>, %arg12: memref<1x96xf32, #tpu.memory_space<vmem>>, %arg13: memref<32x32xf32, #tpu.memory_space<vmem>>, %arg14: memref<1x32xf32, #tpu.memory_space<vmem>>, %arg15: memref<1x32xf32, #tpu.memory_space<vmem>>, %arg16: memref<1x32xf32, #tpu.memory_space<vmem>>, %arg17: memref<32x64xf32, #tpu.memory_space<vmem>>, %arg18: memref<1x64xf32, #tpu.memory_space<vmem>>, %arg19: memref<64x32xf32, #tpu.memory_space<vmem>>, %arg20: memref<1x32xf32, #tpu.memory_space<vmem>>, %arg21: memref<1x32xf32, #tpu.memory_space<vmem>>, %arg22: memref<1x32xf32, #tpu.memory_space<vmem>>, %arg23: memref<32x32xf32, #tpu.memory_space<vmem>>, %arg24: memref<1x32xf32, #tpu.memory_space<vmem>>, %arg25: memref<32x1xf32, #tpu.memory_space<vmem>>, %arg26: memref<1x1xf32, #tpu.memory_space<vmem>>, %arg27: memref<16x32xf32, #tpu.memory_space<vmem>>, %arg28: memref<32x32xf32, #tpu.memory_space<vmem>>, %arg29: memref<1x32xf32, #tpu.memory_space<vmem>>, %arg30: memref<32x32xf32, #tpu.memory_space<vmem>>, %arg31: memref<1x32xf32, #tpu.memory_space<vmem>>, %arg32: memref<16x32xf32, #tpu.memory_space<vmem>>, %arg33: memref<1x32xf32, #tpu.memory_space<vmem>>, %arg34: memref<32x32xf32, #tpu.memory_space<vmem>>, %arg35: memref<1x32xf32, #tpu.memory_space<vmem>>, %arg36: memref<32x16xf32, #tpu.memory_space<vmem>>, %arg37: memref<1x16xf32, #tpu.memory_space<vmem>>, %arg38: memref<8x32xf32, #tpu.memory_space<vmem>>, %arg39: memref<32x32xf32, #tpu.memory_space<vmem>>, %arg40: memref<1x32xf32, #tpu.memory_space<vmem>>, %arg41: memref<32x16xf32, #tpu.memory_space<vmem>>, %arg42: memref<1x16xf32, #tpu.memory_space<vmem>>, %arg43: memref<1x16x256xf32, #tpu.memory_space<vmem>>, %arg44: memref<1x8x1xf32, #tpu.memory_space<vmem>>) attributes {dimension_semantics = [#tpu.dimension_semantics<parallel>], iteration_bounds = array<i64: 2>, scalar_prefetch = 0 : i64, scratch_operands = 0 : i64, tpu.core_type = #tpu.core_type<tc>, window_params = [{transform_indices = @transform_0, window_bounds = array<i64: 1, 8, 32>}, {transform_indices = @transform_1, window_bounds = array<i64: 1, 1, 8>}, {transform_indices = @transform_2, window_bounds = array<i64: 1, 8, 1>}, {transform_indices = @transform_3, window_bounds = array<i64: 1, 4, 8>}, {transform_indices = @transform_4, window_bounds = array<i64: 1, 8, 4>}, {transform_indices = @transform_5, window_bounds = array<i64: 1, 4, 1>}, {transform_indices = @transform_6, window_bounds = array<i64: 1, 16, 8>}, {transform_indices = @transform_7, window_bounds = array<i64: 1, 16, 16>}, {transform_indices = @transform_8, window_bounds = array<i64: 1, 16, 1>}, {transform_indices = @transform_9, window_bounds = array<i64: 1, 16, 16>}, {pipeline_mode = #tpu.pipeline_mode<synchronous>, transform_indices = @transform_10, window_bounds = array<i64: 32, 96>}, {pipeline_mode = #tpu.pipeline_mode<synchronous>, transform_indices = @transform_11, window_bounds = array<i64: 1, 96>}, {pipeline_mode = #tpu.pipeline_mode<synchronous>, transform_indices = @transform_12, window_bounds = array<i64: 32, 32>}, {pipeline_mode = #tpu.pipeline_mode<synchronous>, transform_indices = @transform_13, window_bounds = array<i64: 1, 32>}, {pipeline_mode = #tpu.pipeline_mode<synchronous>, transform_indices = @transform_14, window_bounds = array<i64: 1, 32>}, {pipeline_mode = #tpu.pipeline_mode<synchronous>, transform_indices = @transform_15, window_bounds = array<i64: 1, 32>}, {pipeline_mode = #tpu.pipeline_mode<synchronous>, transform_indices = @transform_16, window_bounds = array<i64: 32, 64>}, {pipeline_mode = #tpu.pipeline_mode<synchronous>, transform_indices = @transform_17, window_bounds = array<i64: 1, 64>}, {pipeline_mode = #tpu.pipeline_mode<synchronous>, transform_indices = @transform_18, window_bounds = array<i64: 64, 32>}, {pipeline_mode = #tpu.pipeline_mode<synchronous>, transform_indices = @transform_19, window_bounds = array<i64: 1, 32>}, {pipeline_mode = #tpu.pipeline_mode<synchronous>, transform_indices = @transform_20, window_bounds = array<i64: 1, 32>}, {pipeline_mode = #tpu.pipeline_mode<synchronous>, transform_indices = @transform_21, window_bounds = array<i64: 1, 32>}, {pipeline_mode = #tpu.pipeline_mode<synchronous>, transform_indices = @transform_22, window_bounds = array<i64: 32, 32>}, {pipeline_mode = #tpu.pipeline_mode<synchronous>, transform_indices = @transform_23, window_bounds = array<i64: 1, 32>}, {pipeline_mode = #tpu.pipeline_mode<synchronous>, transform_indices = @transform_24, window_bounds = array<i64: 32, 1>}, {pipeline_mode = #tpu.pipeline_mode<synchronous>, transform_indices = @transform_25, window_bounds = array<i64: 1, 1>}, {pipeline_mode = #tpu.pipeline_mode<synchronous>, transform_indices = @transform_26, window_bounds = array<i64: 16, 32>}, {pipeline_mode = #tpu.pipeline_mode<synchronous>, transform_indices = @transform_27, window_bounds = array<i64: 32, 32>}, {pipeline_mode = #tpu.pipeline_mode<synchronous>, transform_indices = @transform_28, window_bounds = array<i64: 1, 32>}, {pipeline_mode = #tpu.pipeline_mode<synchronous>, transform_indices = @transform_29, window_bounds = array<i64: 32, 32>}, {pipeline_mode = #tpu.pipeline_mode<synchronous>, transform_indices = @transform_30, window_bounds = array<i64: 1, 32>}, {pipeline_mode = #tpu.pipeline_mode<synchronous>, transform_indices = @transform_31, window_bounds = array<i64: 16, 32>}, {pipeline_mode = #tpu.pipeline_mode<synchronous>, transform_indices = @transform_32, window_bounds = array<i64: 1, 32>}, {pipeline_mode = #tpu.pipeline_mode<synchronous>, transform_indices = @transform_33, window_bounds = array<i64: 32, 32>}, {pipeline_mode = #tpu.pipeline_mode<synchronous>, transform_indices = @transform_34, window_bounds = array<i64: 1, 32>}, {pipeline_mode = #tpu.pipeline_mode<synchronous>, transform_indices = @transform_35, window_bounds = array<i64: 32, 16>}, {pipeline_mode = #tpu.pipeline_mode<synchronous>, transform_indices = @transform_36, window_bounds = array<i64: 1, 16>}, {pipeline_mode = #tpu.pipeline_mode<synchronous>, transform_indices = @transform_37, window_bounds = array<i64: 8, 32>}, {pipeline_mode = #tpu.pipeline_mode<synchronous>, transform_indices = @transform_38, window_bounds = array<i64: 32, 32>}, {pipeline_mode = #tpu.pipeline_mode<synchronous>, transform_indices = @transform_39, window_bounds = array<i64: 1, 32>}, {pipeline_mode = #tpu.pipeline_mode<synchronous>, transform_indices = @transform_40, window_bounds = array<i64: 32, 16>}, {pipeline_mode = #tpu.pipeline_mode<synchronous>, transform_indices = @transform_41, window_bounds = array<i64: 1, 16>}, {transform_indices = @transform_42, window_bounds = array<i64: 1, 16, 256>}, {transform_indices = @transform_43, window_bounds = array<i64: 1, 8, 1>}]} {
    %c0 = arith.constant 0 : index
    %c0_0 = arith.constant 0 : index
    %c0_1 = arith.constant 0 : index
    %0 = vector.load %arg1[%c0, %c0_0, %c0_1] : memref<1x8x32xf32, #tpu.memory_space<vmem>>, vector<1x8x32xf32>
    %1 = vector.shape_cast %0 : vector<1x8x32xf32> to vector<8x32xf32>
    %c0_2 = arith.constant 0 : index
    %c0_3 = arith.constant 0 : index
    %c0_4 = arith.constant 0 : index
    %2 = vector.load %arg2[%c0_2, %c0_3, %c0_4] : memref<1x1x8xf32, #tpu.memory_space<vmem>>, vector<1x1x8xf32>
    %3 = vector.shape_cast %2 : vector<1x1x8xf32> to vector<1x8xf32>
    %c0_5 = arith.constant 0 : index
    %c0_6 = arith.constant 0 : index
    %c0_7 = arith.constant 0 : index
    %4 = vector.load %arg3[%c0_5, %c0_6, %c0_7] : memref<1x8x1xf32, #tpu.memory_space<vmem>>, vector<1x8x1xf32>
    %5 = vector.shape_cast %4 : vector<1x8x1xf32> to vector<8x1xf32>
    %c0_8 = arith.constant 0 : index
    %c0_9 = arith.constant 0 : index
    %6 = vector.load %arg11[%c0_8, %c0_9] : memref<32x96xf32, #tpu.memory_space<vmem>>, vector<32x96xf32>
    %cst = arith.constant dense<0.000000e+00> : vector<8x96xf32>
    %7 = tpu.matmul %1, %6, %cst {dimension_numbers = #tpu.dot_dimension_numbers<[1], [0], [0], [1], [0, 0, 1, 1], [], []>} : vector<8x32xf32>, vector<32x96xf32>, vector<8x96xf32> -> vector<8x96xf32>
    %c0_10 = arith.constant 0 : index
    %c0_11 = arith.constant 0 : index
    %8 = vector.load %arg12[%c0_10, %c0_11] : memref<1x96xf32, #tpu.memory_space<vmem>>, vector<1x96xf32>
    %9 = vector.broadcast %8 : vector<1x96xf32> to vector<8x96xf32>
    %10 = arith.addf %7, %9 : vector<8x96xf32>
    %11 = vector.extract_strided_slice %10 {offsets = [0, 0], sizes = [8, 16], strides = [1, 1]} : vector<8x96xf32> to vector<8x16xf32>
    %12 = vector.extract_strided_slice %10 {offsets = [0, 32], sizes = [8, 16], strides = [1, 1]} : vector<8x96xf32> to vector<8x16xf32>
    %13 = vector.extract_strided_slice %10 {offsets = [0, 64], sizes = [8, 16], strides = [1, 1]} : vector<8x96xf32> to vector<8x16xf32>
    %cst_12 = arith.constant dense<0.000000e+00> : vector<8x8xf32>
    %14 = tpu.matmul %11, %12, %cst_12 {dimension_numbers = #tpu.dot_dimension_numbers<[1], [1], [0], [0], [0, 0, 1, 0], [], []>} : vector<8x16xf32>, vector<8x16xf32>, vector<8x8xf32> -> vector<8x8xf32>
    %cst_13 = arith.constant 2.500000e-01 : f32
    %15 = vector.broadcast %cst_13 : f32 to vector<8x8xf32>
    %16 = arith.mulf %14, %15 : vector<8x8xf32>
    %17 = vector.broadcast %3 : vector<1x8xf32> to vector<8x8xf32>
    %18 = arith.addf %16, %17 : vector<8x8xf32>
    %cst_14 = arith.constant dense<0xFF800000> : vector<8xf32>
    %19 = vector.multi_reduction <maximumf>, %18, %cst_14 [1] : vector<8x8xf32> to vector<8xf32>
    %20 = vector.shape_cast %19 : vector<8xf32> to vector<8x1xf32>
    %21 = vector.broadcast %20 : vector<8x1xf32> to vector<8x8xf32>
    %22 = arith.subf %18, %21 : vector<8x8xf32>
    %23 = math.exp %22 : vector<8x8xf32>
    %cst_15 = arith.constant dense<0.000000e+00> : vector<8xf32>
    %24 = vector.multi_reduction <add>, %23, %cst_15 [1] : vector<8x8xf32> to vector<8xf32>
    %25 = vector.shape_cast %24 : vector<8xf32> to vector<8x1xf32>
    %26 = tpu.reciprocal %25 {approx = true} : vector<8x1xf32> -> vector<8x1xf32>
    %27 = vector.broadcast %26 : vector<8x1xf32> to vector<8x8xf32>
    %28 = arith.mulf %23, %27 : vector<8x8xf32>
    %cst_16 = arith.constant dense<0.000000e+00> : vector<8x16xf32>
    %29 = tpu.matmul %28, %13, %cst_16 {dimension_numbers = #tpu.dot_dimension_numbers<[1], [0], [0], [1], [0, 0, 1, 1], [], []>} : vector<8x8xf32>, vector<8x16xf32>, vector<8x16xf32> -> vector<8x16xf32>
    %30 = vector.extract_strided_slice %10 {offsets = [0, 16], sizes = [8, 16], strides = [1, 1]} : vector<8x96xf32> to vector<8x16xf32>
    %31 = vector.extract_strided_slice %10 {offsets = [0, 48], sizes = [8, 16], strides = [1, 1]} : vector<8x96xf32> to vector<8x16xf32>
    %32 = vector.extract_strided_slice %10 {offsets = [0, 80], sizes = [8, 16], strides = [1, 1]} : vector<8x96xf32> to vector<8x16xf32>
    %cst_17 = arith.constant dense<0.000000e+00> : vector<8x8xf32>
    %33 = tpu.matmul %30, %31, %cst_17 {dimension_numbers = #tpu.dot_dimension_numbers<[1], [1], [0], [0], [0, 0, 1, 0], [], []>} : vector<8x16xf32>, vector<8x16xf32>, vector<8x8xf32> -> vector<8x8xf32>
    %cst_18 = arith.constant 2.500000e-01 : f32
    %34 = vector.broadcast %cst_18 : f32 to vector<8x8xf32>
    %35 = arith.mulf %33, %34 : vector<8x8xf32>
    %36 = vector.broadcast %3 : vector<1x8xf32> to vector<8x8xf32>
    %37 = arith.addf %35, %36 : vector<8x8xf32>
    %cst_19 = arith.constant dense<0xFF800000> : vector<8xf32>
    %38 = vector.multi_reduction <maximumf>, %37, %cst_19 [1] : vector<8x8xf32> to vector<8xf32>
    %39 = vector.shape_cast %38 : vector<8xf32> to vector<8x1xf32>
    %40 = vector.broadcast %39 : vector<8x1xf32> to vector<8x8xf32>
    %41 = arith.subf %37, %40 : vector<8x8xf32>
    %42 = math.exp %41 : vector<8x8xf32>
    %cst_20 = arith.constant dense<0.000000e+00> : vector<8xf32>
    %43 = vector.multi_reduction <add>, %42, %cst_20 [1] : vector<8x8xf32> to vector<8xf32>
    %44 = vector.shape_cast %43 : vector<8xf32> to vector<8x1xf32>
    %45 = tpu.reciprocal %44 {approx = true} : vector<8x1xf32> -> vector<8x1xf32>
    %46 = vector.broadcast %45 : vector<8x1xf32> to vector<8x8xf32>
    %47 = arith.mulf %42, %46 : vector<8x8xf32>
    %cst_21 = arith.constant dense<0.000000e+00> : vector<8x16xf32>
    %48 = tpu.matmul %47, %32, %cst_21 {dimension_numbers = #tpu.dot_dimension_numbers<[1], [0], [0], [1], [0, 0, 1, 1], [], []>} : vector<8x8xf32>, vector<8x16xf32>, vector<8x16xf32> -> vector<8x16xf32>
    %49 = tpu.concatenate %29, %48 in 1 : vector<8x16xf32>, vector<8x16xf32> -> vector<8x32xf32>
    %c0_22 = arith.constant 0 : index
    %c0_23 = arith.constant 0 : index
    %50 = vector.load %arg13[%c0_22, %c0_23] : memref<32x32xf32, #tpu.memory_space<vmem>>, vector<32x32xf32>
    %cst_24 = arith.constant dense<0.000000e+00> : vector<8x32xf32>
    %51 = tpu.matmul %49, %50, %cst_24 {dimension_numbers = #tpu.dot_dimension_numbers<[1], [0], [0], [1], [0, 0, 1, 1], [], []>} : vector<8x32xf32>, vector<32x32xf32>, vector<8x32xf32> -> vector<8x32xf32>
    %c0_25 = arith.constant 0 : index
    %c0_26 = arith.constant 0 : index
    %52 = vector.load %arg14[%c0_25, %c0_26] : memref<1x32xf32, #tpu.memory_space<vmem>>, vector<1x32xf32>
    %53 = vector.broadcast %52 : vector<1x32xf32> to vector<8x32xf32>
    %54 = arith.addf %51, %53 : vector<8x32xf32>
    %55 = arith.addf %1, %54 : vector<8x32xf32>
    %c0_27 = arith.constant 0 : index
    %c0_28 = arith.constant 0 : index
    %56 = vector.load %arg15[%c0_27, %c0_28] : memref<1x32xf32, #tpu.memory_space<vmem>>, vector<1x32xf32>
    %c0_29 = arith.constant 0 : index
    %c0_30 = arith.constant 0 : index
    %57 = vector.load %arg16[%c0_29, %c0_30] : memref<1x32xf32, #tpu.memory_space<vmem>>, vector<1x32xf32>
    %cst_31 = arith.constant dense<0.000000e+00> : vector<8xf32>
    %58 = vector.multi_reduction <add>, %55, %cst_31 [1] : vector<8x32xf32> to vector<8xf32>
    %59 = vector.shape_cast %58 : vector<8xf32> to vector<8x1xf32>
    %cst_32 = arith.constant 3.200000e+01 : f32
    %60 = vector.broadcast %cst_32 : f32 to vector<8x1xf32>
    %61 = arith.divf %59, %60 : vector<8x1xf32>
    %62 = vector.broadcast %61 : vector<8x1xf32> to vector<8x32xf32>
    %63 = arith.subf %55, %62 : vector<8x32xf32>
    %64 = arith.mulf %63, %63 : vector<8x32xf32>
    %cst_33 = arith.constant dense<0.000000e+00> : vector<8xf32>
    %65 = vector.multi_reduction <add>, %64, %cst_33 [1] : vector<8x32xf32> to vector<8xf32>
    %66 = vector.shape_cast %65 : vector<8xf32> to vector<8x1xf32>
    %cst_34 = arith.constant 3.200000e+01 : f32
    %67 = vector.broadcast %cst_34 : f32 to vector<8x1xf32>
    %68 = arith.divf %66, %67 : vector<8x1xf32>
    %69 = vector.broadcast %61 : vector<8x1xf32> to vector<8x32xf32>
    %70 = arith.subf %55, %69 : vector<8x32xf32>
    %cst_35 = arith.constant 9.99999974E-6 : f32
    %71 = vector.broadcast %cst_35 : f32 to vector<8x1xf32>
    %72 = arith.addf %68, %71 : vector<8x1xf32>
    %73 = math.rsqrt %72 : vector<8x1xf32>
    %74 = vector.broadcast %73 : vector<8x1xf32> to vector<8x32xf32>
    %75 = arith.mulf %70, %74 : vector<8x32xf32>
    %76 = vector.broadcast %56 : vector<1x32xf32> to vector<8x32xf32>
    %77 = arith.mulf %75, %76 : vector<8x32xf32>
    %78 = vector.broadcast %57 : vector<1x32xf32> to vector<8x32xf32>
    %79 = arith.addf %77, %78 : vector<8x32xf32>
    %c0_36 = arith.constant 0 : index
    %c0_37 = arith.constant 0 : index
    %80 = vector.load %arg17[%c0_36, %c0_37] : memref<32x64xf32, #tpu.memory_space<vmem>>, vector<32x64xf32>
    %cst_38 = arith.constant dense<0.000000e+00> : vector<8x64xf32>
    %81 = tpu.matmul %79, %80, %cst_38 {dimension_numbers = #tpu.dot_dimension_numbers<[1], [0], [0], [1], [0, 0, 1, 1], [], []>} : vector<8x32xf32>, vector<32x64xf32>, vector<8x64xf32> -> vector<8x64xf32>
    %c0_39 = arith.constant 0 : index
    %c0_40 = arith.constant 0 : index
    %82 = vector.load %arg18[%c0_39, %c0_40] : memref<1x64xf32, #tpu.memory_space<vmem>>, vector<1x64xf32>
    %83 = vector.broadcast %82 : vector<1x64xf32> to vector<8x64xf32>
    %84 = arith.addf %81, %83 : vector<8x64xf32>
    %cst_41 = arith.constant 0.000000e+00 : f32
    %85 = vector.broadcast %cst_41 : f32 to vector<8x64xf32>
    %86 = arith.maximumf %84, %85 : vector<8x64xf32>
    %c0_42 = arith.constant 0 : index
    %c0_43 = arith.constant 0 : index
    %87 = vector.load %arg19[%c0_42, %c0_43] : memref<64x32xf32, #tpu.memory_space<vmem>>, vector<64x32xf32>
    %cst_44 = arith.constant dense<0.000000e+00> : vector<8x32xf32>
    %88 = tpu.matmul %86, %87, %cst_44 {dimension_numbers = #tpu.dot_dimension_numbers<[1], [0], [0], [1], [0, 0, 1, 1], [], []>} : vector<8x64xf32>, vector<64x32xf32>, vector<8x32xf32> -> vector<8x32xf32>
    %c0_45 = arith.constant 0 : index
    %c0_46 = arith.constant 0 : index
    %89 = vector.load %arg20[%c0_45, %c0_46] : memref<1x32xf32, #tpu.memory_space<vmem>>, vector<1x32xf32>
    %90 = vector.broadcast %89 : vector<1x32xf32> to vector<8x32xf32>
    %91 = arith.addf %88, %90 : vector<8x32xf32>
    %92 = arith.addf %79, %91 : vector<8x32xf32>
    %c0_47 = arith.constant 0 : index
    %c0_48 = arith.constant 0 : index
    %93 = vector.load %arg21[%c0_47, %c0_48] : memref<1x32xf32, #tpu.memory_space<vmem>>, vector<1x32xf32>
    %c0_49 = arith.constant 0 : index
    %c0_50 = arith.constant 0 : index
    %94 = vector.load %arg22[%c0_49, %c0_50] : memref<1x32xf32, #tpu.memory_space<vmem>>, vector<1x32xf32>
    %cst_51 = arith.constant dense<0.000000e+00> : vector<8xf32>
    %95 = vector.multi_reduction <add>, %92, %cst_51 [1] : vector<8x32xf32> to vector<8xf32>
    %96 = vector.shape_cast %95 : vector<8xf32> to vector<8x1xf32>
    %cst_52 = arith.constant 3.200000e+01 : f32
    %97 = vector.broadcast %cst_52 : f32 to vector<8x1xf32>
    %98 = arith.divf %96, %97 : vector<8x1xf32>
    %99 = vector.broadcast %98 : vector<8x1xf32> to vector<8x32xf32>
    %100 = arith.subf %92, %99 : vector<8x32xf32>
    %101 = arith.mulf %100, %100 : vector<8x32xf32>
    %cst_53 = arith.constant dense<0.000000e+00> : vector<8xf32>
    %102 = vector.multi_reduction <add>, %101, %cst_53 [1] : vector<8x32xf32> to vector<8xf32>
    %103 = vector.shape_cast %102 : vector<8xf32> to vector<8x1xf32>
    %cst_54 = arith.constant 3.200000e+01 : f32
    %104 = vector.broadcast %cst_54 : f32 to vector<8x1xf32>
    %105 = arith.divf %103, %104 : vector<8x1xf32>
    %106 = vector.broadcast %98 : vector<8x1xf32> to vector<8x32xf32>
    %107 = arith.subf %92, %106 : vector<8x32xf32>
    %cst_55 = arith.constant 9.99999974E-6 : f32
    %108 = vector.broadcast %cst_55 : f32 to vector<8x1xf32>
    %109 = arith.addf %105, %108 : vector<8x1xf32>
    %110 = math.rsqrt %109 : vector<8x1xf32>
    %111 = vector.broadcast %110 : vector<8x1xf32> to vector<8x32xf32>
    %112 = arith.mulf %107, %111 : vector<8x32xf32>
    %113 = vector.broadcast %93 : vector<1x32xf32> to vector<8x32xf32>
    %114 = arith.mulf %112, %113 : vector<8x32xf32>
    %115 = vector.broadcast %94 : vector<1x32xf32> to vector<8x32xf32>
    %116 = arith.addf %114, %115 : vector<8x32xf32>
    %117 = vector.broadcast %5 : vector<8x1xf32> to vector<8x32xf32>
    %118 = arith.mulf %116, %117 : vector<8x32xf32>
    %c0_56 = arith.constant 0 : index
    %c0_57 = arith.constant 0 : index
    %c0_58 = arith.constant 0 : index
    %119 = vector.load %arg4[%c0_56, %c0_57, %c0_58] : memref<1x4x8xf32, #tpu.memory_space<vmem>>, vector<1x4x8xf32>
    %120 = vector.shape_cast %119 : vector<1x4x8xf32> to vector<4x8xf32>
    %c0_59 = arith.constant 0 : index
    %c0_60 = arith.constant 0 : index
    %c0_61 = arith.constant 0 : index
    %121 = vector.load %arg5[%c0_59, %c0_60, %c0_61] : memref<1x8x4xf32, #tpu.memory_space<vmem>>, vector<1x8x4xf32>
    %122 = vector.shape_cast %121 : vector<1x8x4xf32> to vector<8x4xf32>
    %c0_62 = arith.constant 0 : index
    %c0_63 = arith.constant 0 : index
    %c0_64 = arith.constant 0 : index
    %123 = vector.load %arg6[%c0_62, %c0_63, %c0_64] : memref<1x4x1xf32, #tpu.memory_space<vmem>>, vector<1x4x1xf32>
    %124 = vector.shape_cast %123 : vector<1x4x1xf32> to vector<4x1xf32>
    %cst_65 = arith.constant dense<0.000000e+00> : vector<4x32xf32>
    %125 = tpu.matmul %120, %118, %cst_65 {dimension_numbers = #tpu.dot_dimension_numbers<[1], [0], [0], [1], [0, 0, 1, 1], [], []>} : vector<4x8xf32>, vector<8x32xf32>, vector<4x32xf32> -> vector<4x32xf32>
    %cst_66 = arith.constant dense<0.000000e+00> : vector<4xf32>
    %126 = vector.multi_reduction <add>, %120, %cst_66 [1] : vector<4x8xf32> to vector<4xf32>
    %127 = vector.shape_cast %126 : vector<4xf32> to vector<4x1xf32>
    %cst_67 = arith.constant 1.000000e+00 : f32
    %128 = vector.broadcast %cst_67 : f32 to vector<4x1xf32>
    %129 = arith.maximumf %127, %128 : vector<4x1xf32>
    %130 = vector.broadcast %129 : vector<4x1xf32> to vector<4x32xf32>
    %131 = arith.divf %125, %130 : vector<4x32xf32>
    %132 = vector.broadcast %124 : vector<4x1xf32> to vector<4x32xf32>
    %133 = arith.mulf %131, %132 : vector<4x32xf32>
    %cst_68 = arith.constant dense<0.000000e+00> : vector<8x32xf32>
    %134 = tpu.matmul %122, %133, %cst_68 {dimension_numbers = #tpu.dot_dimension_numbers<[1], [0], [0], [1], [0, 0, 1, 1], [], []>} : vector<8x4xf32>, vector<4x32xf32>, vector<8x32xf32> -> vector<8x32xf32>
    %135 = arith.addf %118, %134 : vector<8x32xf32>
    %c0_69 = arith.constant 0 : index
    %c0_70 = arith.constant 0 : index
    %136 = vector.load %arg23[%c0_69, %c0_70] : memref<32x32xf32, #tpu.memory_space<vmem>>, vector<32x32xf32>
    %cst_71 = arith.constant dense<0.000000e+00> : vector<8x32xf32>
    %137 = tpu.matmul %135, %136, %cst_71 {dimension_numbers = #tpu.dot_dimension_numbers<[1], [0], [0], [1], [0, 0, 1, 1], [], []>} : vector<8x32xf32>, vector<32x32xf32>, vector<8x32xf32> -> vector<8x32xf32>
    %c0_72 = arith.constant 0 : index
    %c0_73 = arith.constant 0 : index
    %138 = vector.load %arg24[%c0_72, %c0_73] : memref<1x32xf32, #tpu.memory_space<vmem>>, vector<1x32xf32>
    %139 = vector.broadcast %138 : vector<1x32xf32> to vector<8x32xf32>
    %140 = arith.addf %137, %139 : vector<8x32xf32>
    %cst_74 = arith.constant 0.000000e+00 : f32
    %141 = vector.broadcast %cst_74 : f32 to vector<8x32xf32>
    %142 = arith.maximumf %140, %141 : vector<8x32xf32>
    %c0_75 = arith.constant 0 : index
    %c0_76 = arith.constant 0 : index
    %143 = vector.load %arg25[%c0_75, %c0_76] : memref<32x1xf32, #tpu.memory_space<vmem>>, vector<32x1xf32>
    %cst_77 = arith.constant dense<0.000000e+00> : vector<8x1xf32>
    %144 = tpu.matmul %142, %143, %cst_77 {dimension_numbers = #tpu.dot_dimension_numbers<[1], [0], [0], [1], [0, 0, 1, 1], [], []>} : vector<8x32xf32>, vector<32x1xf32>, vector<8x1xf32> -> vector<8x1xf32>
    %c0_78 = arith.constant 0 : index
    %c0_79 = arith.constant 0 : index
    %145 = vector.load %arg26[%c0_78, %c0_79] : memref<1x1xf32, #tpu.memory_space<vmem>>, vector<1x1xf32>
    %146 = vector.broadcast %145 : vector<1x1xf32> to vector<8x1xf32>
    %147 = arith.addf %144, %146 : vector<8x1xf32>
    %148 = arith.mulf %147, %5 : vector<8x1xf32>
    %c0_80 = arith.constant 0 : index
    %c0_81 = arith.constant 0 : index
    %c0_82 = arith.constant 0 : index
    %149 = vector.load %arg44[%c0_80, %c0_81, %c0_82] : memref<1x8x1xf32, #tpu.memory_space<vmem>>, vector<1x8x1xf32>
    %150 = vector.shape_cast %149 : vector<1x8x1xf32> to vector<8x1xf32>
    %151 = vector.shape_cast %148 : vector<8x1xf32> to vector<1x8x1xf32>
    tpu.vector_store %arg44[%c0_80, %c0_81, %c0_82], %151 {strides = array<i32>} : memref<1x8x1xf32, #tpu.memory_space<vmem>>, vector<1x8x1xf32>,
    %c0_83 = arith.constant 0 : index
    %c0_84 = arith.constant 0 : index
    %c0_85 = arith.constant 0 : index
    %152 = vector.load %arg7[%c0_83, %c0_84, %c0_85] : memref<1x16x8xf32, #tpu.memory_space<vmem>>, vector<1x16x8xf32>
    %153 = vector.shape_cast %152 : vector<1x16x8xf32> to vector<16x8xf32>
    %c0_86 = arith.constant 0 : index
    %c0_87 = arith.constant 0 : index
    %c0_88 = arith.constant 0 : index
    %154 = vector.load %arg9[%c0_86, %c0_87, %c0_88] : memref<1x16x1xf32, #tpu.memory_space<vmem>>, vector<1x16x1xf32>
    %155 = vector.shape_cast %154 : vector<1x16x1xf32> to vector<16x1xf32>
    %c0_89 = arith.constant 0 : index
    %c0_90 = arith.constant 0 : index
    %c0_91 = arith.constant 0 : index
    %156 = vector.load %arg8[%c0_89, %c0_90, %c0_91] : memref<1x16x16xf32, #tpu.memory_space<vmem>>, vector<1x16x16xf32>
    %157 = vector.shape_cast %156 : vector<1x16x16xf32> to vector<16x16xf32>
    %158 = vector.broadcast %155 : vector<16x1xf32> to vector<16x16xf32>
    %159 = arith.mulf %157, %158 : vector<16x16xf32>
    %c0_92 = arith.constant 0 : index
    %c0_93 = arith.constant 0 : index
    %c0_94 = arith.constant 0 : index
    %160 = vector.load %arg10[%c0_92, %c0_93, %c0_94] : memref<1x16x16xf32, #tpu.memory_space<vmem>>, vector<1x16x16xf32>
    %161 = vector.shape_cast %160 : vector<1x16x16xf32> to vector<16x16xf32>
    %cst_95 = arith.constant dense<0.000000e+00> : vector<16x32xf32>
    %162 = tpu.matmul %153, %135, %cst_95 {dimension_numbers = #tpu.dot_dimension_numbers<[1], [0], [0], [1], [0, 0, 1, 1], [], []>} : vector<16x8xf32>, vector<8x32xf32>, vector<16x32xf32> -> vector<16x32xf32>
    %163 = vector.broadcast %155 : vector<16x1xf32> to vector<16x32xf32>
    %164 = arith.mulf %162, %163 : vector<16x32xf32>
    %c0_96 = arith.constant 0 : index
    %c0_97 = arith.constant 0 : index
    %165 = vector.load %arg27[%c0_96, %c0_97] : memref<16x32xf32, #tpu.memory_space<vmem>>, vector<16x32xf32>
    %cst_98 = arith.constant dense<0.000000e+00> : vector<16x32xf32>
    %166 = tpu.matmul %159, %165, %cst_98 {dimension_numbers = #tpu.dot_dimension_numbers<[1], [0], [0], [1], [0, 0, 1, 1], [], []>} : vector<16x16xf32>, vector<16x32xf32>, vector<16x32xf32> -> vector<16x32xf32>
    %c0_99 = arith.constant 0 : index
    %c0_100 = arith.constant 0 : index
    %167 = vector.load %arg28[%c0_99, %c0_100] : memref<32x32xf32, #tpu.memory_space<vmem>>, vector<32x32xf32>
    %cst_101 = arith.constant dense<0.000000e+00> : vector<16x32xf32>
    %168 = tpu.matmul %164, %167, %cst_101 {dimension_numbers = #tpu.dot_dimension_numbers<[1], [0], [0], [1], [0, 0, 1, 1], [], []>} : vector<16x32xf32>, vector<32x32xf32>, vector<16x32xf32> -> vector<16x32xf32>
    %169 = arith.addf %166, %168 : vector<16x32xf32>
    %c0_102 = arith.constant 0 : index
    %c0_103 = arith.constant 0 : index
    %170 = vector.load %arg29[%c0_102, %c0_103] : memref<1x32xf32, #tpu.memory_space<vmem>>, vector<1x32xf32>
    %171 = vector.broadcast %170 : vector<1x32xf32> to vector<16x32xf32>
    %172 = arith.addf %169, %171 : vector<16x32xf32>
    %cst_104 = arith.constant 0.000000e+00 : f32
    %173 = vector.broadcast %cst_104 : f32 to vector<16x32xf32>
    %174 = arith.maximumf %172, %173 : vector<16x32xf32>
    %c0_105 = arith.constant 0 : index
    %c0_106 = arith.constant 0 : index
    %175 = vector.load %arg30[%c0_105, %c0_106] : memref<32x32xf32, #tpu.memory_space<vmem>>, vector<32x32xf32>
    %cst_107 = arith.constant dense<0.000000e+00> : vector<16x32xf32>
    %176 = tpu.matmul %174, %175, %cst_107 {dimension_numbers = #tpu.dot_dimension_numbers<[1], [0], [0], [1], [0, 0, 1, 1], [], []>} : vector<16x32xf32>, vector<32x32xf32>, vector<16x32xf32> -> vector<16x32xf32>
    %c0_108 = arith.constant 0 : index
    %c0_109 = arith.constant 0 : index
    %177 = vector.load %arg31[%c0_108, %c0_109] : memref<1x32xf32, #tpu.memory_space<vmem>>, vector<1x32xf32>
    %178 = vector.broadcast %177 : vector<1x32xf32> to vector<16x32xf32>
    %179 = arith.addf %176, %178 : vector<16x32xf32>
    %180 = vector.extract_strided_slice %179 {offsets = [0, 0], sizes = [16, 16], strides = [1, 1]} : vector<16x32xf32> to vector<16x16xf32>
    %181 = vector.extract_strided_slice %179 {offsets = [0, 16], sizes = [16, 16], strides = [1, 1]} : vector<16x32xf32> to vector<16x16xf32>
    %cst_110 = arith.constant 5.000000e-01 : f32
    %182 = vector.broadcast %cst_110 : f32 to vector<16x16xf32>
    %183 = arith.mulf %182, %181 : vector<16x16xf32>
    %184 = math.exp %183 : vector<16x16xf32>
    %185 = arith.mulf %184, %161 : vector<16x16xf32>
    %186 = arith.addf %180, %185 : vector<16x16xf32>
    %c0_111 = arith.constant 0 : index
    %c0_112 = arith.constant 0 : index
    %187 = vector.load %arg32[%c0_111, %c0_112] : memref<16x32xf32, #tpu.memory_space<vmem>>, vector<16x32xf32>
    %cst_113 = arith.constant dense<0.000000e+00> : vector<16x32xf32>
    %188 = tpu.matmul %186, %187, %cst_113 {dimension_numbers = #tpu.dot_dimension_numbers<[1], [0], [0], [1], [0, 0, 1, 1], [], []>} : vector<16x16xf32>, vector<16x32xf32>, vector<16x32xf32> -> vector<16x32xf32>
    %c0_114 = arith.constant 0 : index
    %c0_115 = arith.constant 0 : index
    %189 = vector.load %arg33[%c0_114, %c0_115] : memref<1x32xf32, #tpu.memory_space<vmem>>, vector<1x32xf32>
    %190 = vector.broadcast %189 : vector<1x32xf32> to vector<16x32xf32>
    %191 = arith.addf %188, %190 : vector<16x32xf32>
    %192 = arith.addf %191, %164 : vector<16x32xf32>
    %cst_116 = arith.constant 0.000000e+00 : f32
    %193 = vector.broadcast %cst_116 : f32 to vector<16x32xf32>
    %194 = arith.maximumf %192, %193 : vector<16x32xf32>
    %c0_117 = arith.constant 0 : index
    %c0_118 = arith.constant 0 : index
    %195 = vector.load %arg34[%c0_117, %c0_118] : memref<32x32xf32, #tpu.memory_space<vmem>>, vector<32x32xf32>
    %cst_119 = arith.constant dense<0.000000e+00> : vector<16x32xf32>
    %196 = tpu.matmul %194, %195, %cst_119 {dimension_numbers = #tpu.dot_dimension_numbers<[1], [0], [0], [1], [0, 0, 1, 1], [], []>} : vector<16x32xf32>, vector<32x32xf32>, vector<16x32xf32> -> vector<16x32xf32>
    %c0_120 = arith.constant 0 : index
    %c0_121 = arith.constant 0 : index
    %197 = vector.load %arg35[%c0_120, %c0_121] : memref<1x32xf32, #tpu.memory_space<vmem>>, vector<1x32xf32>
    %198 = vector.broadcast %197 : vector<1x32xf32> to vector<16x32xf32>
    %199 = arith.addf %196, %198 : vector<16x32xf32>
    %200 = vector.broadcast %155 : vector<16x1xf32> to vector<16x32xf32>
    %201 = arith.mulf %199, %200 : vector<16x32xf32>
    %c0_122 = arith.constant 0 : index
    %c0_123 = arith.constant 0 : index
    %202 = vector.load %arg36[%c0_122, %c0_123] : memref<32x16xf32, #tpu.memory_space<vmem>>, vector<32x16xf32>
    %cst_124 = arith.constant dense<0.000000e+00> : vector<16x16xf32>
    %203 = tpu.matmul %194, %202, %cst_124 {dimension_numbers = #tpu.dot_dimension_numbers<[1], [0], [0], [1], [0, 0, 1, 1], [], []>} : vector<16x32xf32>, vector<32x16xf32>, vector<16x16xf32> -> vector<16x16xf32>
    %c0_125 = arith.constant 0 : index
    %c0_126 = arith.constant 0 : index
    %204 = vector.load %arg37[%c0_125, %c0_126] : memref<1x16xf32, #tpu.memory_space<vmem>>, vector<1x16xf32>
    %205 = vector.broadcast %204 : vector<1x16xf32> to vector<16x16xf32>
    %206 = arith.addf %203, %205 : vector<16x16xf32>
    %207 = vector.broadcast %155 : vector<16x1xf32> to vector<16x16xf32>
    %208 = arith.mulf %206, %207 : vector<16x16xf32>
    %209 = arith.addf %201, %164 : vector<16x32xf32>
    %210 = vector.broadcast %155 : vector<16x1xf32> to vector<16x32xf32>
    %211 = arith.mulf %209, %210 : vector<16x32xf32>
    %212 = vector.extract_strided_slice %159 {offsets = [0, 0], sizes = [16, 8], strides = [1, 1]} : vector<16x16xf32> to vector<16x8xf32>
    %213 = vector.extract_strided_slice %159 {offsets = [0, 8], sizes = [16, 8], strides = [1, 1]} : vector<16x16xf32> to vector<16x8xf32>
    %c0_127 = arith.constant 0 : index
    %c0_128 = arith.constant 0 : index
    %214 = vector.load %arg38[%c0_127, %c0_128] : memref<8x32xf32, #tpu.memory_space<vmem>>, vector<8x32xf32>
    %cst_129 = arith.constant dense<0.000000e+00> : vector<16x32xf32>
    %215 = tpu.matmul %212, %214, %cst_129 {dimension_numbers = #tpu.dot_dimension_numbers<[1], [0], [0], [1], [0, 0, 1, 1], [], []>} : vector<16x8xf32>, vector<8x32xf32>, vector<16x32xf32> -> vector<16x32xf32>
    %c0_130 = arith.constant 0 : index
    %c0_131 = arith.constant 0 : index
    %216 = vector.load %arg39[%c0_130, %c0_131] : memref<32x32xf32, #tpu.memory_space<vmem>>, vector<32x32xf32>
    %cst_132 = arith.constant dense<0.000000e+00> : vector<16x32xf32>
    %217 = tpu.matmul %211, %216, %cst_132 {dimension_numbers = #tpu.dot_dimension_numbers<[1], [0], [0], [1], [0, 0, 1, 1], [], []>} : vector<16x32xf32>, vector<32x32xf32>, vector<16x32xf32> -> vector<16x32xf32>
    %218 = arith.addf %215, %217 : vector<16x32xf32>
    %c0_133 = arith.constant 0 : index
    %c0_134 = arith.constant 0 : index
    %219 = vector.load %arg40[%c0_133, %c0_134] : memref<1x32xf32, #tpu.memory_space<vmem>>, vector<1x32xf32>
    %220 = vector.broadcast %219 : vector<1x32xf32> to vector<16x32xf32>
    %221 = arith.addf %218, %220 : vector<16x32xf32>
    %222 = math.tanh %221 : vector<16x32xf32>
    %c0_135 = arith.constant 0 : index
    %c0_136 = arith.constant 0 : index
    %223 = vector.load %arg41[%c0_135, %c0_136] : memref<32x16xf32, #tpu.memory_space<vmem>>, vector<32x16xf32>
    %cst_137 = arith.constant dense<0.000000e+00> : vector<16x16xf32>
    %224 = tpu.matmul %222, %223, %cst_137 {dimension_numbers = #tpu.dot_dimension_numbers<[1], [0], [0], [1], [0, 0, 1, 1], [], []>} : vector<16x32xf32>, vector<32x16xf32>, vector<16x16xf32> -> vector<16x16xf32>
    %c0_138 = arith.constant 0 : index
    %c0_139 = arith.constant 0 : index
    %225 = vector.load %arg42[%c0_138, %c0_139] : memref<1x16xf32, #tpu.memory_space<vmem>>, vector<1x16xf32>
    %226 = vector.broadcast %225 : vector<1x16xf32> to vector<16x16xf32>
    %227 = arith.addf %224, %226 : vector<16x16xf32>
    %228 = vector.extract_strided_slice %227 {offsets = [0, 0], sizes = [16, 8], strides = [1, 1]} : vector<16x16xf32> to vector<16x8xf32>
    %229 = vector.extract_strided_slice %227 {offsets = [0, 8], sizes = [16, 8], strides = [1, 1]} : vector<16x16xf32> to vector<16x8xf32>
    %230 = math.exp %228 : vector<16x8xf32>
    %231 = arith.mulf %213, %230 : vector<16x8xf32>
    %232 = arith.addf %231, %229 : vector<16x8xf32>
    %233 = tpu.concatenate %212, %232 in 1 : vector<16x8xf32>, vector<16x8xf32> -> vector<16x16xf32>
    %234 = vector.broadcast %155 : vector<16x1xf32> to vector<16x16xf32>
    %235 = arith.mulf %233, %234 : vector<16x16xf32>
    %cst_140 = arith.constant 0.000000e+00 : f32
    %236 = vector.broadcast %cst_140 : f32 to vector<16x112xf32>
    %237 = tpu.concatenate %164, %201, %208, %235, %180, %181, %186, %236 in 1 : vector<16x32xf32>, vector<16x32xf32>, vector<16x16xf32>, vector<16x16xf32>, vector<16x16xf32>, vector<16x16xf32>, vector<16x16xf32>, vector<16x112xf32> -> vector<16x256xf32>
    %c0_141 = arith.constant 0 : index
    %c0_142 = arith.constant 0 : index
    %c0_143 = arith.constant 0 : index
    %238 = vector.load %arg43[%c0_141, %c0_142, %c0_143] : memref<1x16x256xf32, #tpu.memory_space<vmem>>, vector<1x16x256xf32>
    %239 = vector.shape_cast %238 : vector<1x16x256xf32> to vector<16x256xf32>
    %240 = vector.shape_cast %237 : vector<16x256xf32> to vector<1x16x256xf32>
    tpu.vector_store %arg43[%c0_141, %c0_142, %c0_143], %240 {strides = array<i32>} : memref<1x16x256xf32, #tpu.memory_space<vmem>>, vector<1x16x256xf32>,
    return
  }
  func.func @transform_0(%arg0: i32) -> (i32, i32, i32) {
    %c0_i32 = arith.constant 0 : i32
    %c0_i32_0 = arith.constant 0 : i32
    %c0_i32_1 = arith.constant 0 : i32
    return %arg0, %c0_i32, %c0_i32_0 : i32, i32, i32
  }
  func.func @transform_1(%arg0: i32) -> (i32, i32, i32) {
    %c0_i32 = arith.constant 0 : i32
    %c0_i32_0 = arith.constant 0 : i32
    %c0_i32_1 = arith.constant 0 : i32
    return %arg0, %c0_i32, %c0_i32_0 : i32, i32, i32
  }
  func.func @transform_2(%arg0: i32) -> (i32, i32, i32) {
    %c0_i32 = arith.constant 0 : i32
    %c0_i32_0 = arith.constant 0 : i32
    %c0_i32_1 = arith.constant 0 : i32
    return %arg0, %c0_i32, %c0_i32_0 : i32, i32, i32
  }
  func.func @transform_3(%arg0: i32) -> (i32, i32, i32) {
    %c0_i32 = arith.constant 0 : i32
    %c0_i32_0 = arith.constant 0 : i32
    %c0_i32_1 = arith.constant 0 : i32
    return %arg0, %c0_i32, %c0_i32_0 : i32, i32, i32
  }
  func.func @transform_4(%arg0: i32) -> (i32, i32, i32) {
    %c0_i32 = arith.constant 0 : i32
    %c0_i32_0 = arith.constant 0 : i32
    %c0_i32_1 = arith.constant 0 : i32
    return %arg0, %c0_i32, %c0_i32_0 : i32, i32, i32
  }
  func.func @transform_5(%arg0: i32) -> (i32, i32, i32) {
    %c0_i32 = arith.constant 0 : i32
    %c0_i32_0 = arith.constant 0 : i32
    %c0_i32_1 = arith.constant 0 : i32
    return %arg0, %c0_i32, %c0_i32_0 : i32, i32, i32
  }
  func.func @transform_6(%arg0: i32) -> (i32, i32, i32) {
    %c0_i32 = arith.constant 0 : i32
    %c0_i32_0 = arith.constant 0 : i32
    %c0_i32_1 = arith.constant 0 : i32
    return %arg0, %c0_i32, %c0_i32_0 : i32, i32, i32
  }
  func.func @transform_7(%arg0: i32) -> (i32, i32, i32) {
    %c0_i32 = arith.constant 0 : i32
    %c0_i32_0 = arith.constant 0 : i32
    %c0_i32_1 = arith.constant 0 : i32
    return %arg0, %c0_i32, %c0_i32_0 : i32, i32, i32
  }
  func.func @transform_8(%arg0: i32) -> (i32, i32, i32) {
    %c0_i32 = arith.constant 0 : i32
    %c0_i32_0 = arith.constant 0 : i32
    %c0_i32_1 = arith.constant 0 : i32
    return %arg0, %c0_i32, %c0_i32_0 : i32, i32, i32
  }
  func.func @transform_9(%arg0: i32) -> (i32, i32, i32) {
    %c0_i32 = arith.constant 0 : i32
    %c0_i32_0 = arith.constant 0 : i32
    %c0_i32_1 = arith.constant 0 : i32
    return %arg0, %c0_i32, %c0_i32_0 : i32, i32, i32
  }
  func.func @transform_10(%arg0: i32) -> (i32, i32) {
    %c0_i32 = arith.constant 0 : i32
    %c0_i32_0 = arith.constant 0 : i32
    %c0_i32_1 = arith.constant 0 : i32
    return %c0_i32, %c0_i32_0 : i32, i32
  }
  func.func @transform_11(%arg0: i32) -> (i32, i32) {
    %c0_i32 = arith.constant 0 : i32
    %c0_i32_0 = arith.constant 0 : i32
    %c0_i32_1 = arith.constant 0 : i32
    return %c0_i32, %c0_i32_0 : i32, i32
  }
  func.func @transform_12(%arg0: i32) -> (i32, i32) {
    %c0_i32 = arith.constant 0 : i32
    %c0_i32_0 = arith.constant 0 : i32
    %c0_i32_1 = arith.constant 0 : i32
    return %c0_i32, %c0_i32_0 : i32, i32
  }
  func.func @transform_13(%arg0: i32) -> (i32, i32) {
    %c0_i32 = arith.constant 0 : i32
    %c0_i32_0 = arith.constant 0 : i32
    %c0_i32_1 = arith.constant 0 : i32
    return %c0_i32, %c0_i32_0 : i32, i32
  }
  func.func @transform_14(%arg0: i32) -> (i32, i32) {
    %c0_i32 = arith.constant 0 : i32
    %c0_i32_0 = arith.constant 0 : i32
    %c0_i32_1 = arith.constant 0 : i32
    return %c0_i32, %c0_i32_0 : i32, i32
  }
  func.func @transform_15(%arg0: i32) -> (i32, i32) {
    %c0_i32 = arith.constant 0 : i32
    %c0_i32_0 = arith.constant 0 : i32
    %c0_i32_1 = arith.constant 0 : i32
    return %c0_i32, %c0_i32_0 : i32, i32
  }
  func.func @transform_16(%arg0: i32) -> (i32, i32) {
    %c0_i32 = arith.constant 0 : i32
    %c0_i32_0 = arith.constant 0 : i32
    %c0_i32_1 = arith.constant 0 : i32
    return %c0_i32, %c0_i32_0 : i32, i32
  }
  func.func @transform_17(%arg0: i32) -> (i32, i32) {
    %c0_i32 = arith.constant 0 : i32
    %c0_i32_0 = arith.constant 0 : i32
    %c0_i32_1 = arith.constant 0 : i32
    return %c0_i32, %c0_i32_0 : i32, i32
  }
  func.func @transform_18(%arg0: i32) -> (i32, i32) {
    %c0_i32 = arith.constant 0 : i32
    %c0_i32_0 = arith.constant 0 : i32
    %c0_i32_1 = arith.constant 0 : i32
    return %c0_i32, %c0_i32_0 : i32, i32
  }
  func.func @transform_19(%arg0: i32) -> (i32, i32) {
    %c0_i32 = arith.constant 0 : i32
    %c0_i32_0 = arith.constant 0 : i32
    %c0_i32_1 = arith.constant 0 : i32
    return %c0_i32, %c0_i32_0 : i32, i32
  }
  func.func @transform_20(%arg0: i32) -> (i32, i32) {
    %c0_i32 = arith.constant 0 : i32
    %c0_i32_0 = arith.constant 0 : i32
    %c0_i32_1 = arith.constant 0 : i32
    return %c0_i32, %c0_i32_0 : i32, i32
  }
  func.func @transform_21(%arg0: i32) -> (i32, i32) {
    %c0_i32 = arith.constant 0 : i32
    %c0_i32_0 = arith.constant 0 : i32
    %c0_i32_1 = arith.constant 0 : i32
    return %c0_i32, %c0_i32_0 : i32, i32
  }
  func.func @transform_22(%arg0: i32) -> (i32, i32) {
    %c0_i32 = arith.constant 0 : i32
    %c0_i32_0 = arith.constant 0 : i32
    %c0_i32_1 = arith.constant 0 : i32
    return %c0_i32, %c0_i32_0 : i32, i32
  }
  func.func @transform_23(%arg0: i32) -> (i32, i32) {
    %c0_i32 = arith.constant 0 : i32
    %c0_i32_0 = arith.constant 0 : i32
    %c0_i32_1 = arith.constant 0 : i32
    return %c0_i32, %c0_i32_0 : i32, i32
  }
  func.func @transform_24(%arg0: i32) -> (i32, i32) {
    %c0_i32 = arith.constant 0 : i32
    %c0_i32_0 = arith.constant 0 : i32
    %c0_i32_1 = arith.constant 0 : i32
    return %c0_i32, %c0_i32_0 : i32, i32
  }
  func.func @transform_25(%arg0: i32) -> (i32, i32) {
    %c0_i32 = arith.constant 0 : i32
    %c0_i32_0 = arith.constant 0 : i32
    %c0_i32_1 = arith.constant 0 : i32
    return %c0_i32, %c0_i32_0 : i32, i32
  }
  func.func @transform_26(%arg0: i32) -> (i32, i32) {
    %c0_i32 = arith.constant 0 : i32
    %c0_i32_0 = arith.constant 0 : i32
    %c0_i32_1 = arith.constant 0 : i32
    return %c0_i32, %c0_i32_0 : i32, i32
  }
  func.func @transform_27(%arg0: i32) -> (i32, i32) {
    %c0_i32 = arith.constant 0 : i32
    %c0_i32_0 = arith.constant 0 : i32
    %c0_i32_1 = arith.constant 0 : i32
    return %c0_i32, %c0_i32_0 : i32, i32
  }
  func.func @transform_28(%arg0: i32) -> (i32, i32) {
    %c0_i32 = arith.constant 0 : i32
    %c0_i32_0 = arith.constant 0 : i32
    %c0_i32_1 = arith.constant 0 : i32
    return %c0_i32, %c0_i32_0 : i32, i32
  }
  func.func @transform_29(%arg0: i32) -> (i32, i32) {
    %c0_i32 = arith.constant 0 : i32
    %c0_i32_0 = arith.constant 0 : i32
    %c0_i32_1 = arith.constant 0 : i32
    return %c0_i32, %c0_i32_0 : i32, i32
  }
  func.func @transform_30(%arg0: i32) -> (i32, i32) {
    %c0_i32 = arith.constant 0 : i32
    %c0_i32_0 = arith.constant 0 : i32
    %c0_i32_1 = arith.constant 0 : i32
    return %c0_i32, %c0_i32_0 : i32, i32
  }
  func.func @transform_31(%arg0: i32) -> (i32, i32) {
    %c0_i32 = arith.constant 0 : i32
    %c0_i32_0 = arith.constant 0 : i32
    %c0_i32_1 = arith.constant 0 : i32
    return %c0_i32, %c0_i32_0 : i32, i32
  }
  func.func @transform_32(%arg0: i32) -> (i32, i32) {
    %c0_i32 = arith.constant 0 : i32
    %c0_i32_0 = arith.constant 0 : i32
    %c0_i32_1 = arith.constant 0 : i32
    return %c0_i32, %c0_i32_0 : i32, i32
  }
  func.func @transform_33(%arg0: i32) -> (i32, i32) {
    %c0_i32 = arith.constant 0 : i32
    %c0_i32_0 = arith.constant 0 : i32
    %c0_i32_1 = arith.constant 0 : i32
    return %c0_i32, %c0_i32_0 : i32, i32
  }
  func.func @transform_34(%arg0: i32) -> (i32, i32) {
    %c0_i32 = arith.constant 0 : i32
    %c0_i32_0 = arith.constant 0 : i32
    %c0_i32_1 = arith.constant 0 : i32
    return %c0_i32, %c0_i32_0 : i32, i32
  }
  func.func @transform_35(%arg0: i32) -> (i32, i32) {
    %c0_i32 = arith.constant 0 : i32
    %c0_i32_0 = arith.constant 0 : i32
    %c0_i32_1 = arith.constant 0 : i32
    return %c0_i32, %c0_i32_0 : i32, i32
  }
  func.func @transform_36(%arg0: i32) -> (i32, i32) {
    %c0_i32 = arith.constant 0 : i32
    %c0_i32_0 = arith.constant 0 : i32
    %c0_i32_1 = arith.constant 0 : i32
    return %c0_i32, %c0_i32_0 : i32, i32
  }
  func.func @transform_37(%arg0: i32) -> (i32, i32) {
    %c0_i32 = arith.constant 0 : i32
    %c0_i32_0 = arith.constant 0 : i32
    %c0_i32_1 = arith.constant 0 : i32
    return %c0_i32, %c0_i32_0 : i32, i32
  }
  func.func @transform_38(%arg0: i32) -> (i32, i32) {
    %c0_i32 = arith.constant 0 : i32
    %c0_i32_0 = arith.constant 0 : i32
    %c0_i32_1 = arith.constant 0 : i32
    return %c0_i32, %c0_i32_0 : i32, i32
  }
  func.func @transform_39(%arg0: i32) -> (i32, i32) {
    %c0_i32 = arith.constant 0 : i32
    %c0_i32_0 = arith.constant 0 : i32
    %c0_i32_1 = arith.constant 0 : i32
    return %c0_i32, %c0_i32_0 : i32, i32
  }
  func.func @transform_40(%arg0: i32) -> (i32, i32) {
    %c0_i32 = arith.constant 0 : i32
    %c0_i32_0 = arith.constant 0 : i32
    %c0_i32_1 = arith.constant 0 : i32
    return %c0_i32, %c0_i32_0 : i32, i32
  }
  func.func @transform_41(%arg0: i32) -> (i32, i32) {
    %c0_i32 = arith.constant 0 : i32
    %c0_i32_0 = arith.constant 0 : i32
    %c0_i32_1 = arith.constant 0 : i32
    return %c0_i32, %c0_i32_0 : i32, i32
  }
  func.func @transform_42(%arg0: i32) -> (i32, i32, i32) {
    %c0_i32 = arith.constant 0 : i32
    %c0_i32_0 = arith.constant 0 : i32
    %c0_i32_1 = arith.constant 0 : i32
    return %arg0, %c0_i32, %c0_i32_0 : i32, i32, i32
  }
  func.func @transform_43(%arg0: i32) -> (i32, i32, i32) {
    %c0_i32 = arith.constant 0 : i32
    %c0_i32_0 = arith.constant 0 : i32
    %c0_i32_1 = arith.constant 0 : i32
    return %arg0, %c0_i32, %c0_i32_0 : i32, i32, i32
  }
}

</mosaic_0001>

<llo_original>
// kernel: sub.8
$region0: #{sub.8}
  #allocation0 [shape = 's32[1]{0}', space=sflag, size = 0x4, scoped, tag = 'scoped memory for sub.8']
  %s0 = inlined_call_operand.vmem [shape: f32[2,8], index: 0, kind: input, shape index: {}]
  %s1 = inlined_call_operand.vmem [shape: f32[2,8], index: 1, kind: input, shape index: {}]
  %s2 = inlined_call_operand.vmem [shape: f32[2,8], index: 2, kind: output, shape index: {}]
  %v3 = vld [vmem:[%s0] sm:$0x3]
  %v4 = vld [vmem:[%s1] sm:$0x3]
  %5 = xla_tuple %v3, %v4
  %6 = xla_tuple %5
  %v7 = vsub.f32 %v3, %v4
  %8 = xla_tuple %v7
  %9 = vst [vmem:[%s2] sm:$0x3] %v7

// kernel: portaspeech_forward.1
$region0: #{portaspeech_forward.1}
  #allocation0 [shape = 'u32[]', space=smem, size = 0x4, offset = 0x4, fixed_abs, tag = 'smem constant byte address 0x4 - core index']
  #allocation1 [shape = 'u32[72,128]{1,0:T(1,128)}', space=vmem, size = 0x9000, scoped, tag = 'internal scratch']
  #allocation2 [shape = 'f32[1,1]{1,0:T(1,128)S(1)}', space=vmem, size = 0x200, scoped, tag = 'scoped memory for portaspeech_forward.1']
  %s0 = inlined_call_operand.smem [shape: u32[44], index: -1, kind: input, shape index: {}]
  %s1 = sld [smem:[%s0]]
  %s2 = scalar_lea.smem %s0, 1
  %s3 = sld [smem:[%s2]]
  %s4 = scalar_lea.smem %s0, 2
  %s5 = sld [smem:[%s4]]
  %s6 = scalar_lea.smem %s0, 3
  %s7 = sld [smem:[%s6]]
  %s8 = scalar_lea.smem %s0, 4
  %s9 = sld [smem:[%s8]]
  %s10 = scalar_lea.smem %s0, 5
  %s11 = sld [smem:[%s10]]
  %s12 = scalar_lea.smem %s0, 6
  %s13 = sld [smem:[%s12]]
  %s14 = scalar_lea.smem %s0, 7
  %s15 = sld [smem:[%s14]]
  %s16 = scalar_lea.smem %s0, 8
  %s17 = sld [smem:[%s16]]
  %s18 = scalar_lea.smem %s0, 9
  %s19 = sld [smem:[%s18]]
  %s20 = scalar_lea.smem %s0, 10
  %s21 = sld [smem:[%s20]]
  %s22 = scalar_lea.smem %s0, 11
  %s23 = sld [smem:[%s22]]
  %s24 = scalar_lea.smem %s0, 12
  %s25 = sld [smem:[%s24]]
  %s26 = scalar_lea.smem %s0, 13
  %s27 = sld [smem:[%s26]]
  %s28 = scalar_lea.smem %s0, 14
  %s29 = sld [smem:[%s28]]
  %s30 = scalar_lea.smem %s0, 15
  %s31 = sld [smem:[%s30]]
  %s32 = scalar_lea.smem %s0, 16
  %s33 = sld [smem:[%s32]]
  %s34 = scalar_lea.smem %s0, 17
  %s35 = sld [smem:[%s34]]
  %s36 = scalar_lea.smem %s0, 18
  %s37 = sld [smem:[%s36]]
  %s38 = scalar_lea.smem %s0, 19
  %s39 = sld [smem:[%s38]]
  %s40 = scalar_lea.smem %s0, 20
  %s41 = sld [smem:[%s40]]
  %s42 = scalar_lea.smem %s0, 21
  %s43 = sld [smem:[%s42]]
  %s44 = scalar_lea.smem %s0, 22
  %s45 = sld [smem:[%s44]]
  %s46 = scalar_lea.smem %s0, 23
  %s47 = sld [smem:[%s46]]
  %s48 = scalar_lea.smem %s0, 24
  %s49 = sld [smem:[%s48]]
  %s50 = scalar_lea.smem %s0, 25
  %s51 = sld [smem:[%s50]]
  %s52 = scalar_lea.smem %s0, 26
  %s53 = sld [smem:[%s52]]
  %s54 = scalar_lea.smem %s0, 27
  %s55 = sld [smem:[%s54]]
  %s56 = scalar_lea.smem %s0, 28
  %s57 = sld [smem:[%s56]]
  %s58 = scalar_lea.smem %s0, 29
  %s59 = sld [smem:[%s58]]
  %s60 = scalar_lea.smem %s0, 30
  %s61 = sld [smem:[%s60]]
  %s62 = scalar_lea.smem %s0, 31
  %s63 = sld [smem:[%s62]]
  %s64 = scalar_lea.smem %s0, 32
  %s65 = sld [smem:[%s64]]
  %s66 = scalar_lea.smem %s0, 33
  %s67 = sld [smem:[%s66]]
  %s68 = scalar_lea.smem %s0, 34
  %s69 = sld [smem:[%s68]]
  %s70 = scalar_lea.smem %s0, 35
  %s71 = sld [smem:[%s70]]
  %s72 = scalar_lea.smem %s0, 36
  %s73 = sld [smem:[%s72]]
  %s74 = scalar_lea.smem %s0, 37
  %s75 = sld [smem:[%s74]]
  %s76 = scalar_lea.smem %s0, 38
  %s77 = sld [smem:[%s76]]
  %s78 = scalar_lea.smem %s0, 39
  %s79 = sld [smem:[%s78]]
  %s80 = scalar_lea.smem %s0, 40
  %s81 = sld [smem:[%s80]]
  %s82 = scalar_lea.smem %s0, 41
  %s83 = sld [smem:[%s82]]
  %s84 = scalar_lea.smem %s0, 42
  %s85 = sld [smem:[%s84]]
  %s86 = scalar_lea.smem %s0, 43
  %s87 = sld [smem:[%s86]]
  %88 = xla_tuple %s85, %s87
  %s89 = sld [smem:[#allocation0]]
  $region209: #{portaspeech_forward.1} parent=0
    _
  %s91 = ssub.s32 1, %s89
  %s92 = scalar_select 0, %s91, %s89
  %v93 = vstv %s51
  %94 = vst [vmem:[#allocation2] sm:$0x1] %v93
  loop: start=0, step=1, limit=4
  $region2: #{portaspeech_forward.1} parent=0 // loop_pre_header
    _
  $region3: #{portaspeech_forward.1} parent=0 // loop_header
    %s96 = sphi 0, %s100
    %p97 = scmp.ge.s32.totalorder %s96, 4
    %s106 = sphi 0, %s108
    %s109 = sphi 0, %s106
    %s110 = sphi 0, %s109
    %s126 = sphi 0, %s110
    %s132 = sphi 0, %s134
    %s135 = sphi 0, %s132
    %s136 = sphi 0, %s135
    %s152 = sphi 0, %s136
    %s158 = sphi 0, %s160
    %s161 = sphi 0, %s158
    %s162 = sphi 0, %s161
    %s178 = sphi 0, %s162
    %s184 = sphi 0, %s186
    %s187 = sphi 0, %s184
    %s188 = sphi 0, %s187
    %s204 = sphi 0, %s188
    %s210 = sphi 0, %s212
    %s213 = sphi 0, %s210
    %s214 = sphi 0, %s213
    %s230 = sphi 0, %s214
    %s236 = sphi 0, %s238
    %s239 = sphi 0, %s236
    %s240 = sphi 0, %s239
    %s256 = sphi 0, %s240
    %s262 = sphi 0, %s264
    %s265 = sphi 0, %s262
    %s266 = sphi 0, %s265
    %s282 = sphi 0, %s266
    %s288 = sphi 0, %s290
    %s291 = sphi 0, %s288
    %s292 = sphi 0, %s291
    %s308 = sphi 0, %s292
    %s314 = sphi 0, %s316
    %s317 = sphi 0, %s314
    %s318 = sphi 0, %s317
    %s334 = sphi 0, %s318
    %s340 = sphi 0, %s342
    %s343 = sphi 0, %s340
    %s344 = sphi 0, %s343
    %s360 = sphi 0, %s344
    %s364 = sphi 0, %s364
    %s366 = sphi 0, %s364
    %s367 = sphi 0, %s366
    %s381 = sphi 0, %s367
    %s385 = sphi 0, %s385
    %s387 = sphi 0, %s385
    %s388 = sphi 0, %s387
    %s402 = sphi 0, %s388
    %s406 = sphi 0, %s406
    %s408 = sphi 0, %s406
    %s409 = sphi 0, %s408
    %s423 = sphi 0, %s409
    %s427 = sphi 0, %s427
    %s429 = sphi 0, %s427
    %s430 = sphi 0, %s429
    %s444 = sphi 0, %s430
    %s448 = sphi 0, %s448
    %s450 = sphi 0, %s448
    %s451 = sphi 0, %s450
    %s465 = sphi 0, %s451
    %s469 = sphi 0, %s469
    %s471 = sphi 0, %s469
    %s472 = sphi 0, %s471
    %s486 = sphi 0, %s472
    %s490 = sphi 0, %s490
    %s492 = sphi 0, %s490
    %s493 = sphi 0, %s492
    %s507 = sphi 0, %s493
    %s511 = sphi 0, %s511
    %s513 = sphi 0, %s511
    %s514 = sphi 0, %s513
    %s528 = sphi 0, %s514
    %s532 = sphi 0, %s532
    %s534 = sphi 0, %s532
    %s535 = sphi 0, %s534
    %s549 = sphi 0, %s535
    %s553 = sphi 0, %s553
    %s555 = sphi 0, %s553
    %s556 = sphi 0, %s555
    %s570 = sphi 0, %s556
    %s574 = sphi 0, %s574
    %s576 = sphi 0, %s574
    %s577 = sphi 0, %s576
    %s591 = sphi 0, %s577
    %s595 = sphi 0, %s595
    %s597 = sphi 0, %s595
    %s598 = sphi 0, %s597
    %s612 = sphi 0, %s598
    %s616 = sphi 0, %s616
    %s618 = sphi 0, %s616
    %s619 = sphi 0, %s618
    %s633 = sphi 0, %s619
    %s637 = sphi 0, %s637
    %s639 = sphi 0, %s637
    %s640 = sphi 0, %s639
    %s654 = sphi 0, %s640
    %s658 = sphi 0, %s658
    %s660 = sphi 0, %s658
    %s661 = sphi 0, %s660
    %s675 = sphi 0, %s661
    %s679 = sphi 0, %s679
    %s681 = sphi 0, %s679
    %s682 = sphi 0, %s681
    %s696 = sphi 0, %s682
    %s700 = sphi 0, %s700
    %s702 = sphi 0, %s700
    %s703 = sphi 0, %s702
    %s717 = sphi 0, %s703
    %s721 = sphi 0, %s721
    %s723 = sphi 0, %s721
    %s724 = sphi 0, %s723
    %s738 = sphi 0, %s724
    %s742 = sphi 0, %s742
    %s744 = sphi 0, %s742
    %s745 = sphi 0, %s744
    %s759 = sphi 0, %s745
    %s763 = sphi 0, %s763
    %s765 = sphi 0, %s763
    %s766 = sphi 0, %s765
    %s780 = sphi 0, %s766
    %s784 = sphi 0, %s784
    %s786 = sphi 0, %s784
    %s787 = sphi 0, %s786
    %s801 = sphi 0, %s787
    %s805 = sphi 0, %s805
    %s807 = sphi 0, %s805
    %s808 = sphi 0, %s807
    %s822 = sphi 0, %s808
    %s826 = sphi 0, %s826
    %s828 = sphi 0, %s826
    %s829 = sphi 0, %s828
    %s843 = sphi 0, %s829
    %s847 = sphi 0, %s847
    %s849 = sphi 0, %s847
    %s850 = sphi 0, %s849
    %s864 = sphi 0, %s850
    %s868 = sphi 0, %s868
    %s870 = sphi 0, %s868
    %s871 = sphi 0, %s870
    %s885 = sphi 0, %s871
    %s889 = sphi 0, %s889
    %s891 = sphi 0, %s889
    %s892 = sphi 0, %s891
    %s906 = sphi 0, %s892
    %s910 = sphi 0, %s910
    %s912 = sphi 0, %s910
    %s913 = sphi 0, %s912
    %s927 = sphi 0, %s913
    %s931 = sphi 0, %s931
    %s933 = sphi 0, %s931
    %s934 = sphi 0, %s933
    %s948 = sphi 0, %s934
    %s952 = sphi 0, %s952
    %s954 = sphi 0, %s952
    %s955 = sphi 0, %s954
    %s969 = sphi 0, %s955
    %s973 = sphi 0, %s973
    %s975 = sphi 0, %s973
    %s976 = sphi 0, %s975
    %s990 = sphi 0, %s976
    %s994 = sphi 0, %s994
    %s996 = sphi 0, %s994
    %s997 = sphi 0, %s996
    %s1011 = sphi 0, %s997
    %s1015 = sphi 0, %s1015
    %s1017 = sphi 0, %s1015
    %s1018 = sphi 0, %s1017
    %s1032 = sphi 0, %s1018
    %s1038 = sphi 0, %s1040
    %s1041 = sphi 0, %s1038
    %s1042 = sphi 0, %s1041
    %s1058 = sphi 0, %s1042
    %s1064 = sphi 0, %s1066
    %s1067 = sphi 0, %s1064
    %s1068 = sphi 0, %s1067
    %s1084 = sphi 0, %s1068
  $region4: #{portaspeech_forward.1} parent=0 // loop_header_branch
    %99 = sbr.rel (%p97) target = $region8
  $region5: #{portaspeech_forward.1} parent=0 // loop_body
    %s101 = ssub.s32 %s96, 1
    %s102 = ssub.s32 %s96, 2
    %s103 = sadd.s32 %s96, 1
    %s104 = ssub.s32 %s96, %s103
    %p105 = scmp.eq.s32.totalorder %s104, 0
    %s107 = sadd.s32 %s106, 1
    %s108 = scalar_select %p105, %s106, %s107
    %p111 = pneg %p105
    %p112 = scmp.eq.s32.totalorder %s96, 1
    %p113 = por %p111, %p112
    %p114 = scmp.ne.s32.totalorder %s106, %s109
    %p115 = scmp.eq.s32.totalorder %s96, 0
    %p116 = por %p114, %p115
    %p117 = scmp.ne.s32.totalorder %s106, %s109
    %p118 = scmp.eq.s32.totalorder %s101, 1
    %p119 = por %p117, %p118
    %p120 = scmp.ne.s32.totalorder %s109, %s110
    %p121 = scmp.eq.s32.totalorder %s101, 0
    %p122 = por %p120, %p121
    %p123 = scmp.ne.s32.totalorder %s109, %s110
    %p124 = scmp.eq.s32.totalorder %s102, 1
    %p125 = por %p123, %p124
    %p127 = scmp.ne.s32.totalorder %s110, %s126
    %p128 = scmp.eq.s32.totalorder %s102, 0
    %p129 = por %p127, %p128
    %s130 = ssub.s32 %s96, %s103
    %p131 = scmp.eq.s32.totalorder %s130, 0
    %s133 = sadd.s32 %s132, 1
    %s134 = scalar_select %p131, %s132, %s133
    %p137 = pneg %p131
    %p138 = scmp.eq.s32.totalorder %s96, 1
    %p139 = por %p137, %p138
    %p140 = scmp.ne.s32.totalorder %s132, %s135
    %p141 = scmp.eq.s32.totalorder %s96, 0
    %p142 = por %p140, %p141
    %p143 = scmp.ne.s32.totalorder %s132, %s135
    %p144 = scmp.eq.s32.totalorder %s101, 1
    %p145 = por %p143, %p144
    %p146 = scmp.ne.s32.totalorder %s135, %s136
    %p147 = scmp.eq.s32.totalorder %s101, 0
    %p148 = por %p146, %p147
    %p149 = scmp.ne.s32.totalorder %s135, %s136
    %p150 = scmp.eq.s32.totalorder %s102, 1
    %p151 = por %p149, %p150
    %p153 = scmp.ne.s32.totalorder %s136, %s152
    %p154 = scmp.eq.s32.totalorder %s102, 0
    %p155 = por %p153, %p154
    %s156 = ssub.s32 %s96, %s103
    %p157 = scmp.eq.s32.totalorder %s156, 0
    %s159 = sadd.s32 %s158, 1
    %s160 = scalar_select %p157, %s158, %s159
    %p163 = pneg %p157
    %p164 = scmp.eq.s32.totalorder %s96, 1
    %p165 = por %p163, %p164
    %p166 = scmp.ne.s32.totalorder %s158, %s161
    %p167 = scmp.eq.s32.totalorder %s96, 0
    %p168 = por %p166, %p167
    %p169 = scmp.ne.s32.totalorder %s158, %s161
    %p170 = scmp.eq.s32.totalorder %s101, 1
    %p171 = por %p169, %p170
    %p172 = scmp.ne.s32.totalorder %s161, %s162
    %p173 = scmp.eq.s32.totalorder %s101, 0
    %p174 = por %p172, %p173
    %p175 = scmp.ne.s32.totalorder %s161, %s162
    %p176 = scmp.eq.s32.totalorder %s102, 1
    %p177 = por %p175, %p176
    %p179 = scmp.ne.s32.totalorder %s162, %s178
    %p180 = scmp.eq.s32.totalorder %s102, 0
    %p181 = por %p179, %p180
    %s182 = ssub.s32 %s96, %s103
    %p183 = scmp.eq.s32.totalorder %s182, 0
    %s185 = sadd.s32 %s184, 1
    %s186 = scalar_select %p183, %s184, %s185
    %p189 = pneg %p183
    %p190 = scmp.eq.s32.totalorder %s96, 1
    %p191 = por %p189, %p190
    %p192 = scmp.ne.s32.totalorder %s184, %s187
    %p193 = scmp.eq.s32.totalorder %s96, 0
    %p194 = por %p192, %p193
    %p195 = scmp.ne.s32.totalorder %s184, %s187
    %p196 = scmp.eq.s32.totalorder %s101, 1
    %p197 = por %p195, %p196
    %p198 = scmp.ne.s32.totalorder %s187, %s188
    %p199 = scmp.eq.s32.totalorder %s101, 0
    %p200 = por %p198, %p199
    %p201 = scmp.ne.s32.totalorder %s187, %s188
    %p202 = scmp.eq.s32.totalorder %s102, 1
    %p203 = por %p201, %p202
    %p205 = scmp.ne.s32.totalorder %s188, %s204
    %p206 = scmp.eq.s32.totalorder %s102, 0
    %p207 = por %p205, %p206
    %s208 = ssub.s32 %s96, %s103
    %p209 = scmp.eq.s32.totalorder %s208, 0
    %s211 = sadd.s32 %s210, 1
    %s212 = scalar_select %p209, %s210, %s211
    %p215 = pneg %p209
    %p216 = scmp.eq.s32.totalorder %s96, 1
    %p217 = por %p215, %p216
    %p218 = scmp.ne.s32.totalorder %s210, %s213
    %p219 = scmp.eq.s32.totalorder %s96, 0
    %p220 = por %p218, %p219
    %p221 = scmp.ne.s32.totalorder %s210, %s213
    %p222 = scmp.eq.s32.totalorder %s101, 1
    %p223 = por %p221, %p222
    %p224 = scmp.ne.s32.totalorder %s213, %s214
    %p225 = scmp.eq.s32.totalorder %s101, 0
    %p226 = por %p224, %p225
    %p227 = scmp.ne.s32.totalorder %s213, %s214
    %p228 = scmp.eq.s32.totalorder %s102, 1
    %p229 = por %p227, %p228
    %p231 = scmp.ne.s32.totalorder %s214, %s230
    %p232 = scmp.eq.s32.totalorder %s102, 0
    %p233 = por %p231, %p232
    %s234 = ssub.s32 %s96, %s103
    %p235 = scmp.eq.s32.totalorder %s234, 0
    %s237 = sadd.s32 %s236, 1
    %s238 = scalar_select %p235, %s236, %s237
    %p241 = pneg %p235
    %p242 = scmp.eq.s32.totalorder %s96, 1
    %p243 = por %p241, %p242
    %p244 = scmp.ne.s32.totalorder %s236, %s239
    %p245 = scmp.eq.s32.totalorder %s96, 0
    %p246 = por %p244, %p245
    %p247 = scmp.ne.s32.totalorder %s236, %s239
    %p248 = scmp.eq.s32.totalorder %s101, 1
    %p249 = por %p247, %p248
    %p250 = scmp.ne.s32.totalorder %s239, %s240
    %p251 = scmp.eq.s32.totalorder %s101, 0
    %p252 = por %p250, %p251
    %p253 = scmp.ne.s32.totalorder %s239, %s240
    %p254 = scmp.eq.s32.totalorder %s102, 1
    %p255 = por %p253, %p254
    %p257 = scmp.ne.s32.totalorder %s240, %s256
    %p258 = scmp.eq.s32.totalorder %s102, 0
    %p259 = por %p257, %p258
    %s260 = ssub.s32 %s96, %s103
    %p261 = scmp.eq.s32.totalorder %s260, 0
    %s263 = sadd.s32 %s262, 1
    %s264 = scalar_select %p261, %s262, %s263
    %p267 = pneg %p261
    %p268 = scmp.eq.s32.totalorder %s96, 1
    %p269 = por %p267, %p268
    %p270 = scmp.ne.s32.totalorder %s262, %s265
    %p271 = scmp.eq.s32.totalorder %s96, 0
    %p272 = por %p270, %p271
    %p273 = scmp.ne.s32.totalorder %s262, %s265
    %p274 = scmp.eq.s32.totalorder %s101, 1
    %p275 = por %p273, %p274
    %p276 = scmp.ne.s32.totalorder %s265, %s266
    %p277 = scmp.eq.s32.totalorder %s101, 0
    %p278 = por %p276, %p277
    %p279 = scmp.ne.s32.totalorder %s265, %s266
    %p280 = scmp.eq.s32.totalorder %s102, 1
    %p281 = por %p279, %p280
    %p283 = scmp.ne.s32.totalorder %s266, %s282
    %p284 = scmp.eq.s32.totalorder %s102, 0
    %p285 = por %p283, %p284
    %s286 = ssub.s32 %s96, %s103
    %p287 = scmp.eq.s32.totalorder %s286, 0
    %s289 = sadd.s32 %s288, 1
    %s290 = scalar_select %p287, %s288, %s289
    %p293 = pneg %p287
    %p294 = scmp.eq.s32.totalorder %s96, 1
    %p295 = por %p293, %p294
    %p296 = scmp.ne.s32.totalorder %s288, %s291
    %p297 = scmp.eq.s32.totalorder %s96, 0
    %p298 = por %p296, %p297
    %p299 = scmp.ne.s32.totalorder %s288, %s291
    %p300 = scmp.eq.s32.totalorder %s101, 1
    %p301 = por %p299, %p300
    %p302 = scmp.ne.s32.totalorder %s291, %s292
    %p303 = scmp.eq.s32.totalorder %s101, 0
    %p304 = por %p302, %p303
    %p305 = scmp.ne.s32.totalorder %s291, %s292
    %p306 = scmp.eq.s32.totalorder %s102, 1
    %p307 = por %p305, %p306
    %p309 = scmp.ne.s32.totalorder %s292, %s308
    %p310 = scmp.eq.s32.totalorder %s102, 0
    %p311 = por %p309, %p310
    %s312 = ssub.s32 %s96, %s103
    %p313 = scmp.eq.s32.totalorder %s312, 0
    %s315 = sadd.s32 %s314, 1
    %s316 = scalar_select %p313, %s314, %s315
    %p319 = pneg %p313
    %p320 = scmp.eq.s32.totalorder %s96, 1
    %p321 = por %p319, %p320
    %p322 = scmp.ne.s32.totalorder %s314, %s317
    %p323 = scmp.eq.s32.totalorder %s96, 0
    %p324 = por %p322, %p323
    %p325 = scmp.ne.s32.totalorder %s314, %s317
    %p326 = scmp.eq.s32.totalorder %s101, 1
    %p327 = por %p325, %p326
    %p328 = scmp.ne.s32.totalorder %s317, %s318
    %p329 = scmp.eq.s32.totalorder %s101, 0
    %p330 = por %p328, %p329
    %p331 = scmp.ne.s32.totalorder %s317, %s318
    %p332 = scmp.eq.s32.totalorder %s102, 1
    %p333 = por %p331, %p332
    %p335 = scmp.ne.s32.totalorder %s318, %s334
    %p336 = scmp.eq.s32.totalorder %s102, 0
    %p337 = por %p335, %p336
    %s338 = ssub.s32 %s96, %s103
    %p339 = scmp.eq.s32.totalorder %s338, 0
    %s341 = sadd.s32 %s340, 1
    %s342 = scalar_select %p339, %s340, %s341
    %p345 = pneg %p339
    %p346 = scmp.eq.s32.totalorder %s96, 1
    %p347 = por %p345, %p346
    %p348 = scmp.ne.s32.totalorder %s340, %s343
    %p349 = scmp.eq.s32.totalorder %s96, 0
    %p350 = por %p348, %p349
    %p351 = scmp.ne.s32.totalorder %s340, %s343
    %p352 = scmp.eq.s32.totalorder %s101, 1
    %p353 = por %p351, %p352
    %p354 = scmp.ne.s32.totalorder %s343, %s344
    %p355 = scmp.eq.s32.totalorder %s101, 0
    %p356 = por %p354, %p355
    %p357 = scmp.ne.s32.totalorder %s343, %s344
    %p358 = scmp.eq.s32.totalorder %s102, 1
    %p359 = por %p357, %p358
    %p361 = scmp.ne.s32.totalorder %s344, %s360
    %p362 = scmp.eq.s32.totalorder %s102, 0
    %p363 = por %p361, %p362
    %s365 = sadd.s32 %s364, 1
    %p368 = scmp.eq.s32.totalorder %s96, 1
    %p369 = scmp.ne.s32.totalorder %s364, %s366
    %p370 = scmp.eq.s32.totalorder %s96, 0
    %p371 = por %p369, %p370
    %p372 = scmp.ne.s32.totalorder %s364, %s366
    %p373 = scmp.eq.s32.totalorder %s101, 1
    %p374 = por %p372, %p373
    %p375 = scmp.ne.s32.totalorder %s366, %s367
    %p376 = scmp.eq.s32.totalorder %s101, 0
    %p377 = por %p375, %p376
    %p378 = scmp.ne.s32.totalorder %s366, %s367
    %p379 = scmp.eq.s32.totalorder %s102, 1
    %p380 = por %p378, %p379
    %p382 = scmp.ne.s32.totalorder %s367, %s381
    %p383 = scmp.eq.s32.totalorder %s102, 0
    %p384 = por %p382, %p383
    %s386 = sadd.s32 %s385, 1
    %p389 = scmp.eq.s32.totalorder %s96, 1
    %p390 = scmp.ne.s32.totalorder %s385, %s387
    %p391 = scmp.eq.s32.totalorder %s96, 0
    %p392 = por %p390, %p391
    %p393 = scmp.ne.s32.totalorder %s385, %s387
    %p394 = scmp.eq.s32.totalorder %s101, 1
    %p395 = por %p393, %p394
    %p396 = scmp.ne.s32.totalorder %s387, %s388
    %p397 = scmp.eq.s32.totalorder %s101, 0
    %p398 = por %p396, %p397
    %p399 = scmp.ne.s32.totalorder %s387, %s388
    %p400 = scmp.eq.s32.totalorder %s102, 1
    %p401 = por %p399, %p400
    %p403 = scmp.ne.s32.totalorder %s388, %s402
    %p404 = scmp.eq.s32.totalorder %s102, 0
    %p405 = por %p403, %p404
    %s407 = sadd.s32 %s406, 1
    %p410 = scmp.eq.s32.totalorder %s96, 1
    %p411 = scmp.ne.s32.totalorder %s406, %s408
    %p412 = scmp.eq.s32.totalorder %s96, 0
    %p413 = por %p411, %p412
    %p414 = scmp.ne.s32.totalorder %s406, %s408
    %p415 = scmp.eq.s32.totalorder %s101, 1
    %p416 = por %p414, %p415
    %p417 = scmp.ne.s32.totalorder %s408, %s409
    %p418 = scmp.eq.s32.totalorder %s101, 0
    %p419 = por %p417, %p418
    %p420 = scmp.ne.s32.totalorder %s408, %s409
    %p421 = scmp.eq.s32.totalorder %s102, 1
    %p422 = por %p420, %p421
    %p424 = scmp.ne.s32.totalorder %s409, %s423
    %p425 = scmp.eq.s32.totalorder %s102, 0
    %p426 = por %p424, %p425
    %s428 = sadd.s32 %s427, 1
    %p431 = scmp.eq.s32.totalorder %s96, 1
    %p432 = scmp.ne.s32.totalorder %s427, %s429
    %p433 = scmp.eq.s32.totalorder %s96, 0
    %p434 = por %p432, %p433
    %p435 = scmp.ne.s32.totalorder %s427, %s429
    %p436 = scmp.eq.s32.totalorder %s101, 1
    %p437 = por %p435, %p436
    %p438 = scmp.ne.s32.totalorder %s429, %s430
    %p439 = scmp.eq.s32.totalorder %s101, 0
    %p440 = por %p438, %p439
    %p441 = scmp.ne.s32.totalorder %s429, %s430
    %p442 = scmp.eq.s32.totalorder %s102, 1
    %p443 = por %p441, %p442
    %p445 = scmp.ne.s32.totalorder %s430, %s444
    %p446 = scmp.eq.s32.totalorder %s102, 0
    %p447 = por %p445, %p446
    %s449 = sadd.s32 %s448, 1
    %p452 = scmp.eq.s32.totalorder %s96, 1
    %p453 = scmp.ne.s32.totalorder %s448, %s450
    %p454 = scmp.eq.s32.totalorder %s96, 0
    %p455 = por %p453, %p454
    %p456 = scmp.ne.s32.totalorder %s448, %s450
    %p457 = scmp.eq.s32.totalorder %s101, 1
    %p458 = por %p456, %p457
    %p459 = scmp.ne.s32.totalorder %s450, %s451
    %p460 = scmp.eq.s32.totalorder %s101, 0
    %p461 = por %p459, %p460
    %p462 = scmp.ne.s32.totalorder %s450, %s451
    %p463 = scmp.eq.s32.totalorder %s102, 1
    %p464 = por %p462, %p463
    %p466 = scmp.ne.s32.totalorder %s451, %s465
    %p467 = scmp.eq.s32.totalorder %s102, 0
    %p468 = por %p466, %p467
    %s470 = sadd.s32 %s469, 1
    %p473 = scmp.eq.s32.totalorder %s96, 1
    %p474 = scmp.ne.s32.totalorder %s469, %s471
    %p475 = scmp.eq.s32.totalorder %s96, 0
    %p476 = por %p474, %p475
    %p477 = scmp.ne.s32.totalorder %s469, %s471
    %p478 = scmp.eq.s32.totalorder %s101, 1
    %p479 = por %p477, %p478
    %p480 = scmp.ne.s32.totalorder %s471, %s472
    %p481 = scmp.eq.s32.totalorder %s101, 0
    %p482 = por %p480, %p481
    %p483 = scmp.ne.s32.totalorder %s471, %s472
    %p484 = scmp.eq.s32.totalorder %s102, 1
    %p485 = por %p483, %p484
    %p487 = scmp.ne.s32.totalorder %s472, %s486
    %p488 = scmp.eq.s32.totalorder %s102, 0
    %p489 = por %p487, %p488
    %s491 = sadd.s32 %s490, 1
    %p494 = scmp.eq.s32.totalorder %s96, 1
    %p495 = scmp.ne.s32.totalorder %s490, %s492
    %p496 = scmp.eq.s32.totalorder %s96, 0
    %p497 = por %p495, %p496
    %p498 = scmp.ne.s32.totalorder %s490, %s492
    %p499 = scmp.eq.s32.totalorder %s101, 1
    %p500 = por %p498, %p499
    %p501 = scmp.ne.s32.totalorder %s492, %s493
    %p502 = scmp.eq.s32.totalorder %s101, 0
    %p503 = por %p501, %p502
    %p504 = scmp.ne.s32.totalorder %s492, %s493
    %p505 = scmp.eq.s32.totalorder %s102, 1
    %p506 = por %p504, %p505
    %p508 = scmp.ne.s32.totalorder %s493, %s507
    %p509 = scmp.eq.s32.totalorder %s102, 0
    %p510 = por %p508, %p509
    %s512 = sadd.s32 %s511, 1
    %p515 = scmp.eq.s32.totalorder %s96, 1
    %p516 = scmp.ne.s32.totalorder %s511, %s513
    %p517 = scmp.eq.s32.totalorder %s96, 0
    %p518 = por %p516, %p517
    %p519 = scmp.ne.s32.totalorder %s511, %s513
    %p520 = scmp.eq.s32.totalorder %s101, 1
    %p521 = por %p519, %p520
    %p522 = scmp.ne.s32.totalorder %s513, %s514
    %p523 = scmp.eq.s32.totalorder %s101, 0
    %p524 = por %p522, %p523
    %p525 = scmp.ne.s32.totalorder %s513, %s514
    %p526 = scmp.eq.s32.totalorder %s102, 1
    %p527 = por %p525, %p526
    %p529 = scmp.ne.s32.totalorder %s514, %s528
    %p530 = scmp.eq.s32.totalorder %s102, 0
    %p531 = por %p529, %p530
    %s533 = sadd.s32 %s532, 1
    %p536 = scmp.eq.s32.totalorder %s96, 1
    %p537 = scmp.ne.s32.totalorder %s532, %s534
    %p538 = scmp.eq.s32.totalorder %s96, 0
    %p539 = por %p537, %p538
    %p540 = scmp.ne.s32.totalorder %s532, %s534
    %p541 = scmp.eq.s32.totalorder %s101, 1
    %p542 = por %p540, %p541
    %p543 = scmp.ne.s32.totalorder %s534, %s535
    %p544 = scmp.eq.s32.totalorder %s101, 0
    %p545 = por %p543, %p544
    %p546 = scmp.ne.s32.totalorder %s534, %s535
    %p547 = scmp.eq.s32.totalorder %s102, 1
    %p548 = por %p546, %p547
    %p550 = scmp.ne.s32.totalorder %s535, %s549
    %p551 = scmp.eq.s32.totalorder %s102, 0
    %p552 = por %p550, %p551
    %s554 = sadd.s32 %s553, 1
    %p557 = scmp.eq.s32.totalorder %s96, 1
    %p558 = scmp.ne.s32.totalorder %s553, %s555
    %p559 = scmp.eq.s32.totalorder %s96, 0
    %p560 = por %p558, %p559
    %p561 = scmp.ne.s32.totalorder %s553, %s555
    %p562 = scmp.eq.s32.totalorder %s101, 1
    %p563 = por %p561, %p562
    %p564 = scmp.ne.s32.totalorder %s555, %s556
    %p565 = scmp.eq.s32.totalorder %s101, 0
    %p566 = por %p564, %p565
    %p567 = scmp.ne.s32.totalorder %s555, %s556
    %p568 = scmp.eq.s32.totalorder %s102, 1
    %p569 = por %p567, %p568
    %p571 = scmp.ne.s32.totalorder %s556, %s570
    %p572 = scmp.eq.s32.totalorder %s102, 0
    %p573 = por %p571, %p572
    %s575 = sadd.s32 %s574, 1
    %p578 = scmp.eq.s32.totalorder %s96, 1
    %p579 = scmp.ne.s32.totalorder %s574, %s576
    %p580 = scmp.eq.s32.totalorder %s96, 0
    %p581 = por %p579, %p580
    %p582 = scmp.ne.s32.totalorder %s574, %s576
    %p583 = scmp.eq.s32.totalorder %s101, 1
    %p584 = por %p582, %p583
    %p585 = scmp.ne.s32.totalorder %s576, %s577
    %p586 = scmp.eq.s32.totalorder %s101, 0
    %p587 = por %p585, %p586
    %p588 = scmp.ne.s32.totalorder %s576, %s577
    %p589 = scmp.eq.s32.totalorder %s102, 1
    %p590 = por %p588, %p589
    %p592 = scmp.ne.s32.totalorder %s577, %s591
    %p593 = scmp.eq.s32.totalorder %s102, 0
    %p594 = por %p592, %p593
    %s596 = sadd.s32 %s595, 1
    %p599 = scmp.eq.s32.totalorder %s96, 1
    %p600 = scmp.ne.s32.totalorder %s595, %s597
    %p601 = scmp.eq.s32.totalorder %s96, 0
    %p602 = por %p600, %p601
    %p603 = scmp.ne.s32.totalorder %s595, %s597
    %p604 = scmp.eq.s32.totalorder %s101, 1
    %p605 = por %p603, %p604
    %p606 = scmp.ne.s32.totalorder %s597, %s598
    %p607 = scmp.eq.s32.totalorder %s101, 0
    %p608 = por %p606, %p607
    %p609 = scmp.ne.s32.totalorder %s597, %s598
    %p610 = scmp.eq.s32.totalorder %s102, 1
    %p611 = por %p609, %p610
    %p613 = scmp.ne.s32.totalorder %s598, %s612
    %p614 = scmp.eq.s32.totalorder %s102, 0
    %p615 = por %p613, %p614
    %s617 = sadd.s32 %s616, 1
    %p620 = scmp.eq.s32.totalorder %s96, 1
    %p621 = scmp.ne.s32.totalorder %s616, %s618
    %p622 = scmp.eq.s32.totalorder %s96, 0
    %p623 = por %p621, %p622
    %p624 = scmp.ne.s32.totalorder %s616, %s618
    %p625 = scmp.eq.s32.totalorder %s101, 1
    %p626 = por %p624, %p625
    %p627 = scmp.ne.s32.totalorder %s618, %s619
    %p628 = scmp.eq.s32.totalorder %s101, 0
    %p629 = por %p627, %p628
    %p630 = scmp.ne.s32.totalorder %s618, %s619
    %p631 = scmp.eq.s32.totalorder %s102, 1
    %p632 = por %p630, %p631
    %p634 = scmp.ne.s32.totalorder %s619, %s633
    %p635 = scmp.eq.s32.totalorder %s102, 0
    %p636 = por %p634, %p635
    %s638 = sadd.s32 %s637, 1
    %p641 = scmp.eq.s32.totalorder %s96, 1
    %p642 = scmp.ne.s32.totalorder %s637, %s639
    %p643 = scmp.eq.s32.totalorder %s96, 0
    %p644 = por %p642, %p643
    %p645 = scmp.ne.s32.totalorder %s637, %s639
    %p646 = scmp.eq.s32.totalorder %s101, 1
    %p647 = por %p645, %p646
    %p648 = scmp.ne.s32.totalorder %s639, %s640
    %p649 = scmp.eq.s32.totalorder %s101, 0
    %p650 = por %p648, %p649
    %p651 = scmp.ne.s32.totalorder %s639, %s640
    %p652 = scmp.eq.s32.totalorder %s102, 1
    %p653 = por %p651, %p652
    %p655 = scmp.ne.s32.totalorder %s640, %s654
    %p656 = scmp.eq.s32.totalorder %s102, 0
    %p657 = por %p655, %p656
    %s659 = sadd.s32 %s658, 1
    %p662 = scmp.eq.s32.totalorder %s96, 1
    %p663 = scmp.ne.s32.totalorder %s658, %s660
    %p664 = scmp.eq.s32.totalorder %s96, 0
    %p665 = por %p663, %p664
    %p666 = scmp.ne.s32.totalorder %s658, %s660
    %p667 = scmp.eq.s32.totalorder %s101, 1
    %p668 = por %p666, %p667
    %p669 = scmp.ne.s32.totalorder %s660, %s661
    %p670 = scmp.eq.s32.totalorder %s101, 0
    %p671 = por %p669, %p670
    %p672 = scmp.ne.s32.totalorder %s660, %s661
    %p673 = scmp.eq.s32.totalorder %s102, 1
    %p674 = por %p672, %p673
    %p676 = scmp.ne.s32.totalorder %s661, %s675
    %p677 = scmp.eq.s32.totalorder %s102, 0
    %p678 = por %p676, %p677
    %s680 = sadd.s32 %s679, 1
    %p683 = scmp.eq.s32.totalorder %s96, 1
    %p684 = scmp.ne.s32.totalorder %s679, %s681
    %p685 = scmp.eq.s32.totalorder %s96, 0
    %p686 = por %p684, %p685
    %p687 = scmp.ne.s32.totalorder %s679, %s681
    %p688 = scmp.eq.s32.totalorder %s101, 1
    %p689 = por %p687, %p688
    %p690 = scmp.ne.s32.totalorder %s681, %s682
    %p691 = scmp.eq.s32.totalorder %s101, 0
    %p692 = por %p690, %p691
    %p693 = scmp.ne.s32.totalorder %s681, %s682
    %p694 = scmp.eq.s32.totalorder %s102, 1
    %p695 = por %p693, %p694
    %p697 = scmp.ne.s32.totalorder %s682, %s696
    %p698 = scmp.eq.s32.totalorder %s102, 0
    %p699 = por %p697, %p698
    %s701 = sadd.s32 %s700, 1
    %p704 = scmp.eq.s32.totalorder %s96, 1
    %p705 = scmp.ne.s32.totalorder %s700, %s702
    %p706 = scmp.eq.s32.totalorder %s96, 0
    %p707 = por %p705, %p706
    %p708 = scmp.ne.s32.totalorder %s700, %s702
    %p709 = scmp.eq.s32.totalorder %s101, 1
    %p710 = por %p708, %p709
    %p711 = scmp.ne.s32.totalorder %s702, %s703
    %p712 = scmp.eq.s32.totalorder %s101, 0
    %p713 = por %p711, %p712
    %p714 = scmp.ne.s32.totalorder %s702, %s703
    %p715 = scmp.eq.s32.totalorder %s102, 1
    %p716 = por %p714, %p715
    %p718 = scmp.ne.s32.totalorder %s703, %s717
    %p719 = scmp.eq.s32.totalorder %s102, 0
    %p720 = por %p718, %p719
    %s722 = sadd.s32 %s721, 1
    %p725 = scmp.eq.s32.totalorder %s96, 1
    %p726 = scmp.ne.s32.totalorder %s721, %s723
    %p727 = scmp.eq.s32.totalorder %s96, 0
    %p728 = por %p726, %p727
    %p729 = scmp.ne.s32.totalorder %s721, %s723
    %p730 = scmp.eq.s32.totalorder %s101, 1
    %p731 = por %p729, %p730
    %p732 = scmp.ne.s32.totalorder %s723, %s724
    %p733 = scmp.eq.s32.totalorder %s101, 0
    %p734 = por %p732, %p733
    %p735 = scmp.ne.s32.totalorder %s723, %s724
    %p736 = scmp.eq.s32.totalorder %s102, 1
    %p737 = por %p735, %p736
    %p739 = scmp.ne.s32.totalorder %s724, %s738
    %p740 = scmp.eq.s32.totalorder %s102, 0
    %p741 = por %p739, %p740
    %s743 = sadd.s32 %s742, 1
    %p746 = scmp.eq.s32.totalorder %s96, 1
    %p747 = scmp.ne.s32.totalorder %s742, %s744
    %p748 = scmp.eq.s32.totalorder %s96, 0
    %p749 = por %p747, %p748
    %p750 = scmp.ne.s32.totalorder %s742, %s744
    %p751 = scmp.eq.s32.totalorder %s101, 1
    %p752 = por %p750, %p751
    %p753 = scmp.ne.s32.totalorder %s744, %s745
    %p754 = scmp.eq.s32.totalorder %s101, 0
    %p755 = por %p753, %p754
    %p756 = scmp.ne.s32.totalorder %s744, %s745
    %p757 = scmp.eq.s32.totalorder %s102, 1
    %p758 = por %p756, %p757
    %p760 = scmp.ne.s32.totalorder %s745, %s759
    %p761 = scmp.eq.s32.totalorder %s102, 0
    %p762 = por %p760, %p761
    %s764 = sadd.s32 %s763, 1
    %p767 = scmp.eq.s32.totalorder %s96, 1
    %p768 = scmp.ne.s32.totalorder %s763, %s765
    %p769 = scmp.eq.s32.totalorder %s96, 0
    %p770 = por %p768, %p769
    %p771 = scmp.ne.s32.totalorder %s763, %s765
    %p772 = scmp.eq.s32.totalorder %s101, 1
    %p773 = por %p771, %p772
    %p774 = scmp.ne.s32.totalorder %s765, %s766
    %p775 = scmp.eq.s32.totalorder %s101, 0
    %p776 = por %p774, %p775
    %p777 = scmp.ne.s32.totalorder %s765, %s766
    %p778 = scmp.eq.s32.totalorder %s102, 1
    %p779 = por %p777, %p778
    %p781 = scmp.ne.s32.totalorder %s766, %s780
    %p782 = scmp.eq.s32.totalorder %s102, 0
    %p783 = por %p781, %p782
    %s785 = sadd.s32 %s784, 1
    %p788 = scmp.eq.s32.totalorder %s96, 1
    %p789 = scmp.ne.s32.totalorder %s784, %s786
    %p790 = scmp.eq.s32.totalorder %s96, 0
    %p791 = por %p789, %p790
    %p792 = scmp.ne.s32.totalorder %s784, %s786
    %p793 = scmp.eq.s32.totalorder %s101, 1
    %p794 = por %p792, %p793
    %p795 = scmp.ne.s32.totalorder %s786, %s787
    %p796 = scmp.eq.s32.totalorder %s101, 0
    %p797 = por %p795, %p796
    %p798 = scmp.ne.s32.totalorder %s786, %s787
    %p799 = scmp.eq.s32.totalorder %s102, 1
    %p800 = por %p798, %p799
    %p802 = scmp.ne.s32.totalorder %s787, %s801
    %p803 = scmp.eq.s32.totalorder %s102, 0
    %p804 = por %p802, %p803
    %s806 = sadd.s32 %s805, 1
    %p809 = scmp.eq.s32.totalorder %s96, 1
    %p810 = scmp.ne.s32.totalorder %s805, %s807
    %p811 = scmp.eq.s32.totalorder %s96, 0
    %p812 = por %p810, %p811
    %p813 = scmp.ne.s32.totalorder %s805, %s807
    %p814 = scmp.eq.s32.totalorder %s101, 1
    %p815 = por %p813, %p814
    %p816 = scmp.ne.s32.totalorder %s807, %s808
    %p817 = scmp.eq.s32.totalorder %s101, 0
    %p818 = por %p816, %p817
    %p819 = scmp.ne.s32.totalorder %s807, %s808
    %p820 = scmp.eq.s32.totalorder %s102, 1
    %p821 = por %p819, %p820
    %p823 = scmp.ne.s32.totalorder %s808, %s822
    %p824 = scmp.eq.s32.totalorder %s102, 0
    %p825 = por %p823, %p824
    %s827 = sadd.s32 %s826, 1
    %p830 = scmp.eq.s32.totalorder %s96, 1
    %p831 = scmp.ne.s32.totalorder %s826, %s828
    %p832 = scmp.eq.s32.totalorder %s96, 0
    %p833 = por %p831, %p832
    %p834 = scmp.ne.s32.totalorder %s826, %s828
    %p835 = scmp.eq.s32.totalorder %s101, 1
    %p836 = por %p834, %p835
    %p837 = scmp.ne.s32.totalorder %s828, %s829
    %p838 = scmp.eq.s32.totalorder %s101, 0
    %p839 = por %p837, %p838
    %p840 = scmp.ne.s32.totalorder %s828, %s829
    %p841 = scmp.eq.s32.totalorder %s102, 1
    %p842 = por %p840, %p841
    %p844 = scmp.ne.s32.totalorder %s829, %s843
    %p845 = scmp.eq.s32.totalorder %s102, 0
    %p846 = por %p844, %p845
    %s848 = sadd.s32 %s847, 1
    %p851 = scmp.eq.s32.totalorder %s96, 1
    %p852 = scmp.ne.s32.totalorder %s847, %s849
    %p853 = scmp.eq.s32.totalorder %s96, 0
    %p854 = por %p852, %p853
    %p855 = scmp.ne.s32.totalorder %s847, %s849
    %p856 = scmp.eq.s32.totalorder %s101, 1
    %p857 = por %p855, %p856
    %p858 = scmp.ne.s32.totalorder %s849, %s850
    %p859 = scmp.eq.s32.totalorder %s101, 0
    %p860 = por %p858, %p859
    %p861 = scmp.ne.s32.totalorder %s849, %s850
    %p862 = scmp.eq.s32.totalorder %s102, 1
    %p863 = por %p861, %p862
    %p865 = scmp.ne.s32.totalorder %s850, %s864
    %p866 = scmp.eq.s32.totalorder %s102, 0
    %p867 = por %p865, %p866
    %s869 = sadd.s32 %s868, 1
    %p872 = scmp.eq.s32.totalorder %s96, 1
    %p873 = scmp.ne.s32.totalorder %s868, %s870
    %p874 = scmp.eq.s32.totalorder %s96, 0
    %p875 = por %p873, %p874
    %p876 = scmp.ne.s32.totalorder %s868, %s870
    %p877 = scmp.eq.s32.totalorder %s101, 1
    %p878 = por %p876, %p877
    %p879 = scmp.ne.s32.totalorder %s870, %s871
    %p880 = scmp.eq.s32.totalorder %s101, 0
    %p881 = por %p879, %p880
    %p882 = scmp.ne.s32.totalorder %s870, %s871
    %p883 = scmp.eq.s32.totalorder %s102, 1
    %p884 = por %p882, %p883
    %p886 = scmp.ne.s32.totalorder %s871, %s885
    %p887 = scmp.eq.s32.totalorder %s102, 0
    %p888 = por %p886, %p887
    %s890 = sadd.s32 %s889, 1
    %p893 = scmp.eq.s32.totalorder %s96, 1
    %p894 = scmp.ne.s32.totalorder %s889, %s891
    %p895 = scmp.eq.s32.totalorder %s96, 0
    %p896 = por %p894, %p895
    %p897 = scmp.ne.s32.totalorder %s889, %s891
    %p898 = scmp.eq.s32.totalorder %s101, 1
    %p899 = por %p897, %p898
    %p900 = scmp.ne.s32.totalorder %s891, %s892
    %p901 = scmp.eq.s32.totalorder %s101, 0
    %p902 = por %p900, %p901
    %p903 = scmp.ne.s32.totalorder %s891, %s892
    %p904 = scmp.eq.s32.totalorder %s102, 1
    %p905 = por %p903, %p904
    %p907 = scmp.ne.s32.totalorder %s892, %s906
    %p908 = scmp.eq.s32.totalorder %s102, 0
    %p909 = por %p907, %p908
    %s911 = sadd.s32 %s910, 1
    %p914 = scmp.eq.s32.totalorder %s96, 1
    %p915 = scmp.ne.s32.totalorder %s910, %s912
    %p916 = scmp.eq.s32.totalorder %s96, 0
    %p917 = por %p915, %p916
    %p918 = scmp.ne.s32.totalorder %s910, %s912
    %p919 = scmp.eq.s32.totalorder %s101, 1
    %p920 = por %p918, %p919
    %p921 = scmp.ne.s32.totalorder %s912, %s913
    %p922 = scmp.eq.s32.totalorder %s101, 0
    %p923 = por %p921, %p922
    %p924 = scmp.ne.s32.totalorder %s912, %s913
    %p925 = scmp.eq.s32.totalorder %s102, 1
    %p926 = por %p924, %p925
    %p928 = scmp.ne.s32.totalorder %s913, %s927
    %p929 = scmp.eq.s32.totalorder %s102, 0
    %p930 = por %p928, %p929
    %s932 = sadd.s32 %s931, 1
    %p935 = scmp.eq.s32.totalorder %s96, 1
    %p936 = scmp.ne.s32.totalorder %s931, %s933
    %p937 = scmp.eq.s32.totalorder %s96, 0
    %p938 = por %p936, %p937
    %p939 = scmp.ne.s32.totalorder %s931, %s933
    %p940 = scmp.eq.s32.totalorder %s101, 1
    %p941 = por %p939, %p940
    %p942 = scmp.ne.s32.totalorder %s933, %s934
    %p943 = scmp.eq.s32.totalorder %s101, 0
    %p944 = por %p942, %p943
    %p945 = scmp.ne.s32.totalorder %s933, %s934
    %p946 = scmp.eq.s32.totalorder %s102, 1
    %p947 = por %p945, %p946
    %p949 = scmp.ne.s32.totalorder %s934, %s948
    %p950 = scmp.eq.s32.totalorder %s102, 0
    %p951 = por %p949, %p950
    %s953 = sadd.s32 %s952, 1
    %p956 = scmp.eq.s32.totalorder %s96, 1
    %p957 = scmp.ne.s32.totalorder %s952, %s954
    %p958 = scmp.eq.s32.totalorder %s96, 0
    %p959 = por %p957, %p958
    %p960 = scmp.ne.s32.totalorder %s952, %s954
    %p961 = scmp.eq.s32.totalorder %s101, 1
    %p962 = por %p960, %p961
    %p963 = scmp.ne.s32.totalorder %s954, %s955
    %p964 = scmp.eq.s32.totalorder %s101, 0
    %p965 = por %p963, %p964
    %p966 = scmp.ne.s32.totalorder %s954, %s955
    %p967 = scmp.eq.s32.totalorder %s102, 1
    %p968 = por %p966, %p967
    %p970 = scmp.ne.s32.totalorder %s955, %s969
    %p971 = scmp.eq.s32.totalorder %s102, 0
    %p972 = por %p970, %p971
    %s974 = sadd.s32 %s973, 1
    %p977 = scmp.eq.s32.totalorder %s96, 1
    %p978 = scmp.ne.s32.totalorder %s973, %s975
    %p979 = scmp.eq.s32.totalorder %s96, 0
    %p980 = por %p978, %p979
    %p981 = scmp.ne.s32.totalorder %s973, %s975
    %p982 = scmp.eq.s32.totalorder %s101, 1
    %p983 = por %p981, %p982
    %p984 = scmp.ne.s32.totalorder %s975, %s976
    %p985 = scmp.eq.s32.totalorder %s101, 0
    %p986 = por %p984, %p985
    %p987 = scmp.ne.s32.totalorder %s975, %s976
    %p988 = scmp.eq.s32.totalorder %s102, 1
    %p989 = por %p987, %p988
    %p991 = scmp.ne.s32.totalorder %s976, %s990
    %p992 = scmp.eq.s32.totalorder %s102, 0
    %p993 = por %p991, %p992
    %s995 = sadd.s32 %s994, 1
    %p998 = scmp.eq.s32.totalorder %s96, 1
    %p999 = scmp.ne.s32.totalorder %s994, %s996
    %p1000 = scmp.eq.s32.totalorder %s96, 0
    %p1001 = por %p999, %p1000
    %p1002 = scmp.ne.s32.totalorder %s994, %s996
    %p1003 = scmp.eq.s32.totalorder %s101, 1
    %p1004 = por %p1002, %p1003
    %p1005 = scmp.ne.s32.totalorder %s996, %s997
    %p1006 = scmp.eq.s32.totalorder %s101, 0
    %p1007 = por %p1005, %p1006
    %p1008 = scmp.ne.s32.totalorder %s996, %s997
    %p1009 = scmp.eq.s32.totalorder %s102, 1
    %p1010 = por %p1008, %p1009
    %p1012 = scmp.ne.s32.totalorder %s997, %s1011
    %p1013 = scmp.eq.s32.totalorder %s102, 0
    %p1014 = por %p1012, %p1013
    %s1016 = sadd.s32 %s1015, 1
    %p1019 = scmp.eq.s32.totalorder %s96, 1
    %p1020 = scmp.ne.s32.totalorder %s1015, %s1017
    %p1021 = scmp.eq.s32.totalorder %s96, 0
    %p1022 = por %p1020, %p1021
    %p1023 = scmp.ne.s32.totalorder %s1015, %s1017
    %p1024 = scmp.eq.s32.totalorder %s101, 1
    %p1025 = por %p1023, %p1024
    %p1026 = scmp.ne.s32.totalorder %s1017, %s1018
    %p1027 = scmp.eq.s32.totalorder %s101, 0
    %p1028 = por %p1026, %p1027
    %p1029 = scmp.ne.s32.totalorder %s1017, %s1018
    %p1030 = scmp.eq.s32.totalorder %s102, 1
    %p1031 = por %p1029, %p1030
    %p1033 = scmp.ne.s32.totalorder %s1018, %s1032
    %p1034 = scmp.eq.s32.totalorder %s102, 0
    %p1035 = por %p1033, %p1034
    %s1036 = ssub.s32 %s96, %s103
    %p1037 = scmp.eq.s32.totalorder %s1036, 0
    %s1039 = sadd.s32 %s1038, 1
    %s1040 = scalar_select %p1037, %s1038, %s1039
    %p1043 = pneg %p1037
    %p1044 = scmp.eq.s32.totalorder %s96, 1
    %p1045 = por %p1043, %p1044
    %p1046 = scmp.ne.s32.totalorder %s1038, %s1041
    %p1047 = scmp.eq.s32.totalorder %s96, 0
    %p1048 = por %p1046, %p1047
    %p1049 = scmp.ne.s32.totalorder %s1038, %s1041
    %p1050 = scmp.eq.s32.totalorder %s101, 1
    %p1051 = por %p1049, %p1050
    %p1052 = scmp.ne.s32.totalorder %s1041, %s1042
    %p1053 = scmp.eq.s32.totalorder %s101, 0
    %p1054 = por %p1052, %p1053
    %p1055 = scmp.ne.s32.totalorder %s1041, %s1042
    %p1056 = scmp.eq.s32.totalorder %s102, 1
    %p1057 = por %p1055, %p1056
    %p1059 = scmp.ne.s32.totalorder %s1042, %s1058
    %p1060 = scmp.eq.s32.totalorder %s102, 0
    %p1061 = por %p1059, %p1060
    %s1062 = ssub.s32 %s96, %s103
    %p1063 = scmp.eq.s32.totalorder %s1062, 0
    %s1065 = sadd.s32 %s1064, 1
    %s1066 = scalar_select %p1063, %s1064, %s1065
    %p1069 = pneg %p1063
    %p1070 = scmp.eq.s32.totalorder %s96, 1
    %p1071 = por %p1069, %p1070
    %p1072 = scmp.ne.s32.totalorder %s1064, %s1067
    %p1073 = scmp.eq.s32.totalorder %s96, 0
    %p1074 = por %p1072, %p1073
    %p1075 = scmp.ne.s32.totalorder %s1064, %s1067
    %p1076 = scmp.eq.s32.totalorder %s101, 1
    %p1077 = por %p1075, %p1076
    %p1078 = scmp.ne.s32.totalorder %s1067, %s1068
    %p1079 = scmp.eq.s32.totalorder %s101, 0
    %p1080 = por %p1078, %p1079
    %p1081 = scmp.ne.s32.totalorder %s1067, %s1068
    %p1082 = scmp.eq.s32.totalorder %s102, 1
    %p1083 = por %p1081, %p1082
    %p1085 = scmp.ne.s32.totalorder %s1068, %s1084
    %p1086 = scmp.eq.s32.totalorder %s102, 0
    %p1087 = por %p1085, %p1086
    %p1088 = scmp.le.s32.totalorder 1, %s96
    %p1089 = scmp.lt.s32.totalorder %s96, 3
    %p1090 = pnand %p1088, %p1089
    %p1091 = pneg %p1090
    // Predicated region
    $region9: #{portaspeech_forward.1} parent=5 // pred_check
      _
    $region10: #{portaspeech_forward.1} parent=5 // pred_check_branch
      %1093 = sbr.rel (%p1090) target = $region12
    $region11: #{portaspeech_forward.1} parent=5 // pred_region
      %s1094 = ssub.s32 %s96, 1
      // Predicated region
      $region13: #{portaspeech_forward.1} parent=11 // pred_check
        %p1095 = pneg %p377
      $region14: #{portaspeech_forward.1} parent=11 // pred_check_branch
        %1097 = sbr.rel (%p1095) target = $region16
      $region15: #{portaspeech_forward.1} parent=11 // pred_region
        _
      $region16: #{portaspeech_forward.1} parent=11 // pred_fallthru
        _
      // Predicated region
      $region17: #{portaspeech_forward.1} parent=11 // pred_check
        %p1098 = pneg %p398
      $region18: #{portaspeech_forward.1} parent=11 // pred_check_branch
        %1100 = sbr.rel (%p1098) target = $region20
      $region19: #{portaspeech_forward.1} parent=11 // pred_region
        _
      $region20: #{portaspeech_forward.1} parent=11 // pred_fallthru
        _
      // Predicated region
      $region21: #{portaspeech_forward.1} parent=11 // pred_check
        %p1101 = pneg %p419
      $region22: #{portaspeech_forward.1} parent=11 // pred_check_branch
        %1103 = sbr.rel (%p1101) target = $region24
      $region23: #{portaspeech_forward.1} parent=11 // pred_region
        _
      $region24: #{portaspeech_forward.1} parent=11 // pred_fallthru
        _
      // Predicated region
      $region25: #{portaspeech_forward.1} parent=11 // pred_check
        %p1104 = pneg %p440
      $region26: #{portaspeech_forward.1} parent=11 // pred_check_branch
        %1106 = sbr.rel (%p1104) target = $region28
      $region27: #{portaspeech_forward.1} parent=11 // pred_region
        _
      $region28: #{portaspeech_forward.1} parent=11 // pred_fallthru
        _
      // Predicated region
      $region29: #{portaspeech_forward.1} parent=11 // pred_check
        %p1107 = pneg %p461
      $region30: #{portaspeech_forward.1} parent=11 // pred_check_branch
        %1109 = sbr.rel (%p1107) target = $region32
      $region31: #{portaspeech_forward.1} parent=11 // pred_region
        _
      $region32: #{portaspeech_forward.1} parent=11 // pred_fallthru
        _
      // Predicated region
      $region33: #{portaspeech_forward.1} parent=11 // pred_check
        %p1110 = pneg %p482
      $region34: #{portaspeech_forward.1} parent=11 // pred_check_branch
        %1112 = sbr.rel (%p1110) target = $region36
      $region35: #{portaspeech_forward.1} parent=11 // pred_region
        _
      $region36: #{portaspeech_forward.1} parent=11 // pred_fallthru
        _
      // Predicated region
      $region37: #{portaspeech_forward.1} parent=11 // pred_check
        %p1113 = pneg %p503
      $region38: #{portaspeech_forward.1} parent=11 // pred_check_branch
        %1115 = sbr.rel (%p1113) target = $region40
      $region39: #{portaspeech_forward.1} parent=11 // pred_region
        _
      $region40: #{portaspeech_forward.1} parent=11 // pred_fallthru
        _
      // Predicated region
      $region41: #{portaspeech_forward.1} parent=11 // pred_check
        %p1116 = pneg %p524
      $region42: #{portaspeech_forward.1} parent=11 // pred_check_branch
        %1118 = sbr.rel (%p1116) target = $region44
      $region43: #{portaspeech_forward.1} parent=11 // pred_region
        _
      $region44: #{portaspeech_forward.1} parent=11 // pred_fallthru
        _
      // Predicated region
      $region45: #{portaspeech_forward.1} parent=11 // pred_check
        %p1119 = pneg %p545
      $region46: #{portaspeech_forward.1} parent=11 // pred_check_branch
        %1121 = sbr.rel (%p1119) target = $region48
      $region47: #{portaspeech_forward.1} parent=11 // pred_region
        _
      $region48: #{portaspeech_forward.1} parent=11 // pred_fallthru
        _
      // Predicated region
      $region49: #{portaspeech_forward.1} parent=11 // pred_check
        %p1122 = pneg %p566
      $region50: #{portaspeech_forward.1} parent=11 // pred_check_branch
        %1124 = sbr.rel (%p1122) target = $region52
      $region51: #{portaspeech_forward.1} parent=11 // pred_region
        _
      $region52: #{portaspeech_forward.1} parent=11 // pred_fallthru
        _
      // Predicated region
      $region53: #{portaspeech_forward.1} parent=11 // pred_check
        %p1125 = pneg %p587
      $region54: #{portaspeech_forward.1} parent=11 // pred_check_branch
        %1127 = sbr.rel (%p1125) target = $region56
      $region55: #{portaspeech_forward.1} parent=11 // pred_region
        _
      $region56: #{portaspeech_forward.1} parent=11 // pred_fallthru
        _
      // Predicated region
      $region57: #{portaspeech_forward.1} parent=11 // pred_check
        %p1128 = pneg %p608
      $region58: #{portaspeech_forward.1} parent=11 // pred_check_branch
        %1130 = sbr.rel (%p1128) target = $region60
      $region59: #{portaspeech_forward.1} parent=11 // pred_region
        _
      $region60: #{portaspeech_forward.1} parent=11 // pred_fallthru
        _
      // Predicated region
      $region61: #{portaspeech_forward.1} parent=11 // pred_check
        %p1131 = pneg %p629
      $region62: #{portaspeech_forward.1} parent=11 // pred_check_branch
        %1133 = sbr.rel (%p1131) target = $region64
      $region63: #{portaspeech_forward.1} parent=11 // pred_region
        _
      $region64: #{portaspeech_forward.1} parent=11 // pred_fallthru
        _
      // Predicated region
      $region65: #{portaspeech_forward.1} parent=11 // pred_check
        %p1134 = pneg %p650
      $region66: #{portaspeech_forward.1} parent=11 // pred_check_branch
        %1136 = sbr.rel (%p1134) target = $region68
      $region67: #{portaspeech_forward.1} parent=11 // pred_region
        _
      $region68: #{portaspeech_forward.1} parent=11 // pred_fallthru
        _
      // Predicated region
      $region69: #{portaspeech_forward.1} parent=11 // pred_check
        %p1137 = pneg %p671
      $region70: #{portaspeech_forward.1} parent=11 // pred_check_branch
        %1139 = sbr.rel (%p1137) target = $region72
      $region71: #{portaspeech_forward.1} parent=11 // pred_region
        _
      $region72: #{portaspeech_forward.1} parent=11 // pred_fallthru
        _
      // Predicated region
      $region73: #{portaspeech_forward.1} parent=11 // pred_check
        %p1140 = pneg %p692
      $region74: #{portaspeech_forward.1} parent=11 // pred_check_branch
        %1142 = sbr.rel (%p1140) target = $region76
      $region75: #{portaspeech_forward.1} parent=11 // pred_region
        _
      $region76: #{portaspeech_forward.1} parent=11 // pred_fallthru
        _
      // Predicated region
      $region77: #{portaspeech_forward.1} parent=11 // pred_check
        %p1143 = pneg %p713
      $region78: #{portaspeech_forward.1} parent=11 // pred_check_branch
        %1145 = sbr.rel (%p1143) target = $region80
      $region79: #{portaspeech_forward.1} parent=11 // pred_region
        _
      $region80: #{portaspeech_forward.1} parent=11 // pred_fallthru
        _
      // Predicated region
      $region81: #{portaspeech_forward.1} parent=11 // pred_check
        %p1146 = pneg %p734
      $region82: #{portaspeech_forward.1} parent=11 // pred_check_branch
        %1148 = sbr.rel (%p1146) target = $region84
      $region83: #{portaspeech_forward.1} parent=11 // pred_region
        _
      $region84: #{portaspeech_forward.1} parent=11 // pred_fallthru
        _
      // Predicated region
      $region85: #{portaspeech_forward.1} parent=11 // pred_check
        %p1149 = pneg %p755
      $region86: #{portaspeech_forward.1} parent=11 // pred_check_branch
        %1151 = sbr.rel (%p1149) target = $region88
      $region87: #{portaspeech_forward.1} parent=11 // pred_region
        _
      $region88: #{portaspeech_forward.1} parent=11 // pred_fallthru
        _
      // Predicated region
      $region89: #{portaspeech_forward.1} parent=11 // pred_check
        %p1152 = pneg %p776
      $region90: #{portaspeech_forward.1} parent=11 // pred_check_branch
        %1154 = sbr.rel (%p1152) target = $region92
      $region91: #{portaspeech_forward.1} parent=11 // pred_region
        _
      $region92: #{portaspeech_forward.1} parent=11 // pred_fallthru
        _
      // Predicated region
      $region93: #{portaspeech_forward.1} parent=11 // pred_check
        %p1155 = pneg %p797
      $region94: #{portaspeech_forward.1} parent=11 // pred_check_branch
        %1157 = sbr.rel (%p1155) target = $region96
      $region95: #{portaspeech_forward.1} parent=11 // pred_region
        _
      $region96: #{portaspeech_forward.1} parent=11 // pred_fallthru
        _
      // Predicated region
      $region97: #{portaspeech_forward.1} parent=11 // pred_check
        %p1158 = pneg %p818
      $region98: #{portaspeech_forward.1} parent=11 // pred_check_branch
        %1160 = sbr.rel (%p1158) target = $region100
      $region99: #{portaspeech_forward.1} parent=11 // pred_region
        _
      $region100: #{portaspeech_forward.1} parent=11 // pred_fallthru
        _
      // Predicated region
      $region101: #{portaspeech_forward.1} parent=11 // pred_check
        %p1161 = pneg %p839
      $region102: #{portaspeech_forward.1} parent=11 // pred_check_branch
        %1163 = sbr.rel (%p1161) target = $region104
      $region103: #{portaspeech_forward.1} parent=11 // pred_region
        _
      $region104: #{portaspeech_forward.1} parent=11 // pred_fallthru
        _
      // Predicated region
      $region105: #{portaspeech_forward.1} parent=11 // pred_check
        %p1164 = pneg %p860
      $region106: #{portaspeech_forward.1} parent=11 // pred_check_branch
        %1166 = sbr.rel (%p1164) target = $region108
      $region107: #{portaspeech_forward.1} parent=11 // pred_region
        _
      $region108: #{portaspeech_forward.1} parent=11 // pred_fallthru
        _
      // Predicated region
      $region109: #{portaspeech_forward.1} parent=11 // pred_check
        %p1167 = pneg %p881
      $region110: #{portaspeech_forward.1} parent=11 // pred_check_branch
        %1169 = sbr.rel (%p1167) target = $region112
      $region111: #{portaspeech_forward.1} parent=11 // pred_region
        _
      $region112: #{portaspeech_forward.1} parent=11 // pred_fallthru
        _
      // Predicated region
      $region113: #{portaspeech_forward.1} parent=11 // pred_check
        %p1170 = pneg %p902
      $region114: #{portaspeech_forward.1} parent=11 // pred_check_branch
        %1172 = sbr.rel (%p1170) target = $region116
      $region115: #{portaspeech_forward.1} parent=11 // pred_region
        _
      $region116: #{portaspeech_forward.1} parent=11 // pred_fallthru
        _
      // Predicated region
      $region117: #{portaspeech_forward.1} parent=11 // pred_check
        %p1173 = pneg %p923
      $region118: #{portaspeech_forward.1} parent=11 // pred_check_branch
        %1175 = sbr.rel (%p1173) target = $region120
      $region119: #{portaspeech_forward.1} parent=11 // pred_region
        _
      $region120: #{portaspeech_forward.1} parent=11 // pred_fallthru
        _
      // Predicated region
      $region121: #{portaspeech_forward.1} parent=11 // pred_check
        %p1176 = pneg %p944
      $region122: #{portaspeech_forward.1} parent=11 // pred_check_branch
        %1178 = sbr.rel (%p1176) target = $region124
      $region123: #{portaspeech_forward.1} parent=11 // pred_region
        _
      $region124: #{portaspeech_forward.1} parent=11 // pred_fallthru
        _
      // Predicated region
      $region125: #{portaspeech_forward.1} parent=11 // pred_check
        %p1179 = pneg %p965
      $region126: #{portaspeech_forward.1} parent=11 // pred_check_branch
        %1181 = sbr.rel (%p1179) target = $region128
      $region127: #{portaspeech_forward.1} parent=11 // pred_region
        _
      $region128: #{portaspeech_forward.1} parent=11 // pred_fallthru
        _
      // Predicated region
      $region129: #{portaspeech_forward.1} parent=11 // pred_check
        %p1182 = pneg %p986
      $region130: #{portaspeech_forward.1} parent=11 // pred_check_branch
        %1184 = sbr.rel (%p1182) target = $region132
      $region131: #{portaspeech_forward.1} parent=11 // pred_region
        _
      $region132: #{portaspeech_forward.1} parent=11 // pred_fallthru
        _
      // Predicated region
      $region133: #{portaspeech_forward.1} parent=11 // pred_check
        %p1185 = pneg %p1007
      $region134: #{portaspeech_forward.1} parent=11 // pred_check_branch
        %1187 = sbr.rel (%p1185) target = $region136
      $region135: #{portaspeech_forward.1} parent=11 // pred_region
        _
      $region136: #{portaspeech_forward.1} parent=11 // pred_fallthru
        _
      // Predicated region
      $region137: #{portaspeech_forward.1} parent=11 // pred_check
        %p1188 = pneg %p1028
      $region138: #{portaspeech_forward.1} parent=11 // pred_check_branch
        %1190 = sbr.rel (%p1188) target = $region140
      $region139: #{portaspeech_forward.1} parent=11 // pred_region
        _
      $region140: #{portaspeech_forward.1} parent=11 // pred_fallthru
        _
    $region12: #{portaspeech_forward.1} parent=5 // pred_fallthru
      _
    %p1191 = scmp.lt.s32.totalorder %s96, 2
    // Predicated region
    $region141: #{portaspeech_forward.1} parent=5 // pred_check
      %p1192 = pneg %p1191
    $region142: #{portaspeech_forward.1} parent=5 // pred_check_branch
      %1194 = sbr.rel (%p1192) target = $region144
    $region143: #{portaspeech_forward.1} parent=5 // pred_region
      // Predicated region
      $region145: #{portaspeech_forward.1} parent=143 // pred_check
        %p1195 = pneg %p116
      $region146: #{portaspeech_forward.1} parent=143 // pred_check_branch
        %1197 = sbr.rel (%p1195) target = $region148
      $region147: #{portaspeech_forward.1} parent=143 // pred_region
        %p1198 = scmp.lt.s32.totalorder %s96, 1
        %s1199 = scalar_select %p1198, %s96, 1
        %s1200 = smul.addr %s1199, 8
        %s1201 = scalar_lea.vmem %s1, %s1200
      $region148: #{portaspeech_forward.1} parent=143 // pred_fallthru
        _
      // Predicated region
      $region149: #{portaspeech_forward.1} parent=143 // pred_check
        %p1202 = pneg %p142
      $region150: #{portaspeech_forward.1} parent=143 // pred_check_branch
        %1204 = sbr.rel (%p1202) target = $region152
      $region151: #{portaspeech_forward.1} parent=143 // pred_region
        %p1205 = scmp.lt.s32.totalorder %s96, 1
        %s1206 = scalar_select %p1205, %s96, 1
        %s1207 = scalar_lea.vmem %s3, %s1206
      $region152: #{portaspeech_forward.1} parent=143 // pred_fallthru
        _
      // Predicated region
      $region153: #{portaspeech_forward.1} parent=143 // pred_check
        %p1208 = pneg %p168
      $region154: #{portaspeech_forward.1} parent=143 // pred_check_branch
        %1210 = sbr.rel (%p1208) target = $region156
      $region155: #{portaspeech_forward.1} parent=143 // pred_region
        %p1211 = scmp.lt.s32.totalorder %s96, 1
        %s1212 = scalar_select %p1211, %s96, 1
        %s1213 = smul.addr %s1212, 8
        %s1214 = scalar_lea.vmem %s5, %s1213
      $region156: #{portaspeech_forward.1} parent=143 // pred_fallthru
        _
      // Predicated region
      $region157: #{portaspeech_forward.1} parent=143 // pred_check
        %p1215 = pneg %p194
      $region158: #{portaspeech_forward.1} parent=143 // pred_check_branch
        %1217 = sbr.rel (%p1215) target = $region160
      $region159: #{portaspeech_forward.1} parent=143 // pred_region
        %p1218 = scmp.lt.s32.totalorder %s96, 1
        %s1219 = scalar_select %p1218, %s96, 1
        %s1220 = smul.addr %s1219, 4
        %s1221 = scalar_lea.vmem %s7, %s1220
      $region160: #{portaspeech_forward.1} parent=143 // pred_fallthru
        _
      // Predicated region
      $region161: #{portaspeech_forward.1} parent=143 // pred_check
        %p1222 = pneg %p220
      $region162: #{portaspeech_forward.1} parent=143 // pred_check_branch
        %1224 = sbr.rel (%p1222) target = $region164
      $region163: #{portaspeech_forward.1} parent=143 // pred_region
        %p1225 = scmp.lt.s32.totalorder %s96, 1
        %s1226 = scalar_select %p1225, %s96, 1
        %s1227 = smul.addr %s1226, 8
        %s1228 = scalar_lea.vmem %s9, %s1227
      $region164: #{portaspeech_forward.1} parent=143 // pred_fallthru
        _
      // Predicated region
      $region165: #{portaspeech_forward.1} parent=143 // pred_check
        %p1229 = pneg %p246
      $region166: #{portaspeech_forward.1} parent=143 // pred_check_branch
        %1231 = sbr.rel (%p1229) target = $region168
      $region167: #{portaspeech_forward.1} parent=143 // pred_region
        %p1232 = scmp.lt.s32.totalorder %s96, 1
        %s1233 = scalar_select %p1232, %s96, 1
        %s1234 = smul.addr %s1233, 4
        %s1235 = scalar_lea.vmem %s11, %s1234
      $region168: #{portaspeech_forward.1} parent=143 // pred_fallthru
        _
      // Predicated region
      $region169: #{portaspeech_forward.1} parent=143 // pred_check
        %p1236 = pneg %p272
      $region170: #{portaspeech_forward.1} parent=143 // pred_check_branch
        %1238 = sbr.rel (%p1236) target = $region172
      $region171: #{portaspeech_forward.1} parent=143 // pred_region
        %p1239 = scmp.lt.s32.totalorder %s96, 1
        %s1240 = scalar_select %p1239, %s96, 1
        %s1241 = smul.addr %s1240, 2
        %s1242 = smul.addr %s1241, 8
        %s1243 = scalar_lea.vmem %s13, %s1242
      $region172: #{portaspeech_forward.1} parent=143 // pred_fallthru
        _
      // Predicated region
      $region173: #{portaspeech_forward.1} parent=143 // pred_check
        %p1244 = pneg %p298
      $region174: #{portaspeech_forward.1} parent=143 // pred_check_branch
        %1246 = sbr.rel (%p1244) target = $region176
      $region175: #{portaspeech_forward.1} parent=143 // pred_region
        %p1247 = scmp.lt.s32.totalorder %s96, 1
        %s1248 = scalar_select %p1247, %s96, 1
        %s1249 = smul.addr %s1248, 2
        %s1250 = smul.addr %s1249, 8
        %s1251 = scalar_lea.vmem %s15, %s1250
      $region176: #{portaspeech_forward.1} parent=143 // pred_fallthru
        _
      // Predicated region
      $region177: #{portaspeech_forward.1} parent=143 // pred_check
        %p1252 = pneg %p324
      $region178: #{portaspeech_forward.1} parent=143 // pred_check_branch
        %1254 = sbr.rel (%p1252) target = $region180
      $region179: #{portaspeech_forward.1} parent=143 // pred_region
        %p1255 = scmp.lt.s32.totalorder %s96, 1
        %s1256 = scalar_select %p1255, %s96, 1
        %s1257 = smul.addr %s1256, 2
        %s1258 = smul.addr %s1257, 8
        %s1259 = scalar_lea.vmem %s17, %s1258
      $region180: #{portaspeech_forward.1} parent=143 // pred_fallthru
        _
      // Predicated region
      $region181: #{portaspeech_forward.1} parent=143 // pred_check
        %p1260 = pneg %p350
      $region182: #{portaspeech_forward.1} parent=143 // pred_check_branch
        %1262 = sbr.rel (%p1260) target = $region184
      $region183: #{portaspeech_forward.1} parent=143 // pred_region
        %p1263 = scmp.lt.s32.totalorder %s96, 1
        %s1264 = scalar_select %p1263, %s96, 1
        %s1265 = smul.addr %s1264, 2
        %s1266 = smul.addr %s1265, 8
        %s1267 = scalar_lea.vmem %s19, %s1266
      $region184: #{portaspeech_forward.1} parent=143 // pred_fallthru
        _
    $region144: #{portaspeech_forward.1} parent=5 // pred_fallthru
      _
    %p1268 = scmp.le.s32.totalorder 1, %s96
    %p1269 = scmp.lt.s32.totalorder %s96, 3
    %p1270 = pnand %p1268, %p1269
    %p1271 = pneg %p1270
    // Predicated region
    $region185: #{portaspeech_forward.1} parent=5 // pred_check
      _
    $region186: #{portaspeech_forward.1} parent=5 // pred_check_branch
      %1273 = sbr.rel (%p1270) target = $region188
    $region187: #{portaspeech_forward.1} parent=5 // pred_region
      %s1274 = ssub.s32 %s96, 1
      %p1275 = scmp.lt.s32.totalorder %s101, 1
      %s1276 = scalar_select %p1275, %s101, 1
      %s1277 = smul.addr %s1276, 8
      %s1278 = scalar_lea.vmem %s1, %s1277
      %p1279 = pneg %p122
      %p1280 = pneg %p119
      %p1281 = scmp.lt.s32.totalorder %s101, 1
      %s1282 = scalar_select %p1281, %s101, 1
      %s1283 = scalar_lea.vmem %s3, %s1282
      %p1284 = pneg %p148
      %p1285 = pneg %p145
      %p1286 = scmp.lt.s32.totalorder %s101, 1
      %s1287 = scalar_select %p1286, %s101, 1
      %s1288 = smul.addr %s1287, 8
      %s1289 = scalar_lea.vmem %s5, %s1288
      %p1290 = pneg %p174
      %p1291 = pneg %p171
      %p1292 = scmp.lt.s32.totalorder %s101, 1
      %s1293 = scalar_select %p1292, %s101, 1
      %s1294 = smul.addr %s1293, 4
      %s1295 = scalar_lea.vmem %s7, %s1294
      %p1296 = pneg %p200
      %p1297 = pneg %p197
      %p1298 = scmp.lt.s32.totalorder %s101, 1
      %s1299 = scalar_select %p1298, %s101, 1
      %s1300 = smul.addr %s1299, 8
      %s1301 = scalar_lea.vmem %s9, %s1300
      %p1302 = pneg %p226
      %p1303 = pneg %p223
      %p1304 = scmp.lt.s32.totalorder %s101, 1
      %s1305 = scalar_select %p1304, %s101, 1
      %s1306 = smul.addr %s1305, 4
      %s1307 = scalar_lea.vmem %s11, %s1306
      %p1308 = pneg %p252
      %p1309 = pneg %p249
      %p1310 = scmp.lt.s32.totalorder %s101, 1
      %s1311 = scalar_select %p1310, %s101, 1
      %s1312 = smul.addr %s1311, 2
      %s1313 = smul.addr %s1312, 8
      %s1314 = scalar_lea.vmem %s13, %s1313
      %p1315 = pneg %p278
      %p1316 = pneg %p275
      %p1317 = scmp.lt.s32.totalorder %s101, 1
      %s1318 = scalar_select %p1317, %s101, 1
      %s1319 = smul.addr %s1318, 2
      %s1320 = smul.addr %s1319, 8
      %s1321 = scalar_lea.vmem %s15, %s1320
      %p1322 = pneg %p304
      %p1323 = pneg %p301
      %p1324 = scmp.lt.s32.totalorder %s101, 1
      %s1325 = scalar_select %p1324, %s101, 1
      %s1326 = smul.addr %s1325, 2
      %s1327 = smul.addr %s1326, 8
      %s1328 = scalar_lea.vmem %s17, %s1327
      %p1329 = pneg %p330
      %p1330 = pneg %p327
      %p1331 = scmp.lt.s32.totalorder %s101, 1
      %s1332 = scalar_select %p1331, %s101, 1
      %s1333 = smul.addr %s1332, 2
      %s1334 = smul.addr %s1333, 8
      %s1335 = scalar_lea.vmem %s19, %s1334
      %p1336 = pneg %p356
      %p1337 = pneg %p353
      %p1338 = pneg %p377
      %p1339 = pneg %p374
      %p1340 = pneg %p398
      %p1341 = pneg %p395
      %p1342 = pneg %p419
      %p1343 = pneg %p416
      %p1344 = pneg %p440
      %p1345 = pneg %p437
      %p1346 = pneg %p461
      %p1347 = pneg %p458
      %p1348 = pneg %p482
      %p1349 = pneg %p479
      %p1350 = pneg %p503
      %p1351 = pneg %p500
      %p1352 = pneg %p524
      %p1353 = pneg %p521
      %p1354 = pneg %p545
      %p1355 = pneg %p542
      %p1356 = pneg %p566
      %p1357 = pneg %p563
      %p1358 = pneg %p587
      %p1359 = pneg %p584
      %p1360 = pneg %p608
      %p1361 = pneg %p605
      %p1362 = pneg %p629
      %p1363 = pneg %p626
      %p1364 = pneg %p650
      %p1365 = pneg %p647
      %p1366 = pneg %p671
      %p1367 = pneg %p668
      %p1368 = pneg %p692
      %p1369 = pneg %p689
      %p1370 = pneg %p713
      %p1371 = pneg %p710
      %p1372 = pneg %p734
      %p1373 = pneg %p731
      %p1374 = pneg %p755
      %p1375 = pneg %p752
      %p1376 = pneg %p776
      %p1377 = pneg %p773
      %p1378 = pneg %p797
      %p1379 = pneg %p794
      %p1380 = pneg %p818
      %p1381 = pneg %p815
      %p1382 = pneg %p839
      %p1383 = pneg %p836
      %p1384 = pneg %p860
      %p1385 = pneg %p857
      %p1386 = pneg %p881
      %p1387 = pneg %p878
      %p1388 = pneg %p902
      %p1389 = pneg %p899
      %p1390 = pneg %p923
      %p1391 = pneg %p920
      %p1392 = pneg %p944
      %p1393 = pneg %p941
      %p1394 = pneg %p965
      %p1395 = pneg %p962
      %p1396 = pneg %p986
      %p1397 = pneg %p983
      %p1398 = pneg %p1007
      %p1399 = pneg %p1004
      %p1400 = pneg %p1028
      %p1401 = pneg %p1025
      %p1402 = pneg %p1054
      %p1403 = pneg %p1051
      %p1404 = scmp.lt.s32.totalorder %s101, 1
      %s1405 = scalar_select %p1404, %s101, 1
      %s1406 = smul.addr %s1405, 4
      %s1407 = smul.addr %s1406, 8
      %s1408 = scalar_lea.vmem %s85, %s1407
      %p1409 = pneg %p1080
      %p1410 = pneg %p1077
      %p1411 = scmp.lt.s32.totalorder %s101, 1
      %s1412 = scalar_select %p1411, %s101, 1
      %s1413 = smul.addr %s1412, 8
      %s1414 = scalar_lea.vmem %s87, %s1413
      %p1415 = scmp.lt.s32.totalorder %s101, 1
      %s1416 = scalar_select %p1415, %s101, 1
      %s1417 = smul.addr %s1416, 8
      %s1418 = scalar_lea.vmem %s1, %s1417
      %p1419 = scmp.lt.s32.totalorder %s101, 1
      %s1420 = scalar_select %p1419, %s101, 1
      %s1421 = scalar_lea.vmem %s3, %s1420
      %p1422 = scmp.lt.s32.totalorder %s101, 1
      %s1423 = scalar_select %p1422, %s101, 1
      %s1424 = smul.addr %s1423, 8
      %s1425 = scalar_lea.vmem %s5, %s1424
      %p1426 = scmp.lt.s32.totalorder %s101, 1
      %s1427 = scalar_select %p1426, %s101, 1
      %s1428 = smul.addr %s1427, 4
      %s1429 = scalar_lea.vmem %s7, %s1428
      %p1430 = scmp.lt.s32.totalorder %s101, 1
      %s1431 = scalar_select %p1430, %s101, 1
      %s1432 = smul.addr %s1431, 8
      %s1433 = scalar_lea.vmem %s9, %s1432
      %p1434 = scmp.lt.s32.totalorder %s101, 1
      %s1435 = scalar_select %p1434, %s101, 1
      %s1436 = smul.addr %s1435, 4
      %s1437 = scalar_lea.vmem %s11, %s1436
      %p1438 = scmp.lt.s32.totalorder %s101, 1
      %s1439 = scalar_select %p1438, %s101, 1
      %s1440 = smul.addr %s1439, 2
      %s1441 = smul.addr %s1440, 8
      %s1442 = scalar_lea.vmem %s13, %s1441
      %p1443 = scmp.lt.s32.totalorder %s101, 1
      %s1444 = scalar_select %p1443, %s101, 1
      %s1445 = smul.addr %s1444, 2
      %s1446 = smul.addr %s1445, 8
      %s1447 = scalar_lea.vmem %s15, %s1446
      %p1448 = scmp.lt.s32.totalorder %s101, 1
      %s1449 = scalar_select %p1448, %s101, 1
      %s1450 = smul.addr %s1449, 2
      %s1451 = smul.addr %s1450, 8
      %s1452 = scalar_lea.vmem %s17, %s1451
      %p1453 = scmp.lt.s32.totalorder %s101, 1
      %s1454 = scalar_select %p1453, %s101, 1
      %s1455 = smul.addr %s1454, 2
      %s1456 = smul.addr %s1455, 8
      %s1457 = scalar_lea.vmem %s19, %s1456
      %p1458 = scmp.lt.s32.totalorder %s101, 1
      %s1459 = scalar_select %p1458, %s101, 1
      %s1460 = smul.addr %s1459, 4
      %s1461 = smul.addr %s1460, 8
      %s1462 = scalar_lea.vmem %s85, %s1461
      %p1463 = scmp.lt.s32.totalorder %s101, 1
      %s1464 = scalar_select %p1463, %s101, 1
      %s1465 = smul.addr %s1464, 8
      %s1466 = scalar_lea.vmem %s87, %s1465
      %v1467 = vld [vmem:[%s1418] sm:$0xff]
      %v1468 = vld [vmem:[%s1421] sm:$0x1]
      %v1469 = vld [vmem:[%s1425] sm:$0xff]
      %v1470 = vld [vmem:[%s21] sm:$0xff]
      %v1471 = vld [vmem:[%s21 + $0x8] sm:$0xff]
      %v1472 = vld [vmem:[%s21 + $0x10] sm:$0xff]
      %v1473 = vld [vmem:[%s21 + $0x18] sm:$0xff]
      %v1474 = vld [vmem:[%s23] sm:$0x1]
      %v1476 = vperm.slane %v1474, 0
      %vm1478 = vcmask 261120
      %v1480 = vsel %vm1478, %v1467, 0
      %1482 = vmatpush.msra.mxu0 0.0
      %1483 = vmatpush.msra.mxu0 0.0
      %1484 = vmatpush.msra.mxu0 0.0
      %1485 = vmatpush.msra.mxu0 0.0
      %1486 = vmatpush.msra.mxu0 0.0
      %1487 = vmatpush.msra.mxu0 0.0
      %1488 = vmatpush.msra.mxu0 0.0
      %1489 = vmatpush.msra.mxu0 0.0
      %1490 = vmatpush.msra.mxu0 0.0
      %1491 = vmatpush.msra.mxu0 0.0
      %1492 = vmatpush.msra.mxu0 0.0
      %1493 = vmatpush.msra.mxu0 0.0
      %1494 = vmatpush.msra.mxu0 %v1473
      %1495 = vmatpush.msra.mxu0 %v1472
      %1496 = vmatpush.msra.mxu0 %v1471
      %1497 = vmatpush.msra.mxu0 %v1470
      %1498 = vmatmul.f32.gmra.mxu0 %v1480
      %v1499 = vpop.f32.mrf.mxu0
      %v1500 = vadd.f32 %v1476, %v1499
      %1501 = vdwg.mxu0
      %1503 = vrot.lane.b32.xlu0 %v1500, 96
      %v1504 = vpop.permute.xlu0 %1503
      %vm1505 = vcmask 130048
      %v1506 = vsel %vm1505, %v1500, 0
      %v1508 = vsel %vm1505, %v1504, 0
      %1510 = vmatpush.xpose.msra.mxu0 0.0
      %1511 = vmatpush.xpose.msra.mxu0 0.0
      %1512 = vmatpush.xpose.msra.mxu0 0.0
      %1513 = vmatpush.xpose.msra.mxu0 0.0
      %1514 = vmatpush.xpose.msra.mxu0 0.0
      %1515 = vmatpush.xpose.msra.mxu0 0.0
      %1516 = vmatpush.xpose.msra.mxu0 0.0
      %1517 = vmatpush.xpose.msra.mxu0 0.0
      %1518 = vmatpush.xpose.msra.mxu0 0.0
      %1519 = vmatpush.xpose.msra.mxu0 0.0
      %1520 = vmatpush.xpose.msra.mxu0 0.0
      %1521 = vmatpush.xpose.msra.mxu0 0.0
      %1522 = vmatpush.xpose.msra.mxu0 0.0
      %1523 = vmatpush.xpose.msra.mxu0 0.0
      %1524 = vmatpush.xpose.msra.mxu0 0.0
      %1525 = vmatpush.xpose.msra.mxu0 %v1508
      %1526 = vmatmul.f32.gmra.mxu0 %v1506
      %v1527 = vpop.f32.mrf.mxu0
      %v1528 = vadd.f32 0.0, %v1527
      %1529 = vdwg.mxu0
      %v1530 = vmul.f32 %v1528, 0.25
      %v1532 = vperm.slane %v1468, 0
      %v1534 = vadd.f32 %v1530, %v1532
      %vm1535 = vcmask 64512
      %v1536 = vsel %vm1535, %v1534, -inf
      %1537 = vmax.xlane.f32.xlu0 %v1536
      %v1538 = vpop.xlane.xlu0 %1537
      %v1539 = vsub.f32 %v1534, %v1538
      %v1540 = vmul.f32 %v1539, 1.442695
      %v1541 = vpow.pop %v1540
      %v1542 = vsel %vm1535, %v1541, 0.0
      %1543 = vadd.xlane.f32.xlu0 %v1542
      %v1544 = vpop.xlane.xlu0 %1543
      %v1545 = vrcp.pop %v1544
      %v1546 = vmul.f32 %v1541, %v1545
      %1547 = vrot.lane.b32.xlu0 %v1500, 64
      %v1548 = vpop.permute.xlu0 %1547
      %v1551 = vsel %vm1535, %v1546, 0
      %1553 = vmatpush.msra.mxu0 0.0
      %1554 = vmatpush.msra.mxu0 0.0
      %1555 = vmatpush.msra.mxu0 0.0
      %1556 = vmatpush.msra.mxu0 0.0
      %1557 = vmatpush.msra.mxu0 0.0
      %1558 = vmatpush.msra.mxu0 0.0
      %1559 = vmatpush.msra.mxu0 0.0
      %1560 = vmatpush.msra.mxu0 0.0
      %1561 = vmatpush.msra.mxu0 0.0
      %1562 = vmatpush.msra.mxu0 0.0
      %1563 = vmatpush.msra.mxu0 0.0
      %1564 = vmatpush.msra.mxu0 0.0
      %1565 = vmatpush.msra.mxu0 0.0
      %1566 = vmatpush.msra.mxu0 0.0
      %1567 = vmatpush.msra.mxu0 0.0
      %1568 = vmatpush.msra.mxu0 %v1548
      %1569 = vmatmul.f32.gmra.mxu0 %v1551
      %v1570 = vpop.f32.mrf.mxu0
      %v1571 = vadd.f32 0.0, %v1570
      %1572 = vdwg.mxu0
      %1573 = vrot.lane.b32.xlu0 %v1500, 112
      %v1574 = vpop.permute.xlu0 %1573
      %1575 = vrot.lane.b32.xlu0 %v1500, 80
      %v1576 = vpop.permute.xlu0 %1575
      %v1577 = vsel %vm1505, %v1574, 0
      %v1579 = vsel %vm1505, %v1576, 0
      %1581 = vmatpush.xpose.msra.mxu0 0.0
      %1582 = vmatpush.xpose.msra.mxu0 0.0
      %1583 = vmatpush.xpose.msra.mxu0 0.0
      %1584 = vmatpush.xpose.msra.mxu0 0.0
      %1585 = vmatpush.xpose.msra.mxu0 0.0
      %1586 = vmatpush.xpose.msra.mxu0 0.0
      %1587 = vmatpush.xpose.msra.mxu0 0.0
      %1588 = vmatpush.xpose.msra.mxu0 0.0
      %1589 = vmatpush.xpose.msra.mxu0 0.0
      %1590 = vmatpush.xpose.msra.mxu0 0.0
      %1591 = vmatpush.xpose.msra.mxu0 0.0
      %1592 = vmatpush.xpose.msra.mxu0 0.0
      %1593 = vmatpush.xpose.msra.mxu0 0.0
      %1594 = vmatpush.xpose.msra.mxu0 0.0
      %1595 = vmatpush.xpose.msra.mxu0 0.0
      %1596 = vmatpush.xpose.msra.mxu0 %v1579
      %1597 = vmatmul.f32.gmra.mxu0 %v1577
      %v1598 = vpop.f32.mrf.mxu0
      %v1599 = vadd.f32 0.0, %v1598
      %1600 = vdwg.mxu0
      %v1601 = vmul.f32 %v1599, 0.25
      %v1602 = vadd.f32 %v1601, %v1532
      %v1603 = vsel %vm1535, %v1602, -inf
      %1604 = vmax.xlane.f32.xlu0 %v1603
      %v1605 = vpop.xlane.xlu0 %1604
      %v1606 = vsub.f32 %v1602, %v1605
      %v1607 = vmul.f32 %v1606, 1.442695
      %v1608 = vpow.pop %v1607
      %v1609 = vsel %vm1535, %v1608, 0.0
      %1610 = vadd.xlane.f32.xlu0 %v1609
      %v1611 = vpop.xlane.xlu0 %1610
      %v1612 = vrcp.pop %v1611
      %v1613 = vmul.f32 %v1608, %v1612
      %1614 = vrot.lane.b32.xlu0 %v1500, 48
      %v1615 = vpop.permute.xlu0 %1614
      %v1618 = vsel %vm1535, %v1613, 0
      %1620 = vmatpush.msra.mxu0 0.0
      %1621 = vmatpush.msra.mxu0 0.0
      %1622 = vmatpush.msra.mxu0 0.0
      %1623 = vmatpush.msra.mxu0 0.0
      %1624 = vmatpush.msra.mxu0 0.0
      %1625 = vmatpush.msra.mxu0 0.0
      %1626 = vmatpush.msra.mxu0 0.0
      %1627 = vmatpush.msra.mxu0 0.0
      %1628 = vmatpush.msra.mxu0 0.0
      %1629 = vmatpush.msra.mxu0 0.0
      %1630 = vmatpush.msra.mxu0 0.0
      %1631 = vmatpush.msra.mxu0 0.0
      %1632 = vmatpush.msra.mxu0 0.0
      %1633 = vmatpush.msra.mxu0 0.0
      %1634 = vmatpush.msra.mxu0 0.0
      %1635 = vmatpush.msra.mxu0 %v1615
      %1636 = vmatmul.f32.gmra.mxu0 %v1618
      %v1637 = vpop.f32.mrf.mxu0
      %v1638 = vadd.f32 0.0, %v1637
      %1639 = vdwg.mxu0
      %1641 = vrot.lane.b32.xlu0 %v1638, 16
      %v1642 = vpop.permute.xlu0 %1641
      %v1644 = vsel %vm1505, %v1571, %v1642
      %v1645 = vld [vmem:[%s25] sm:$0xff]
      %v1646 = vld [vmem:[%s25 + $0x8] sm:$0xff]
      %v1647 = vld [vmem:[%s25 + $0x10] sm:$0xff]
      %v1648 = vld [vmem:[%s25 + $0x18] sm:$0xff]
      %v1649 = vld [vmem:[%s27] sm:$0x1]
      %v1651 = vperm.slane %v1649, 0
      %v1654 = vsel %vm1478, %v1644, 0
      %1656 = vmatpush.msra.mxu0 0.0
      %1657 = vmatpush.msra.mxu0 0.0
      %1658 = vmatpush.msra.mxu0 0.0
      %1659 = vmatpush.msra.mxu0 0.0
      %1660 = vmatpush.msra.mxu0 0.0
      %1661 = vmatpush.msra.mxu0 0.0
      %1662 = vmatpush.msra.mxu0 0.0
      %1663 = vmatpush.msra.mxu0 0.0
      %1664 = vmatpush.msra.mxu0 0.0
      %1665 = vmatpush.msra.mxu0 0.0
      %1666 = vmatpush.msra.mxu0 0.0
      %1667 = vmatpush.msra.mxu0 0.0
      %1668 = vmatpush.msra.mxu0 %v1648
      %1669 = vmatpush.msra.mxu0 %v1647
      %1670 = vmatpush.msra.mxu0 %v1646
      %1671 = vmatpush.msra.mxu0 %v1645
      %1672 = vmatmul.f32.gmra.mxu0 %v1654
      %v1673 = vpop.f32.mrf.mxu0
      %v1674 = vadd.f32 %v1651, %v1673
      %1675 = vdwg.mxu0
      %v1676 = vadd.f32 %v1467, %v1674
      %v1677 = vld [vmem:[%s29] sm:$0x1]
      %v1678 = vld [vmem:[%s31] sm:$0x1]
      %v1679 = vsel %vm1478, %v1676, 0.0
      %1680 = vadd.xlane.f32.xlu0 %v1679
      %v1681 = vpop.xlane.xlu0 %1680
      %v1682 = vrcp.pop 32.0
      %v1683 = vmul.f32 32.0, %v1682
      %v1684 = vsub.f32 1.0, %v1683
      %v1685 = vmul.f32 %v1682, %v1684
      %v1686 = vadd.f32 %v1682, %v1685
      %vm1687 = vweird.f32 %v1682
      %v1688 = vsel %vm1687, %v1682, %v1686
      %v1689 = vmul.f32 %v1681, %v1688
      %v1690 = vsub.f32 %v1676, %v1689
      %v1691 = vmul.f32 %v1690, %v1690
      %v1692 = vsel %vm1478, %v1691, 0.0
      %1693 = vadd.xlane.f32.xlu0 %v1692
      %v1694 = vpop.xlane.xlu0 %1693
      %v1695 = vmul.f32 %v1694, %v1688
      %v1696 = vadd.f32 %v1695, 1e-05
      %v1697 = vrsqrt.pop %v1696
      %v1698 = vmul.f32 %v1697, %v1696
      %v1699 = vmul.f32 %v1698, %v1697
      %v1700 = vmul.f32 0.5, %v1699
      %v1701 = vsub.f32 1.5, %v1700
      %v1702 = vmul.f32 %v1697, %v1701
      %vm1703 = vweird.f32 %v1696
      %vm1704 = vweird.f32 %v1697
      %vm1705 = vmor %vm1703, %vm1704
      %v1706 = vsel %vm1705, %v1697, %v1702
      %v1707 = vmul.f32 %v1690, %v1706
      %v1709 = vperm.slane %v1677, 0
      %v1711 = vmul.f32 %v1707, %v1709
      %v1713 = vperm.slane %v1678, 0
      %v1715 = vadd.f32 %v1711, %v1713
      %v1716 = vld [vmem:[%s33] sm:$0xff]
      %v1717 = vld [vmem:[%s33 + $0x8] sm:$0xff]
      %v1718 = vld [vmem:[%s33 + $0x10] sm:$0xff]
      %v1719 = vld [vmem:[%s33 + $0x18] sm:$0xff]
      %v1720 = vld [vmem:[%s35] sm:$0x1]
      %v1722 = vperm.slane %v1720, 0
      %v1725 = vsel %vm1478, %v1715, 0
      %1727 = vmatpush.msra.mxu0 0.0
      %1728 = vmatpush.msra.mxu0 0.0
      %1729 = vmatpush.msra.mxu0 0.0
      %1730 = vmatpush.msra.mxu0 0.0
      %1731 = vmatpush.msra.mxu0 0.0
      %1732 = vmatpush.msra.mxu0 0.0
      %1733 = vmatpush.msra.mxu0 0.0
      %1734 = vmatpush.msra.mxu0 0.0
      %1735 = vmatpush.msra.mxu0 0.0
      %1736 = vmatpush.msra.mxu0 0.0
      %1737 = vmatpush.msra.mxu0 0.0
      %1738 = vmatpush.msra.mxu0 0.0
      %1739 = vmatpush.msra.mxu0 %v1719
      %1740 = vmatpush.msra.mxu0 %v1718
      %1741 = vmatpush.msra.mxu0 %v1717
      %1742 = vmatpush.msra.mxu0 %v1716
      %1743 = vmatmul.f32.gmra.mxu0 %v1725
      %v1744 = vpop.f32.mrf.mxu0
      %v1745 = vadd.f32 %v1722, %v1744
      %1746 = vdwg.mxu0
      %v1747 = vmax.f32 %v1745, 0.0
      %v1748 = vld [vmem:[%s37] sm:$0xff]
      %v1749 = vld [vmem:[%s37 + $0x8] sm:$0xff]
      %v1750 = vld [vmem:[%s37 + $0x10] sm:$0xff]
      %v1751 = vld [vmem:[%s37 + $0x18] sm:$0xff]
      %v1752 = vld [vmem:[%s37 + $0x20] sm:$0xff]
      %v1753 = vld [vmem:[%s37 + $0x28] sm:$0xff]
      %v1754 = vld [vmem:[%s37 + $0x30] sm:$0xff]
      %v1755 = vld [vmem:[%s37 + $0x38] sm:$0xff]
      %v1756 = vld [vmem:[%s39] sm:$0x1]
      %v1758 = vperm.slane %v1756, 0
      %vm1760 = vcmask 523264
      %v1762 = vsel %vm1760, %v1747, 0
      %1764 = vmatpush.msra.mxu0 0.0
      %1765 = vmatpush.msra.mxu0 0.0
      %1766 = vmatpush.msra.mxu0 0.0
      %1767 = vmatpush.msra.mxu0 0.0
      %1768 = vmatpush.msra.mxu0 0.0
      %1769 = vmatpush.msra.mxu0 0.0
      %1770 = vmatpush.msra.mxu0 0.0
      %1771 = vmatpush.msra.mxu0 0.0
      %1772 = vmatpush.msra.mxu0 %v1755
      %1773 = vmatpush.msra.mxu0 %v1754
      %1774 = vmatpush.msra.mxu0 %v1753
      %1775 = vmatpush.msra.mxu0 %v1752
      %1776 = vmatpush.msra.mxu0 %v1751
      %1777 = vmatpush.msra.mxu0 %v1750
      %1778 = vmatpush.msra.mxu0 %v1749
      %1779 = vmatpush.msra.mxu0 %v1748
      %1780 = vmatmul.f32.gmra.mxu0 %v1762
      %v1781 = vpop.f32.mrf.mxu0
      %v1782 = vadd.f32 %v1758, %v1781
      %1783 = vdwg.mxu0
      %v1784 = vadd.f32 %v1715, %v1782
      %v1785 = vld [vmem:[%s41] sm:$0x1]
      %v1786 = vld [vmem:[%s43] sm:$0x1]
      %v1787 = vsel %vm1478, %v1784, 0.0
      %1788 = vadd.xlane.f32.xlu0 %v1787
      %v1789 = vpop.xlane.xlu0 %1788
      %v1790 = vmul.f32 %v1789, %v1688
      %v1791 = vsub.f32 %v1784, %v1790
      %v1792 = vmul.f32 %v1791, %v1791
      %v1793 = vsel %vm1478, %v1792, 0.0
      %1794 = vadd.xlane.f32.xlu0 %v1793
      %v1795 = vpop.xlane.xlu0 %1794
      %v1796 = vmul.f32 %v1795, %v1688
      %v1797 = vadd.f32 %v1796, 1e-05
      %v1798 = vrsqrt.pop %v1797
      %v1799 = vmul.f32 %v1798, %v1797
      %v1800 = vmul.f32 %v1799, %v1798
      %v1801 = vmul.f32 0.5, %v1800
      %v1802 = vsub.f32 1.5, %v1801
      %v1803 = vmul.f32 %v1798, %v1802
      %vm1804 = vweird.f32 %v1797
      %vm1805 = vweird.f32 %v1798
      %vm1806 = vmor %vm1804, %vm1805
      %v1807 = vsel %vm1806, %v1798, %v1803
      %v1808 = vmul.f32 %v1791, %v1807
      %v1810 = vperm.slane %v1785, 0
      %v1812 = vmul.f32 %v1808, %v1810
      %v1814 = vperm.slane %v1786, 0
      %v1816 = vadd.f32 %v1812, %v1814
      %1818 = vset.pattern.permute.xlu0 0
      %1819 = vperm.xlu0 %1818, %v1469
      %v1820 = vpop.permute.xlu0 %1819
      %v1822 = vmul.f32 %v1816, %v1820
      %v1823 = vld [vmem:[%s1429] sm:$0xf]
      %v1824 = vld [vmem:[%s1433] sm:$0xff]
      %v1825 = vld [vmem:[%s1437] sm:$0xf]
      %v1827 = vsel %vm1535, %v1823, 0
      %1829 = vmatpush.msra.mxu0 0.0
      %1830 = vmatpush.msra.mxu0 0.0
      %1831 = vmatpush.msra.mxu0 0.0
      %1832 = vmatpush.msra.mxu0 0.0
      %1833 = vmatpush.msra.mxu0 0.0
      %1834 = vmatpush.msra.mxu0 0.0
      %1835 = vmatpush.msra.mxu0 0.0
      %1836 = vmatpush.msra.mxu0 0.0
      %1837 = vmatpush.msra.mxu0 0.0
      %1838 = vmatpush.msra.mxu0 0.0
      %1839 = vmatpush.msra.mxu0 0.0
      %1840 = vmatpush.msra.mxu0 0.0
      %1841 = vmatpush.msra.mxu0 0.0
      %1842 = vmatpush.msra.mxu0 0.0
      %1843 = vmatpush.msra.mxu0 0.0
      %1844 = vmatpush.msra.mxu0 %v1822
      %1845 = vmatmul.f32.gmra.mxu0 %v1827
      %v1846 = vpop.f32.mrf.mxu0
      %v1847 = vadd.f32 0.0, %v1846
      %1848 = vdwg.mxu0
      %vm1849 = vcmask 60416
      %v1850 = vsel %vm1849, %v1823, 0.0
      %1851 = vadd.xlane.f32.xlu0 %v1850
      %v1852 = vpop.xlane.xlu0 %1851
      %v1853 = vmax.f32 %v1852, 1.0
      %v1854 = vrcp.pop %v1853
      %v1855 = vmul.f32 %v1853, %v1854
      %v1856 = vsub.f32 1.0, %v1855
      %v1857 = vmul.f32 %v1854, %v1856
      %v1858 = vadd.f32 %v1854, %v1857
      %vm1859 = vweird.f32 %v1853
      %vm1860 = vweird.f32 %v1854
      %vm1861 = vmor %vm1859, %vm1860
      %v1862 = vsel %vm1861, %v1854, %v1858
      %v1863 = vand.u32 2147483647, %v1853
      %vm1864 = vcmp.eq.f32.partialorder %v1863, 8.507059e+37
      %v1865 = vand.u32 %v1853, 2147483648
      %v1866 = vor.u32 1.1754944e-38, %v1865
      %v1867 = vsel %vm1864, %v1866, %v1862
      %v1868 = vmul.f32 %v1847, %v1867
      %1870 = vset.pattern.permute.xlu0 0
      %1871 = vperm.xlu0 %1870, %v1825
      %v1872 = vpop.permute.xlu0 %1871
      %v1874 = vmul.f32 %v1868, %v1872
      %vm1875 = vcmask 31744
      %v1877 = vsel %vm1875, %v1824, 0
      %vm1879 = vcmask 1043456
      %v1881 = vsel %vm1879, %v1874, 0
      %1883 = vmatpush.msra.mxu0 0.0
      %1884 = vmatpush.msra.mxu0 0.0
      %1885 = vmatpush.msra.mxu0 0.0
      %1886 = vmatpush.msra.mxu0 0.0
      %1887 = vmatpush.msra.mxu0 0.0
      %1888 = vmatpush.msra.mxu0 0.0
      %1889 = vmatpush.msra.mxu0 0.0
      %1890 = vmatpush.msra.mxu0 0.0
      %1891 = vmatpush.msra.mxu0 0.0
      %1892 = vmatpush.msra.mxu0 0.0
      %1893 = vmatpush.msra.mxu0 0.0
      %1894 = vmatpush.msra.mxu0 0.0
      %1895 = vmatpush.msra.mxu0 0.0
      %1896 = vmatpush.msra.mxu0 0.0
      %1897 = vmatpush.msra.mxu0 0.0
      %1898 = vmatpush.msra.mxu0 %v1881
      %1899 = vmatmul.f32.gmra.mxu0 %v1877
      %v1900 = vpop.f32.mrf.mxu0
      %v1901 = vadd.f32 0.0, %v1900
      %1902 = vdwg.mxu0
      %v1903 = vadd.f32 %v1822, %v1901
      %v1904 = vld [vmem:[%s45] sm:$0xff]
      %v1905 = vld [vmem:[%s45 + $0x8] sm:$0xff]
      %v1906 = vld [vmem:[%s45 + $0x10] sm:$0xff]
      %v1907 = vld [vmem:[%s45 + $0x18] sm:$0xff]
      %v1908 = vld [vmem:[%s47] sm:$0x1]
      %v1910 = vperm.slane %v1908, 0
      %v1913 = vsel %vm1478, %v1903, 0
      %1915 = vmatpush.msra.mxu0 0.0
      %1916 = vmatpush.msra.mxu0 0.0
      %1917 = vmatpush.msra.mxu0 0.0
      %1918 = vmatpush.msra.mxu0 0.0
      %1919 = vmatpush.msra.mxu0 0.0
      %1920 = vmatpush.msra.mxu0 0.0
      %1921 = vmatpush.msra.mxu0 0.0
      %1922 = vmatpush.msra.mxu0 0.0
      %1923 = vmatpush.msra.mxu0 0.0
      %1924 = vmatpush.msra.mxu0 0.0
      %1925 = vmatpush.msra.mxu0 0.0
      %1926 = vmatpush.msra.mxu0 0.0
      %1927 = vmatpush.msra.mxu0 %v1907
      %1928 = vmatpush.msra.mxu0 %v1906
      %1929 = vmatpush.msra.mxu0 %v1905
      %1930 = vmatpush.msra.mxu0 %v1904
      %1931 = vmatmul.f32.gmra.mxu0 %v1913
      %v1932 = vpop.f32.mrf.mxu0
      %v1933 = vadd.f32 %v1910, %v1932
      %1934 = vdwg.mxu0
      %v1935 = vmax.f32 %v1933, 0.0
      %v1936 = vld [vmem:[%s49] sm:$0xff]
      %v1937 = vld [vmem:[%s49 + $0x8] sm:$0xff]
      %v1938 = vld [vmem:[%s49 + $0x10] sm:$0xff]
      %v1939 = vld [vmem:[%s49 + $0x18] sm:$0xff]
      %v1940 = vld [vmem:[#allocation2] sm:$0x1]
      %v1942 = vperm.slane %v1940, 0
      %v1945 = vsel %vm1478, %v1935, 0
      %1947 = vmatpush.msra.mxu0 0.0
      %1948 = vmatpush.msra.mxu0 0.0
      %1949 = vmatpush.msra.mxu0 0.0
      %1950 = vmatpush.msra.mxu0 0.0
      %1951 = vmatpush.msra.mxu0 0.0
      %1952 = vmatpush.msra.mxu0 0.0
      %1953 = vmatpush.msra.mxu0 0.0
      %1954 = vmatpush.msra.mxu0 0.0
      %1955 = vmatpush.msra.mxu0 0.0
      %1956 = vmatpush.msra.mxu0 0.0
      %1957 = vmatpush.msra.mxu0 0.0
      %1958 = vmatpush.msra.mxu0 0.0
      %1959 = vmatpush.msra.mxu0 %v1939
      %1960 = vmatpush.msra.mxu0 %v1938
      %1961 = vmatpush.msra.mxu0 %v1937
      %1962 = vmatpush.msra.mxu0 %v1936
      %1963 = vmatmul.f32.gmra.mxu0 %v1945
      %v1964 = vpop.f32.mrf.mxu0
      %v1965 = vadd.f32 %v1942, %v1964
      %1966 = vdwg.mxu0
      %v1967 = vmul.f32 %v1965, %v1469
      %vm1968 = vcmask 7168
      %1969 = vst.msk [vmem:[%s1466] sm:$0xff] %vm1968, %v1967
      %v1970 = vld [vmem:[%s1442] sm:$0xff]
      %v1971 = vld [vmem:[%s1442 + $0x8] sm:$0xff]
      %v1972 = vld [vmem:[%s1452] sm:$0xff]
      %v1973 = vld [vmem:[%s1452 + $0x8] sm:$0xff]
      %v1974 = vld [vmem:[%s1447] sm:$0xff]
      %v1975 = vld [vmem:[%s1447 + $0x8] sm:$0xff]
      %1977 = vset.pattern.permute.xlu0 0
      %1978 = vperm.xlu0 %1977, %v1972
      %v1979 = vpop.permute.xlu0 %1978
      %1982 = vset.pattern.permute.xlu0 0
      %1983 = vperm.xlu0 %1982, %v1973
      %v1984 = vpop.permute.xlu0 %1983
      %v1986 = vmul.f32 %v1974, %v1979
      %v1987 = vmul.f32 %v1975, %v1984
      %v1988 = vld [vmem:[%s1457] sm:$0xff]
      %v1989 = vld [vmem:[%s1457 + $0x8] sm:$0xff]
      %v1991 = vsel %vm1535, %v1970, 0
      %v1994 = vsel %vm1535, %v1971, 0
      %1996 = vmatpush.msra.mxu0 0.0
      %1997 = vmatpush.msra.mxu0 0.0
      %1998 = vmatpush.msra.mxu0 0.0
      %1999 = vmatpush.msra.mxu0 0.0
      %2000 = vmatpush.msra.mxu0 0.0
      %2001 = vmatpush.msra.mxu0 0.0
      %2002 = vmatpush.msra.mxu0 0.0
      %2003 = vmatpush.msra.mxu0 0.0
      %2004 = vmatpush.msra.mxu0 0.0
      %2005 = vmatpush.msra.mxu0 0.0
      %2006 = vmatpush.msra.mxu0 0.0
      %2007 = vmatpush.msra.mxu0 0.0
      %2008 = vmatpush.msra.mxu0 0.0
      %2009 = vmatpush.msra.mxu0 0.0
      %2010 = vmatpush.msra.mxu0 0.0
      %2011 = vmatpush.msra.mxu0 %v1903
      %2012 = vmatmul.f32.gmra.mxu0 %v1991
      %v2013 = vpop.f32.mrf.mxu0
      %v2014 = vadd.f32 0.0, %v2013
      %2015 = vmatmul.f32.gmra.mxu0 %v1994
      %v2016 = vpop.f32.mrf.mxu0
      %v2017 = vadd.f32 0.0, %v2016
      %2018 = vdwg.mxu0
      %v2019 = vmul.f32 %v2014, %v1979
      %v2020 = vmul.f32 %v2017, %v1984
      %v2021 = vld [vmem:[%s53] sm:$0xff]
      %v2022 = vld [vmem:[%s53 + $0x8] sm:$0xff]
      %v2023 = vld [vmem:[%s55] sm:$0xff]
      %v2024 = vld [vmem:[%s55 + $0x8] sm:$0xff]
      %v2025 = vld [vmem:[%s55 + $0x10] sm:$0xff]
      %v2026 = vld [vmem:[%s55 + $0x18] sm:$0xff]
      %v2028 = vsel %vm1478, %v2019, 0
      %v2031 = vsel %vm1478, %v2020, 0
      %2033 = vmatpush.msra.mxu0 0.0
      %2034 = vmatpush.msra.mxu0 0.0
      %2035 = vmatpush.msra.mxu0 0.0
      %2036 = vmatpush.msra.mxu0 0.0
      %2037 = vmatpush.msra.mxu0 0.0
      %2038 = vmatpush.msra.mxu0 0.0
      %2039 = vmatpush.msra.mxu0 0.0
      %2040 = vmatpush.msra.mxu0 0.0
      %2041 = vmatpush.msra.mxu0 0.0
      %2042 = vmatpush.msra.mxu0 0.0
      %2043 = vmatpush.msra.mxu0 0.0
      %2044 = vmatpush.msra.mxu0 0.0
      %2045 = vmatpush.msra.mxu0 %v2026
      %2046 = vmatpush.msra.mxu0 %v2025
      %2047 = vmatpush.msra.mxu0 %v2024
      %2048 = vmatpush.msra.mxu0 %v2023
      %2049 = vmatmul.f32.gmra.mxu0 %v2028
      %v2050 = vpop.f32.mrf.mxu0
      %v2051 = vadd.f32 0.0, %v2050
      %2052 = vmatmul.f32.gmra.mxu0 %v2031
      %v2053 = vpop.f32.mrf.mxu0
      %v2054 = vadd.f32 0.0, %v2053
      %2055 = vdwg.mxu0
      %v2057 = vsel %vm1505, %v1986, 0
      %v2060 = vsel %vm1505, %v1987, 0
      %2062 = vmatpush.msra.mxu0 0.0
      %2063 = vmatpush.msra.mxu0 0.0
      %2064 = vmatpush.msra.mxu0 0.0
      %2065 = vmatpush.msra.mxu0 0.0
      %2066 = vmatpush.msra.mxu0 0.0
      %2067 = vmatpush.msra.mxu0 0.0
      %2068 = vmatpush.msra.mxu0 0.0
      %2069 = vmatpush.msra.mxu0 0.0
      %2070 = vmatpush.msra.mxu0 0.0
      %2071 = vmatpush.msra.mxu0 0.0
      %2072 = vmatpush.msra.mxu0 0.0
      %2073 = vmatpush.msra.mxu0 0.0
      %2074 = vmatpush.msra.mxu0 0.0
      %2075 = vmatpush.msra.mxu0 0.0
      %2076 = vmatpush.msra.mxu0 %v2022
      %2077 = vmatpush.msra.mxu0 %v2021
      %2078 = vmatmul.f32.gmra.mxu0 %v2057
      %v2079 = vpop.f32.mrf.mxu0
      %v2080 = vadd.f32 %v2051, %v2079
      %2081 = vmatmul.f32.gmra.mxu0 %v2060
      %v2082 = vpop.f32.mrf.mxu0
      %v2083 = vadd.f32 %v2054, %v2082
      %2084 = vdwg.mxu0
      %v2085 = vld [vmem:[%s57] sm:$0x1]
      %v2087 = vperm.slane %v2085, 0
      %v2089 = vadd.f32 %v2080, %v2087
      %v2090 = vadd.f32 %v2083, %v2087
      %v2091 = vmax.f32 %v2089, 0.0
      %v2092 = vmax.f32 %v2090, 0.0
      %v2093 = vld [vmem:[%s59] sm:$0xff]
      %v2094 = vld [vmem:[%s59 + $0x8] sm:$0xff]
      %v2095 = vld [vmem:[%s59 + $0x10] sm:$0xff]
      %v2096 = vld [vmem:[%s59 + $0x18] sm:$0xff]
      %v2097 = vld [vmem:[%s61] sm:$0x1]
      %v2099 = vperm.slane %v2097, 0
      %v2102 = vsel %vm1478, %v2091, 0
      %v2105 = vsel %vm1478, %v2092, 0
      %2107 = vmatpush.msra.mxu0 0.0
      %2108 = vmatpush.msra.mxu0 0.0
      %2109 = vmatpush.msra.mxu0 0.0
      %2110 = vmatpush.msra.mxu0 0.0
      %2111 = vmatpush.msra.mxu0 0.0
      %2112 = vmatpush.msra.mxu0 0.0
      %2113 = vmatpush.msra.mxu0 0.0
      %2114 = vmatpush.msra.mxu0 0.0
      %2115 = vmatpush.msra.mxu0 0.0
      %2116 = vmatpush.msra.mxu0 0.0
      %2117 = vmatpush.msra.mxu0 0.0
      %2118 = vmatpush.msra.mxu0 0.0
      %2119 = vmatpush.msra.mxu0 %v2096
      %2120 = vmatpush.msra.mxu0 %v2095
      %2121 = vmatpush.msra.mxu0 %v2094
      %2122 = vmatpush.msra.mxu0 %v2093
      %2123 = vmatmul.f32.gmra.mxu0 %v2102
      %v2124 = vpop.f32.mrf.mxu0
      %v2125 = vadd.f32 %v2099, %v2124
      %2126 = vmatmul.f32.gmra.mxu0 %v2105
      %v2127 = vpop.f32.mrf.mxu0
      %v2128 = vadd.f32 %v2099, %v2127
      %2129 = vdwg.mxu0
      %v2130 = vmul.f32 %v2125, 0.5
      %v2131 = vmul.f32 %v2128, 0.5
      %v2132 = vmul.f32 %v2130, 1.442695
      %v2133 = vpow.pop %v2132
      %v2134 = vmul.f32 %v2131, 1.442695
      %v2135 = vpow.pop %v2134
      %2138 = vrot.lane.b32.xlu0 %v1988, 16
      %v2139 = vpop.permute.xlu0 %2138
      %2140 = vrot.lane.b32.xlu0 %v1989, 16
      %v2141 = vpop.permute.xlu0 %2140
      %v2144 = vmul.f32 %v2133, %v2139
      %v2145 = vmul.f32 %v2135, %v2141
      %2148 = vrot.lane.b32.xlu0 %v2144, 112
      %v2149 = vpop.permute.xlu0 %2148
      %2150 = vrot.lane.b32.xlu0 %v2145, 112
      %v2151 = vpop.permute.xlu0 %2150
      %v2154 = vadd.f32 %v2125, %v2149
      %v2155 = vadd.f32 %v2128, %v2151
      %v2156 = vld [vmem:[%s63] sm:$0xff]
      %v2157 = vld [vmem:[%s63 + $0x8] sm:$0xff]
      %v2158 = vld [vmem:[%s65] sm:$0x1]
      %v2160 = vperm.slane %v2158, 0
      %v2163 = vsel %vm1505, %v2154, 0
      %v2166 = vsel %vm1505, %v2155, 0
      %2168 = vmatpush.msra.mxu0 0.0
      %2169 = vmatpush.msra.mxu0 0.0
      %2170 = vmatpush.msra.mxu0 0.0
      %2171 = vmatpush.msra.mxu0 0.0
      %2172 = vmatpush.msra.mxu0 0.0
      %2173 = vmatpush.msra.mxu0 0.0
      %2174 = vmatpush.msra.mxu0 0.0
      %2175 = vmatpush.msra.mxu0 0.0
      %2176 = vmatpush.msra.mxu0 0.0
      %2177 = vmatpush.msra.mxu0 0.0
      %2178 = vmatpush.msra.mxu0 0.0
      %2179 = vmatpush.msra.mxu0 0.0
      %2180 = vmatpush.msra.mxu0 0.0
      %2181 = vmatpush.msra.mxu0 0.0
      %2182 = vmatpush.msra.mxu0 %v2157
      %2183 = vmatpush.msra.mxu0 %v2156
      %2184 = vmatmul.f32.gmra.mxu0 %v2163
      %v2185 = vpop.f32.mrf.mxu0
      %v2186 = vadd.f32 %v2160, %v2185
      %2187 = vmatmul.f32.gmra.mxu0 %v2166
      %v2188 = vpop.f32.mrf.mxu0
      %v2189 = vadd.f32 %v2160, %v2188
      %2190 = vdwg.mxu0
      %v2191 = vadd.f32 %v2186, %v2019
      %v2192 = vadd.f32 %v2189, %v2020
      %v2193 = vmax.f32 %v2191, 0.0
      %v2194 = vmax.f32 %v2192, 0.0
      %v2195 = vld [vmem:[%s67] sm:$0xff]
      %v2196 = vld [vmem:[%s67 + $0x8] sm:$0xff]
      %v2197 = vld [vmem:[%s67 + $0x10] sm:$0xff]
      %v2198 = vld [vmem:[%s67 + $0x18] sm:$0xff]
      %v2199 = vld [vmem:[%s69] sm:$0x1]
      %v2201 = vperm.slane %v2199, 0
      %v2204 = vsel %vm1478, %v2193, 0
      %v2207 = vsel %vm1478, %v2194, 0
      %2209 = vmatpush.msra.mxu0 0.0
      %2210 = vmatpush.msra.mxu0 0.0
      %2211 = vmatpush.msra.mxu0 0.0
      %2212 = vmatpush.msra.mxu0 0.0
      %2213 = vmatpush.msra.mxu0 0.0
      %2214 = vmatpush.msra.mxu0 0.0
      %2215 = vmatpush.msra.mxu0 0.0
      %2216 = vmatpush.msra.mxu0 0.0
      %2217 = vmatpush.msra.mxu0 0.0
      %2218 = vmatpush.msra.mxu0 0.0
      %2219 = vmatpush.msra.mxu0 0.0
      %2220 = vmatpush.msra.mxu0 0.0
      %2221 = vmatpush.msra.mxu0 %v2198
      %2222 = vmatpush.msra.mxu0 %v2197
      %2223 = vmatpush.msra.mxu0 %v2196
      %2224 = vmatpush.msra.mxu0 %v2195
      %2225 = vmatmul.f32.gmra.mxu0 %v2204
      %v2226 = vpop.f32.mrf.mxu0
      %v2227 = vadd.f32 %v2201, %v2226
      %2228 = vmatmul.f32.gmra.mxu0 %v2207
      %v2229 = vpop.f32.mrf.mxu0
      %v2230 = vadd.f32 %v2201, %v2229
      %2231 = vdwg.mxu0
      %v2232 = vmul.f32 %v2227, %v1979
      %v2233 = vmul.f32 %v2230, %v1984
      %v2234 = vld [vmem:[%s71] sm:$0xff]
      %v2235 = vld [vmem:[%s71 + $0x8] sm:$0xff]
      %v2236 = vld [vmem:[%s71 + $0x10] sm:$0xff]
      %v2237 = vld [vmem:[%s71 + $0x18] sm:$0xff]
      %v2238 = vld [vmem:[%s73] sm:$0x1]
      %v2240 = vperm.slane %v2238, 0
      %2242 = vmatpush.msra.mxu0 0.0
      %2243 = vmatpush.msra.mxu0 0.0
      %2244 = vmatpush.msra.mxu0 0.0
      %2245 = vmatpush.msra.mxu0 0.0
      %2246 = vmatpush.msra.mxu0 0.0
      %2247 = vmatpush.msra.mxu0 0.0
      %2248 = vmatpush.msra.mxu0 0.0
      %2249 = vmatpush.msra.mxu0 0.0
      %2250 = vmatpush.msra.mxu0 0.0
      %2251 = vmatpush.msra.mxu0 0.0
      %2252 = vmatpush.msra.mxu0 0.0
      %2253 = vmatpush.msra.mxu0 0.0
      %2254 = vmatpush.msra.mxu0 %v2237
      %2255 = vmatpush.msra.mxu0 %v2236
      %2256 = vmatpush.msra.mxu0 %v2235
      %2257 = vmatpush.msra.mxu0 %v2234
      %2258 = vmatmul.f32.gmra.mxu0 %v2204
      %v2259 = vpop.f32.mrf.mxu0
      %v2260 = vadd.f32 %v2240, %v2259
      %2261 = vmatmul.f32.gmra.mxu0 %v2207
      %v2262 = vpop.f32.mrf.mxu0
      %v2263 = vadd.f32 %v2240, %v2262
      %2264 = vdwg.mxu0
      %v2265 = vmul.f32 %v2260, %v1979
      %v2266 = vmul.f32 %v2263, %v1984
      %v2267 = vadd.f32 %v2232, %v2019
      %v2268 = vadd.f32 %v2233, %v2020
      %v2269 = vmul.f32 %v2267, %v1979
      %v2270 = vmul.f32 %v2268, %v1984
      %v2271 = vld [vmem:[%s75] sm:$0xff]
      %v2272 = vld [vmem:[%s77] sm:$0xff]
      %v2273 = vld [vmem:[%s77 + $0x8] sm:$0xff]
      %v2274 = vld [vmem:[%s77 + $0x10] sm:$0xff]
      %v2275 = vld [vmem:[%s77 + $0x18] sm:$0xff]
      %v2277 = vsel %vm1478, %v2269, 0
      %v2280 = vsel %vm1478, %v2270, 0
      %2282 = vmatpush.msra.mxu0 0.0
      %2283 = vmatpush.msra.mxu0 0.0
      %2284 = vmatpush.msra.mxu0 0.0
      %2285 = vmatpush.msra.mxu0 0.0
      %2286 = vmatpush.msra.mxu0 0.0
      %2287 = vmatpush.msra.mxu0 0.0
      %2288 = vmatpush.msra.mxu0 0.0
      %2289 = vmatpush.msra.mxu0 0.0
      %2290 = vmatpush.msra.mxu0 0.0
      %2291 = vmatpush.msra.mxu0 0.0
      %2292 = vmatpush.msra.mxu0 0.0
      %2293 = vmatpush.msra.mxu0 0.0
      %2294 = vmatpush.msra.mxu0 %v2275
      %2295 = vmatpush.msra.mxu0 %v2274
      %2296 = vmatpush.msra.mxu0 %v2273
      %2297 = vmatpush.msra.mxu0 %v2272
      %2298 = vmatmul.f32.gmra.mxu0 %v2277
      %v2299 = vpop.f32.mrf.mxu0
      %v2300 = vadd.f32 0.0, %v2299
      %2301 = vmatmul.f32.gmra.mxu0 %v2280
      %v2302 = vpop.f32.mrf.mxu0
      %v2303 = vadd.f32 0.0, %v2302
      %2304 = vdwg.mxu0
      %v2305 = vsel %vm1535, %v1986, 0
      %v2307 = vsel %vm1535, %v1987, 0
      %2309 = vmatpush.msra.mxu0 0.0
      %2310 = vmatpush.msra.mxu0 0.0
      %2311 = vmatpush.msra.mxu0 0.0
      %2312 = vmatpush.msra.mxu0 0.0
      %2313 = vmatpush.msra.mxu0 0.0
      %2314 = vmatpush.msra.mxu0 0.0
      %2315 = vmatpush.msra.mxu0 0.0
      %2316 = vmatpush.msra.mxu0 0.0
      %2317 = vmatpush.msra.mxu0 0.0
      %2318 = vmatpush.msra.mxu0 0.0
      %2319 = vmatpush.msra.mxu0 0.0
      %2320 = vmatpush.msra.mxu0 0.0
      %2321 = vmatpush.msra.mxu0 0.0
      %2322 = vmatpush.msra.mxu0 0.0
      %2323 = vmatpush.msra.mxu0 0.0
      %2324 = vmatpush.msra.mxu0 %v2271
      %2325 = vmatmul.f32.gmra.mxu0 %v2305
      %v2326 = vpop.f32.mrf.mxu0
      %v2327 = vadd.f32 %v2300, %v2326
      %2328 = vmatmul.f32.gmra.mxu0 %v2307
      %v2329 = vpop.f32.mrf.mxu0
      %v2330 = vadd.f32 %v2303, %v2329
      %2331 = vdwg.mxu0
      %v2332 = vld [vmem:[%s79] sm:$0x1]
      %v2334 = vperm.slane %v2332, 0
      %v2336 = vadd.f32 %v2327, %v2334
      %v2337 = vadd.f32 %v2330, %v2334
      %v2338 = vtanh.pop %v2336
      %v2339 = vtanh.pop %v2337
      %v2340 = vld [vmem:[%s81] sm:$0xff]
      %v2341 = vld [vmem:[%s81 + $0x8] sm:$0xff]
      %v2342 = vld [vmem:[%s81 + $0x10] sm:$0xff]
      %v2343 = vld [vmem:[%s81 + $0x18] sm:$0xff]
      %v2344 = vld [vmem:[%s83] sm:$0x1]
      %v2346 = vperm.slane %v2344, 0
      %v2349 = vsel %vm1478, %v2338, 0
      %v2352 = vsel %vm1478, %v2339, 0
      %2354 = vmatpush.msra.mxu0 0.0
      %2355 = vmatpush.msra.mxu0 0.0
      %2356 = vmatpush.msra.mxu0 0.0
      %2357 = vmatpush.msra.mxu0 0.0
      %2358 = vmatpush.msra.mxu0 0.0
      %2359 = vmatpush.msra.mxu0 0.0
      %2360 = vmatpush.msra.mxu0 0.0
      %2361 = vmatpush.msra.mxu0 0.0
      %2362 = vmatpush.msra.mxu0 0.0
      %2363 = vmatpush.msra.mxu0 0.0
      %2364 = vmatpush.msra.mxu0 0.0
      %2365 = vmatpush.msra.mxu0 0.0
      %2366 = vmatpush.msra.mxu0 %v2343
      %2367 = vmatpush.msra.mxu0 %v2342
      %2368 = vmatpush.msra.mxu0 %v2341
      %2369 = vmatpush.msra.mxu0 %v2340
      %2370 = vmatmul.f32.gmra.mxu0 %v2349
      %v2371 = vpop.f32.mrf.mxu0
      %v2372 = vadd.f32 %v2346, %v2371
      %2373 = vmatmul.f32.gmra.mxu0 %v2352
      %v2374 = vpop.f32.mrf.mxu0
      %v2375 = vadd.f32 %v2346, %v2374
      %2376 = vdwg.mxu0
      %v2377 = vmul.f32 %v2372, 1.442695
      %v2378 = vpow.pop %v2377
      %v2379 = vmul.f32 %v2375, 1.442695
      %v2380 = vpow.pop %v2379
      %2383 = vrot.lane.b32.xlu0 %v2378, 8
      %v2384 = vpop.permute.xlu0 %2383
      %2385 = vrot.lane.b32.xlu0 %v2380, 8
      %v2386 = vpop.permute.xlu0 %2385
      %v2389 = vmul.f32 %v1986, %v2384
      %v2390 = vmul.f32 %v1987, %v2386
      %v2391 = vadd.f32 %v2389, %v2372
      %v2392 = vadd.f32 %v2390, %v2375
      %v2393 = vsel %vm1535, %v1986, %v2391
      %v2394 = vsel %vm1535, %v1987, %v2392
      %v2395 = vmul.f32 %v2393, %v1979
      %v2396 = vmul.f32 %v2394, %v1984
      %2399 = vrot.lane.b32.xlu0 %v2232, 32
      %v2400 = vpop.permute.xlu0 %2399
      %2401 = vrot.lane.b32.xlu0 %v2233, 32
      %v2402 = vpop.permute.xlu0 %2401
      %2407 = vrot.lane.b32.xlu0 %v2265, 64
      %v2408 = vpop.permute.xlu0 %2407
      %2409 = vrot.lane.b32.xlu0 %v2266, 64
      %v2410 = vpop.permute.xlu0 %2409
      %2415 = vrot.lane.b32.xlu0 %v2395, 80
      %v2416 = vpop.permute.xlu0 %2415
      %2417 = vrot.lane.b32.xlu0 %v2396, 80
      %v2418 = vpop.permute.xlu0 %2417
      %2423 = vrot.lane.b32.xlu0 %v2125, 96
      %v2424 = vpop.permute.xlu0 %2423
      %2425 = vrot.lane.b32.xlu0 %v2128, 96
      %v2426 = vpop.permute.xlu0 %2425
      %v2429 = vsel %vm1478, %v2019, %v2400
      %v2430 = vsel %vm1478, %v2020, %v2402
      %v2431 = vsel %vm1760, %v2429, %v2408
      %v2432 = vsel %vm1760, %v2430, %v2410
      %vm2433 = vcmask 654336
      %v2434 = vsel %vm2433, %v2431, %v2416
      %v2435 = vsel %vm2433, %v2432, %v2418
      %vm2436 = vcmask 785408
      %v2437 = vsel %vm2436, %v2434, %v2424
      %v2438 = vsel %vm2436, %v2435, %v2426
      %vm2439 = vcmask 916480
      %v2440 = vsel %vm2439, %v2437, %v2424
      %v2441 = vsel %vm2439, %v2438, %v2426
      %v2442 = vsel %vm1505, %v2154, 0.0
      %v2443 = vsel %vm1505, %v2155, 0.0
      %2444 = vst [vmem:[%s1462] sm:$0xff] %v2440
      %2445 = vst [vmem:[%s1462 + $0x8] sm:$0xff] %v2442
      %2446 = vst [vmem:[%s1462 + $0x10] sm:$0xff] %v2441
      %2447 = vst [vmem:[%s1462 + $0x18] sm:$0xff] %v2443
      %p2448 = scmp.lt.s32.totalorder %s101, 1
      %s2449 = scalar_select %p2448, %s101, 1
      %s2450 = smul.addr %s2449, 4
      %s2451 = smul.addr %s2450, 8
      %s2452 = scalar_lea.vmem %s85, %s2451
      %p2453 = scmp.lt.s32.totalorder %s101, 1
      %s2454 = scalar_select %p2453, %s101, 1
      %s2455 = smul.addr %s2454, 8
      %s2456 = scalar_lea.vmem %s87, %s2455
      // Predicated region
      $region189: #{portaspeech_forward.1} parent=187 // pred_check
        %p2457 = pneg %p1051
      $region190: #{portaspeech_forward.1} parent=187 // pred_check_branch
        %2459 = sbr.rel (%p2457) target = $region192
      $region191: #{portaspeech_forward.1} parent=187 // pred_region
        _
      $region192: #{portaspeech_forward.1} parent=187 // pred_fallthru
        _
      // Predicated region
      $region193: #{portaspeech_forward.1} parent=187 // pred_check
        %p2460 = pneg %p1077
      $region194: #{portaspeech_forward.1} parent=187 // pred_check_branch
        %2462 = sbr.rel (%p2460) target = $region196
      $region195: #{portaspeech_forward.1} parent=187 // pred_region
        _
      $region196: #{portaspeech_forward.1} parent=187 // pred_fallthru
        _
    $region188: #{portaspeech_forward.1} parent=5 // pred_fallthru
      _
    %p2463 = scmp.le.s32.totalorder 2, %s96
    // Predicated region
    $region197: #{portaspeech_forward.1} parent=5 // pred_check
      %p2464 = pneg %p2463
    $region198: #{portaspeech_forward.1} parent=5 // pred_check_branch
      %2466 = sbr.rel (%p2464) target = $region200
    $region199: #{portaspeech_forward.1} parent=5 // pred_region
      %s2467 = ssub.s32 %s96, 2
      // Predicated region
      $region201: #{portaspeech_forward.1} parent=199 // pred_check
        %p2468 = pneg %p1057
      $region202: #{portaspeech_forward.1} parent=199 // pred_check_branch
        %2470 = sbr.rel (%p2468) target = $region204
      $region203: #{portaspeech_forward.1} parent=199 // pred_region
        %p2471 = scmp.lt.s32.totalorder %s102, 1
        %s2472 = scalar_select %p2471, %s102, 1
        %s2473 = smul.addr %s2472, 4
        %s2474 = smul.addr %s2473, 8
        %s2475 = scalar_lea.vmem %s85, %s2474
      $region204: #{portaspeech_forward.1} parent=199 // pred_fallthru
        _
      // Predicated region
      $region205: #{portaspeech_forward.1} parent=199 // pred_check
        %p2476 = pneg %p1083
      $region206: #{portaspeech_forward.1} parent=199 // pred_check_branch
        %2478 = sbr.rel (%p2476) target = $region208
      $region207: #{portaspeech_forward.1} parent=199 // pred_region
        %p2479 = scmp.lt.s32.totalorder %s102, 1
        %s2480 = scalar_select %p2479, %s102, 1
        %s2481 = smul.addr %s2480, 8
        %s2482 = scalar_lea.vmem %s87, %s2481
      $region208: #{portaspeech_forward.1} parent=199 // pred_fallthru
        _
    $region200: #{portaspeech_forward.1} parent=5 // pred_fallthru
      _
  $region6: #{portaspeech_forward.1} parent=0 // loop_footer
    %s100 = sadd.s32 1, %s96
  $region7: #{portaspeech_forward.1} parent=0 // loop_footer_branch
    %95 = sbr.rel target = $region3
  $region8: #{portaspeech_forward.1} parent=0 // loop_exit
    _

</llo_original>
